<compile_context>
chip_gen: v7x
topology: tpu7x:2x2x1
jax: 0.10.0
libtpu: 0.0.40
codegen_flags: <defaults>
</compile_context>

<pallas_src>
import jax
import jax.numpy as jnp
from jax.experimental import pallas as pl
from jax.experimental.pallas import tpu as pltpu

# ----------------------------- config -----------------------------
B = 2           # batch
C = 64          # channels (DiscHead channels)
L = 16          # sequence length
K2 = 9          # kernel size of the residual conv block
PAD = K2 // 2   # circular padding = 4
BN_EPS = 1e-5
NEG_SLOPE = 0.2
INV_SQRT2 = 0.7071067811865476

# Mosaic matmul precision: DEFAULT (1-pass bf16) is too coarse for the 1e-3 f32-parity target,
# and Precision.HIGH is not supported by the TPU lowering, so keep HIGHEST (f32 emulation).
_MXU_PRECISION = jax.lax.Precision.HIGHEST


def _dot(a, b):
    return jnp.dot(a, b, precision=_MXU_PRECISION, preferred_element_type=jnp.float32)


# ===================== fused DiscHead kernel =====================
def _disc_head_kernel(x_ref, w1_ref, w2_ref, pp_ref, o_ref):
    # x_ref : (B, C, L)            input in native PyTorch layout
    # w1_ref: (C, C)               block-1 1x1 conv weight, (C_in, C_out)
    # w2_ref: (K2*C, C)            block-2 conv weight flattened tap-major, (K*C_in, C_out)
    # pp_ref: (8, C)               packed small params: [g1, be1, g2, be2, wc_row, bc_row, 0, 0]
    # o_ref : (B, 1, L)            output
    g1, be1 = pp_ref[0:1, :], pp_ref[1:2, :]
    g2, be2 = pp_ref[2:3, :], pp_ref[3:4, :]
    wc = pp_ref[4:5, :]          # (1, C)  cls weight row
    bc = pp_ref[5:6, 0:1]        # (1, 1)  cls bias

    def bn_leaky(h, gamma, beta):
        # Training-mode BatchNorm1d folded into a single FMA:
        # one-pass stats (sum, sum of squares) -> scale/shift, then LeakyReLU(0.2).
        inv_n = 1.0 / h.shape[0]
        mu = jnp.sum(h, axis=0, keepdims=True) * inv_n
        var = jnp.sum(h * h, axis=0, keepdims=True) * inv_n - mu * mu
        scale = gamma * jax.lax.rsqrt(var + BN_EPS)      # rsqrt -> EUP
        shift = beta - mu * scale
        y = h * scale + shift
        return jnp.where(y >= 0, y, NEG_SLOPE * y)

    # ---- in-kernel layout change: (B, C, L) -> (B*L, C), channels on lanes (small XLU transpose)
    x = jnp.swapaxes(x_ref[...], 1, 2).reshape(B * L, C)

    # ---- block 1: 1x1 conv (bias dropped: cancelled by train-mode BN) + folded BN + LeakyReLU
    h = bn_leaky(_dot(x, w1_ref[...]), g1, be1)

    # ---- block 2 (residual): k=9 circular conv as ONE im2col matmul + folded BN + LeakyReLU
    h3 = h.reshape(B, L, C)
    xp = jnp.concatenate([h3[:, L - PAD:, :], h3, h3[:, :PAD, :]], axis=1)    # (B, L+2*PAD, C)
    cols = jnp.concatenate([xp[:, t:t + L, :] for t in range(K2)], axis=-1)   # (B, L, K2*C)
    g = bn_leaky(_dot(cols.reshape(B * L, K2 * C), w2_ref[...]), g2, be2)
    h = (g + h) * INV_SQRT2                               # ResidualBlock: (fn(x) + x) / sqrt(2)

    # ---- cls: channels -> 1 via VPU multiply + lane reduction (no N=1 MXU matmul)
    h3f = h.reshape(B, L, C)
    cls = jnp.sum(h3f * wc, axis=-1)                      # (B, L)
    o_ref[...] = cls[:, None, :] + bc                     # (B, 1, L)


def disc_head_forward(x, p):
    # x: (B, C, L) exactly as the PyTorch module receives it; no wrapper-side layout ops.
    vspec = pl.BlockSpec(memory_space=pltpu.MemorySpace.VMEM)
    return pl.pallas_call(
        _disc_head_kernel,
        out_shape=jax.ShapeDtypeStruct((B, 1, L), jnp.float32),
        in_specs=[vspec, vspec, vspec, vspec],
        out_specs=vspec,
    )(x, p["w1k"], p["w2k"], p["pp"])


# ===================== parameters (deterministic synthetic init) =====================
def init_params(key):
    ks = jax.random.split(key, 10)

    def nrm(k, shape, scale=0.05):
        return (scale * jax.random.normal(k, shape)).astype(jnp.float32)

    # PyTorch Conv1d layout (C_out, C_in, K)
    w1_pt = nrm(ks[0], (C, C, 1))
    w2_pt = nrm(ks[1], (C, C, K2))
    wc_pt = nrm(ks[2], (1, C, 1))
    b1 = nrm(ks[3], (C,), 0.02)
    g1 = 1.0 + nrm(ks[4], (C,), 0.1)
    be1 = nrm(ks[5], (C,), 0.1)
    b2 = nrm(ks[6], (C,), 0.02)
    g2 = 1.0 + nrm(ks[7], (C,), 0.1)
    be2 = nrm(ks[8], (C,), 0.1)
    bc = nrm(ks[9], (), 0.02)

    # --- kernel-ready layouts ---
    w1k = jnp.transpose(w1_pt[:, :, 0])                        # (C_in, C_out)
    w2k = jnp.transpose(w2_pt, (2, 1, 0)).reshape(K2 * C, C)   # (K*C_in, C_out), tap-major rows
    bc_row = jnp.zeros((C,), jnp.float32).at[0].set(bc)
    zeros = jnp.zeros((C,), jnp.float32)
    pp = jnp.stack([g1, be1, g2, be2, wc_pt[0, :, 0], bc_row, zeros, zeros], axis=0)  # (8, C)

    return {
        # kernel inputs
        "w1k": w1k, "w2k": w2k, "pp": pp,
        # PyTorch-layout copies + biases, used only by the pure-JAX reference below
        "w1_pt": w1_pt, "w2_pt": w2_pt, "wc_pt": wc_pt,
        "b1": b1, "b2": b2, "g1": g1, "be1": be1, "g2": g2, "be2": be2, "bc": bc,
    }


# ===================== pure-JAX reference (for validation) =====================
def _ref_forward(x, p):
    def conv1d(h, w_pt, b, circ_pad):
        if circ_pad:
            h = jnp.pad(h, ((0, 0), (0, 0), (circ_pad, circ_pad)), mode="wrap")
        out = jax.lax.conv_general_dilated(
            h, w_pt, window_strides=(1,), padding="VALID",
            dimension_numbers=("NCH", "OIH", "NCH"),
            precision=jax.lax.Precision.HIGHEST)
        return out + b.reshape(1, -1, 1)

    def bn(h, gamma, beta):
        mu = jnp.mean(h, axis=(0, 2), keepdims=True)
        var = jnp.mean(jnp.square(h - mu), axis=(0, 2), keepdims=True)
        return ((h - mu) * jax.lax.rsqrt(var + BN_EPS) * gamma.reshape(1, -1, 1)
                + beta.reshape(1, -1, 1))

    def leaky(h):
        return jnp.where(h >= 0, h, NEG_SLOPE * h)

    # Reference keeps the conv biases b1/b2 -- training-mode BN cancels them exactly, which
    # also validates their removal from the Pallas kernel.
    h = leaky(bn(conv1d(x, p["w1_pt"], p["b1"], 0), p["g1"], p["be1"]))
    g = leaky(bn(conv1d(h, p["w2_pt"], p["b2"], PAD), p["g2"], p["be2"]))
    h = (g + h) * INV_SQRT2
    return conv1d(h, p["wc_pt"], jnp.reshape(p["bc"], (1,)), 0)     # (B, 1, L)


if __name__ == "__main__":
    key = jax.random.PRNGKey(0)
    kx, kp = jax.random.split(key)
    x = jax.random.normal(kx, (B, C, L), jnp.float32)
    params = init_params(kp)

    fwd = jax.jit(disc_head_forward)
    out = jax.block_until_ready(fwd(x, params))

    assert out.shape == (B, 1, L), out.shape
    assert out.dtype == jnp.float32
    assert bool(jnp.all(jnp.isfinite(out)))

    ref = _ref_forward(x, params)
    err = float(jnp.max(jnp.abs(out - ref)))
    assert err < 1e-3, f"mismatch vs reference: {err}"
    print("KERNEL_OK")
</pallas_src>

<mosaic_0001>
module attributes {stable_mosaic.version = 11 : i64} {
  func.func @_disc_head_kernel(%arg0: memref<2x64x16xf32, #tpu.memory_space<vmem>>, %arg1: memref<64x64xf32, #tpu.memory_space<vmem>>, %arg2: memref<576x64xf32, #tpu.memory_space<vmem>>, %arg3: memref<8x64xf32, #tpu.memory_space<vmem>>, %arg4: memref<2x1x16xf32, #tpu.memory_space<vmem>>) attributes {dimension_semantics = [], scalar_prefetch = 0 : i64, scratch_operands = 0 : i64, tpu.core_type = #tpu.core_type<tc>} {
    %c0 = arith.constant 0 : index
    %c0_0 = arith.constant 0 : index
    %0 = vector.load %arg3[%c0, %c0_0] : memref<8x64xf32, #tpu.memory_space<vmem>>, vector<1x64xf32>
    %c1 = arith.constant 1 : index
    %c0_1 = arith.constant 0 : index
    %1 = vector.load %arg3[%c1, %c0_1] : memref<8x64xf32, #tpu.memory_space<vmem>>, vector<1x64xf32>
    %c2 = arith.constant 2 : index
    %c0_2 = arith.constant 0 : index
    %2 = vector.load %arg3[%c2, %c0_2] : memref<8x64xf32, #tpu.memory_space<vmem>>, vector<1x64xf32>
    %c3 = arith.constant 3 : index
    %c0_3 = arith.constant 0 : index
    %3 = vector.load %arg3[%c3, %c0_3] : memref<8x64xf32, #tpu.memory_space<vmem>>, vector<1x64xf32>
    %c4 = arith.constant 4 : index
    %c0_4 = arith.constant 0 : index
    %4 = vector.load %arg3[%c4, %c0_4] : memref<8x64xf32, #tpu.memory_space<vmem>>, vector<1x64xf32>
    %c5 = arith.constant 5 : index
    %c0_5 = arith.constant 0 : index
    %5 = vector.load %arg3[%c5, %c0_5] : memref<8x64xf32, #tpu.memory_space<vmem>>, vector<1x1xf32>
    %c0_6 = arith.constant 0 : index
    %c0_7 = arith.constant 0 : index
    %c0_8 = arith.constant 0 : index
    %6 = vector.load %arg0[%c0_6, %c0_7, %c0_8] : memref<2x64x16xf32, #tpu.memory_space<vmem>>, vector<2x64x16xf32>
    %7 = tpu.transpose %6, [0, 2, 1] : vector<2x64x16xf32> -> vector<2x16x64xf32>
    %8 = vector.shape_cast %7 : vector<2x16x64xf32> to vector<32x64xf32>
    %c0_9 = arith.constant 0 : index
    %c0_10 = arith.constant 0 : index
    %9 = vector.load %arg1[%c0_9, %c0_10] : memref<64x64xf32, #tpu.memory_space<vmem>>, vector<64x64xf32>
    %cst = arith.constant dense<0.000000e+00> : vector<32x64xf32>
    %10 = tpu.matmul %8, %9, %cst {dimension_numbers = #tpu.dot_dimension_numbers<[1], [0], [0], [1], [0, 0, 1, 1], [], []>, precision = #tpu.contract_precision<fp32>} : vector<32x64xf32>, vector<64x64xf32>, vector<32x64xf32> -> vector<32x64xf32>
    %cst_11 = arith.constant dense<0.000000e+00> : vector<64xf32>
    %11 = vector.multi_reduction <add>, %10, %cst_11 [0] : vector<32x64xf32> to vector<64xf32>
    %12 = vector.shape_cast %11 : vector<64xf32> to vector<1x64xf32>
    %cst_12 = arith.constant 3.125000e-02 : f32
    %13 = vector.broadcast %cst_12 : f32 to vector<1x64xf32>
    %14 = arith.mulf %12, %13 : vector<1x64xf32>
    %15 = arith.mulf %10, %10 : vector<32x64xf32>
    %cst_13 = arith.constant dense<0.000000e+00> : vector<64xf32>
    %16 = vector.multi_reduction <add>, %15, %cst_13 [0] : vector<32x64xf32> to vector<64xf32>
    %17 = vector.shape_cast %16 : vector<64xf32> to vector<1x64xf32>
    %cst_14 = arith.constant 3.125000e-02 : f32
    %18 = vector.broadcast %cst_14 : f32 to vector<1x64xf32>
    %19 = arith.mulf %17, %18 : vector<1x64xf32>
    %20 = arith.mulf %14, %14 : vector<1x64xf32>
    %21 = arith.subf %19, %20 : vector<1x64xf32>
    %cst_15 = arith.constant 9.99999974E-6 : f32
    %22 = vector.broadcast %cst_15 : f32 to vector<1x64xf32>
    %23 = arith.addf %21, %22 : vector<1x64xf32>
    %24 = math.rsqrt %23 : vector<1x64xf32>
    %25 = arith.mulf %0, %24 : vector<1x64xf32>
    %26 = arith.mulf %14, %25 : vector<1x64xf32>
    %27 = arith.subf %1, %26 : vector<1x64xf32>
    %28 = vector.broadcast %25 : vector<1x64xf32> to vector<32x64xf32>
    %29 = arith.mulf %10, %28 : vector<32x64xf32>
    %30 = vector.broadcast %27 : vector<1x64xf32> to vector<32x64xf32>
    %31 = arith.addf %29, %30 : vector<32x64xf32>
    %cst_16 = arith.constant 0.000000e+00 : f32
    %32 = vector.broadcast %cst_16 : f32 to vector<32x64xf32>
    %33 = arith.cmpf oge, %31, %32 : vector<32x64xf32>
    %cst_17 = arith.constant 2.000000e-01 : f32
    %34 = vector.broadcast %cst_17 : f32 to vector<32x64xf32>
    %35 = arith.mulf %34, %31 : vector<32x64xf32>
    %36 = arith.select %33, %31, %35 : vector<32x64xi1>, vector<32x64xf32>
    %37 = vector.shape_cast %36 : vector<32x64xf32> to vector<2x16x64xf32>
    %38 = vector.extract_strided_slice %37 {offsets = [0, 12, 0], sizes = [2, 4, 64], strides = [1, 1, 1]} : vector<2x16x64xf32> to vector<2x4x64xf32>
    %39 = vector.extract_strided_slice %37 {offsets = [0, 0, 0], sizes = [2, 4, 64], strides = [1, 1, 1]} : vector<2x16x64xf32> to vector<2x4x64xf32>
    %40 = tpu.concatenate %38, %37, %39 in 1 : vector<2x4x64xf32>, vector<2x16x64xf32>, vector<2x4x64xf32> -> vector<2x24x64xf32>
    %41 = vector.extract_strided_slice %40 {offsets = [0, 0, 0], sizes = [2, 16, 64], strides = [1, 1, 1]} : vector<2x24x64xf32> to vector<2x16x64xf32>
    %42 = vector.extract_strided_slice %40 {offsets = [0, 1, 0], sizes = [2, 16, 64], strides = [1, 1, 1]} : vector<2x24x64xf32> to vector<2x16x64xf32>
    %43 = vector.extract_strided_slice %40 {offsets = [0, 2, 0], sizes = [2, 16, 64], strides = [1, 1, 1]} : vector<2x24x64xf32> to vector<2x16x64xf32>
    %44 = vector.extract_strided_slice %40 {offsets = [0, 3, 0], sizes = [2, 16, 64], strides = [1, 1, 1]} : vector<2x24x64xf32> to vector<2x16x64xf32>
    %45 = vector.extract_strided_slice %40 {offsets = [0, 4, 0], sizes = [2, 16, 64], strides = [1, 1, 1]} : vector<2x24x64xf32> to vector<2x16x64xf32>
    %46 = vector.extract_strided_slice %40 {offsets = [0, 5, 0], sizes = [2, 16, 64], strides = [1, 1, 1]} : vector<2x24x64xf32> to vector<2x16x64xf32>
    %47 = vector.extract_strided_slice %40 {offsets = [0, 6, 0], sizes = [2, 16, 64], strides = [1, 1, 1]} : vector<2x24x64xf32> to vector<2x16x64xf32>
    %48 = vector.extract_strided_slice %40 {offsets = [0, 7, 0], sizes = [2, 16, 64], strides = [1, 1, 1]} : vector<2x24x64xf32> to vector<2x16x64xf32>
    %49 = vector.extract_strided_slice %40 {offsets = [0, 8, 0], sizes = [2, 16, 64], strides = [1, 1, 1]} : vector<2x24x64xf32> to vector<2x16x64xf32>
    %50 = tpu.concatenate %41, %42, %43, %44, %45, %46, %47, %48, %49 in 2 : vector<2x16x64xf32>, vector<2x16x64xf32>, vector<2x16x64xf32>, vector<2x16x64xf32>, vector<2x16x64xf32>, vector<2x16x64xf32>, vector<2x16x64xf32>, vector<2x16x64xf32>, vector<2x16x64xf32> -> vector<2x16x576xf32>
    %51 = vector.shape_cast %50 : vector<2x16x576xf32> to vector<32x576xf32>
    %c0_18 = arith.constant 0 : index
    %c0_19 = arith.constant 0 : index
    %52 = vector.load %arg2[%c0_18, %c0_19] : memref<576x64xf32, #tpu.memory_space<vmem>>, vector<576x64xf32>
    %cst_20 = arith.constant dense<0.000000e+00> : vector<32x64xf32>
    %53 = tpu.matmul %51, %52, %cst_20 {dimension_numbers = #tpu.dot_dimension_numbers<[1], [0], [0], [1], [0, 0, 1, 1], [], []>, precision = #tpu.contract_precision<fp32>} : vector<32x576xf32>, vector<576x64xf32>, vector<32x64xf32> -> vector<32x64xf32>
    %cst_21 = arith.constant dense<0.000000e+00> : vector<64xf32>
    %54 = vector.multi_reduction <add>, %53, %cst_21 [0] : vector<32x64xf32> to vector<64xf32>
    %55 = vector.shape_cast %54 : vector<64xf32> to vector<1x64xf32>
    %cst_22 = arith.constant 3.125000e-02 : f32
    %56 = vector.broadcast %cst_22 : f32 to vector<1x64xf32>
    %57 = arith.mulf %55, %56 : vector<1x64xf32>
    %58 = arith.mulf %53, %53 : vector<32x64xf32>
    %cst_23 = arith.constant dense<0.000000e+00> : vector<64xf32>
    %59 = vector.multi_reduction <add>, %58, %cst_23 [0] : vector<32x64xf32> to vector<64xf32>
    %60 = vector.shape_cast %59 : vector<64xf32> to vector<1x64xf32>
    %cst_24 = arith.constant 3.125000e-02 : f32
    %61 = vector.broadcast %cst_24 : f32 to vector<1x64xf32>
    %62 = arith.mulf %60, %61 : vector<1x64xf32>
    %63 = arith.mulf %57, %57 : vector<1x64xf32>
    %64 = arith.subf %62, %63 : vector<1x64xf32>
    %cst_25 = arith.constant 9.99999974E-6 : f32
    %65 = vector.broadcast %cst_25 : f32 to vector<1x64xf32>
    %66 = arith.addf %64, %65 : vector<1x64xf32>
    %67 = math.rsqrt %66 : vector<1x64xf32>
    %68 = arith.mulf %2, %67 : vector<1x64xf32>
    %69 = arith.mulf %57, %68 : vector<1x64xf32>
    %70 = arith.subf %3, %69 : vector<1x64xf32>
    %71 = vector.broadcast %68 : vector<1x64xf32> to vector<32x64xf32>
    %72 = arith.mulf %53, %71 : vector<32x64xf32>
    %73 = vector.broadcast %70 : vector<1x64xf32> to vector<32x64xf32>
    %74 = arith.addf %72, %73 : vector<32x64xf32>
    %cst_26 = arith.constant 0.000000e+00 : f32
    %75 = vector.broadcast %cst_26 : f32 to vector<32x64xf32>
    %76 = arith.cmpf oge, %74, %75 : vector<32x64xf32>
    %cst_27 = arith.constant 2.000000e-01 : f32
    %77 = vector.broadcast %cst_27 : f32 to vector<32x64xf32>
    %78 = arith.mulf %77, %74 : vector<32x64xf32>
    %79 = arith.select %76, %74, %78 : vector<32x64xi1>, vector<32x64xf32>
    %80 = arith.addf %79, %36 : vector<32x64xf32>
    %cst_28 = arith.constant 0.707106769 : f32
    %81 = vector.broadcast %cst_28 : f32 to vector<32x64xf32>
    %82 = arith.mulf %80, %81 : vector<32x64xf32>
    %83 = vector.shape_cast %82 : vector<32x64xf32> to vector<2x16x64xf32>
    %84 = vector.shape_cast %4 : vector<1x64xf32> to vector<1x1x64xf32>
    %85 = vector.broadcast %84 : vector<1x1x64xf32> to vector<2x16x64xf32>
    %86 = arith.mulf %83, %85 : vector<2x16x64xf32>
    %cst_29 = arith.constant dense<0.000000e+00> : vector<2x16xf32>
    %87 = vector.multi_reduction <add>, %86, %cst_29 [2] : vector<2x16x64xf32> to vector<2x16xf32>
    %88 = vector.shape_cast %87 : vector<2x16xf32> to vector<2x1x16xf32>
    %89 = vector.shape_cast %5 : vector<1x1xf32> to vector<1x1x1xf32>
    %90 = vector.broadcast %89 : vector<1x1x1xf32> to vector<2x1x16xf32>
    %91 = arith.addf %88, %90 : vector<2x1x16xf32>
    %c0_30 = arith.constant 0 : index
    %c0_31 = arith.constant 0 : index
    %c0_32 = arith.constant 0 : index
    %92 = vector.load %arg4[%c0_30, %c0_31, %c0_32] : memref<2x1x16xf32, #tpu.memory_space<vmem>>, vector<2x1x16xf32>
    tpu.vector_store %arg4[%c0_30, %c0_31, %c0_32], %91 {strides = array<i32>} : memref<2x1x16xf32, #tpu.memory_space<vmem>>, vector<2x1x16xf32>,
    return
  }
}

</mosaic_0001>

<llo_original>
// kernel: disc_head_forward.1
$region0: #{disc_head_forward.1}
  #allocation0 [shape = 'u32[]', space=smem, size = 0x4, offset = 0x4, fixed_abs, tag = 'smem constant byte address 0x4 - core index']
  #allocation1 [shape = 'u32[144,128]{1,0:T(1,128)}', space=vmem, size = 0x12000, scoped, tag = 'internal scratch']
  %s0 = inlined_call_operand.vmem [shape: f32[2,64,16], index: 0, kind: input, shape index: {}]
  %s1 = inlined_call_operand.vmem [shape: f32[64,64], index: 1, kind: input, shape index: {}]
  %s2 = inlined_call_operand.vmem [shape: f32[576,64], index: 2, kind: input, shape index: {}]
  %s3 = inlined_call_operand.vmem [shape: f32[8,64], index: 3, kind: input, shape index: {}]
  %s4 = inlined_call_operand.hbm [shape: f32[2,1,16], index: 4, kind: output, shape index: {}]
  %s5 = sld [smem:[#allocation0]]
  $region26: #{disc_head_forward.1} parent=0
    _
  %s7 = ssub.s32 1, %s5
  %s8 = scalar_select 0, %s7, %s5
  $region1: #{disc_head_forward.1} parent=0
    #allocation2 [shape = 'u8[1024]{0}', space=vmem, size = 0x400, scoped, tag = 'output window, operand 0, single buffered']
    #allocation3 [shape = 's32[1]{0}', space=sflag, size = 0x4, scoped, tag = 'scoped memory for disc_head_forward.1']
    %9 = vsyncpa [#allocation3], 0
    // Predicated region
    $region2: #{disc_head_forward.1} parent=1 // pred_check
      _
    $region3: #{disc_head_forward.1} parent=1 // pred_check_branch
      %11 = sbr.rel (0) target = $region5
    $region4: #{disc_head_forward.1} parent=1 // pred_region
      _
    $region5: #{disc_head_forward.1} parent=1 // pred_fallthru
      _
    // Predicated region
    $region6: #{disc_head_forward.1} parent=1 // pred_check
      _
    $region7: #{disc_head_forward.1} parent=1 // pred_check_branch
      %13 = sbr.rel (0) target = $region9
    $region8: #{disc_head_forward.1} parent=1 // pred_region
      _
    $region9: #{disc_head_forward.1} parent=1 // pred_fallthru
      _
    // Predicated region
    $region10: #{disc_head_forward.1} parent=1 // pred_check
      _
    $region11: #{disc_head_forward.1} parent=1 // pred_check_branch
      %15 = sbr.rel (0) target = $region13
    $region12: #{disc_head_forward.1} parent=1 // pred_region
      _
    $region13: #{disc_head_forward.1} parent=1 // pred_fallthru
      _
    // Predicated region
    $region14: #{disc_head_forward.1} parent=1 // pred_check
      _
    $region15: #{disc_head_forward.1} parent=1 // pred_check_branch
      %17 = sbr.rel (0) target = $region17
    $region16: #{disc_head_forward.1} parent=1 // pred_region
      _
    $region17: #{disc_head_forward.1} parent=1 // pred_fallthru
      _
    %v18 = vld [vmem:[%s3] sm:$0x1]
    %v19 = vld [vmem:[%s3 + $0x1] sm:$0x1]
    %v20 = vld [vmem:[%s3 + $0x2] sm:$0x1]
    %v21 = vld [vmem:[%s3 + $0x3] sm:$0x1]
    %v22 = vld [vmem:[%s3 + $0x4] sm:$0x1]
    %v23 = vld [vmem:[%s3 + $0x5] sm:$0x1]
    %v24 = vld [vmem:[%s0] sm:$0xff]
    %v25 = vld [vmem:[%s0 + $0x8] sm:$0xff]
    %v26 = vld [vmem:[%s0 + $0x10] sm:$0xff]
    %v27 = vld [vmem:[%s0 + $0x18] sm:$0xff]
    %v28 = vld [vmem:[%s0 + $0x20] sm:$0xff]
    %v29 = vld [vmem:[%s0 + $0x28] sm:$0xff]
    %v30 = vld [vmem:[%s0 + $0x30] sm:$0xff]
    %v31 = vld [vmem:[%s0 + $0x38] sm:$0xff]
    %v32 = vld [vmem:[%s0 + $0x40] sm:$0xff]
    %v33 = vld [vmem:[%s0 + $0x48] sm:$0xff]
    %v34 = vld [vmem:[%s0 + $0x50] sm:$0xff]
    %v35 = vld [vmem:[%s0 + $0x58] sm:$0xff]
    %v36 = vld [vmem:[%s0 + $0x60] sm:$0xff]
    %v37 = vld [vmem:[%s0 + $0x68] sm:$0xff]
    %v38 = vld [vmem:[%s0 + $0x70] sm:$0xff]
    %v39 = vld [vmem:[%s0 + $0x78] sm:$0xff]
    %40 = vxpose.xlu0.b32.start [1/16] %v24, 128
    %41 = vxpose.xlu0.b32.cont [2/16] %v25, 128
    %42 = vxpose.xlu0.b32.cont [3/16] %v26, 128
    %43 = vxpose.xlu0.b32.cont [4/16] %v27, 128
    %44 = vxpose.xlu0.b32.cont [5/16] %v28, 128
    %45 = vxpose.xlu0.b32.cont [6/16] %v29, 128
    %46 = vxpose.xlu0.b32.cont [7/16] %v30, 128
    %47 = vxpose.xlu0.b32.cont [8/16] %v31, 128
    %48 = vxpose.xlu0.b32.cont [9/16] 0.0, 128
    %49 = vxpose.xlu0.b32.cont [10/16] 0.0, 128
    %50 = vxpose.xlu0.b32.cont [11/16] 0.0, 128
    %51 = vxpose.xlu0.b32.cont [12/16] 0.0, 128
    %52 = vxpose.xlu0.b32.cont [13/16] 0.0, 128
    %53 = vxpose.xlu0.b32.cont [14/16] 0.0, 128
    %54 = vxpose.xlu0.b32.cont [15/16] 0.0, 128
    %55 = vxpose.xlu0.b32.end [16/16] 0.0, 128
    %v56 = vpop.trf.xlu0
    %v57 = vpop.trf.xlu0
    %v58 = vpop.trf.xlu0
    %v59 = vpop.trf.xlu0
    %v60 = vpop.trf.xlu0
    %v61 = vpop.trf.xlu0
    %v62 = vpop.trf.xlu0
    %v63 = vpop.trf.xlu0
    %v64 = vpop.trf.xlu0
    %v65 = vpop.trf.xlu0
    %v66 = vpop.trf.xlu0
    %v67 = vpop.trf.xlu0
    %v68 = vpop.trf.xlu0
    %v69 = vpop.trf.xlu0
    %v70 = vpop.trf.xlu0
    %v71 = vpop.trf.xlu0
    %72 = vxpose.xlu0.b32.start [1/16] %v32, 128
    %73 = vxpose.xlu0.b32.cont [2/16] %v33, 128
    %74 = vxpose.xlu0.b32.cont [3/16] %v34, 128
    %75 = vxpose.xlu0.b32.cont [4/16] %v35, 128
    %76 = vxpose.xlu0.b32.cont [5/16] %v36, 128
    %77 = vxpose.xlu0.b32.cont [6/16] %v37, 128
    %78 = vxpose.xlu0.b32.cont [7/16] %v38, 128
    %79 = vxpose.xlu0.b32.cont [8/16] %v39, 128
    %80 = vxpose.xlu0.b32.cont [9/16] 0.0, 128
    %81 = vxpose.xlu0.b32.cont [10/16] 0.0, 128
    %82 = vxpose.xlu0.b32.cont [11/16] 0.0, 128
    %83 = vxpose.xlu0.b32.cont [12/16] 0.0, 128
    %84 = vxpose.xlu0.b32.cont [13/16] 0.0, 128
    %85 = vxpose.xlu0.b32.cont [14/16] 0.0, 128
    %86 = vxpose.xlu0.b32.cont [15/16] 0.0, 128
    %87 = vxpose.xlu0.b32.end [16/16] 0.0, 128
    %v88 = vpop.trf.xlu0
    %v89 = vpop.trf.xlu0
    %v90 = vpop.trf.xlu0
    %v91 = vpop.trf.xlu0
    %v92 = vpop.trf.xlu0
    %v93 = vpop.trf.xlu0
    %v94 = vpop.trf.xlu0
    %v95 = vpop.trf.xlu0
    %v96 = vpop.trf.xlu0
    %v97 = vpop.trf.xlu0
    %v98 = vpop.trf.xlu0
    %v99 = vpop.trf.xlu0
    %v100 = vpop.trf.xlu0
    %v101 = vpop.trf.xlu0
    %v102 = vpop.trf.xlu0
    %v103 = vpop.trf.xlu0
    %v104 = vld [vmem:[%s1] sm:$0xff]
    %v105 = vld [vmem:[%s1 + $0x8] sm:$0xff]
    %v106 = vld [vmem:[%s1 + $0x10] sm:$0xff]
    %v107 = vld [vmem:[%s1 + $0x18] sm:$0xff]
    %v108 = vld [vmem:[%s1 + $0x20] sm:$0xff]
    %v109 = vld [vmem:[%s1 + $0x28] sm:$0xff]
    %v110 = vld [vmem:[%s1 + $0x30] sm:$0xff]
    %v111 = vld [vmem:[%s1 + $0x38] sm:$0xff]
    %vm112 = vcmask 523264
    %v114 = vsel %vm112, %v56, 0
    %v117 = vsel %vm112, %v57, 0
    %v120 = vsel %vm112, %v88, 0
    %v123 = vsel %vm112, %v89, 0
    %125 = vmatprep.subr.mxu0 0.0
    %v126 = vand.u32 %v104, 4294901760
    %127 = vmatpush1.msra.mxu0 %v126
    %128 = vmatprep.subr.mxu0 0.0
    %v129 = vand.u32 %v105, 4294901760
    %130 = vmatpush1.msra.mxu0 %v129
    %131 = vmatprep.subr.mxu0 0.0
    %v132 = vand.u32 %v106, 4294901760
    %133 = vmatpush1.msra.mxu0 %v132
    %134 = vmatprep.subr.mxu0 0.0
    %v135 = vand.u32 %v107, 4294901760
    %136 = vmatpush1.msra.mxu0 %v135
    %137 = vmatprep.subr.mxu0 0.0
    %v138 = vand.u32 %v108, 4294901760
    %139 = vmatpush1.msra.mxu0 %v138
    %140 = vmatprep.subr.mxu0 0.0
    %v141 = vand.u32 %v109, 4294901760
    %142 = vmatpush1.msra.mxu0 %v141
    %143 = vmatprep.subr.mxu0 0.0
    %v144 = vand.u32 %v110, 4294901760
    %145 = vmatpush1.msra.mxu0 %v144
    %146 = vmatprep.subr.mxu0 0.0
    %v147 = vand.u32 %v111, 4294901760
    %148 = vmatpush1.msra.mxu0 %v147
    %149 = vmatprep.subr.mxu0 0.0
    %150 = vmatpush1.msra.mxu0 0.0
    %151 = vmatprep.subr.mxu0 0.0
    %152 = vmatpush1.msra.mxu0 0.0
    %153 = vmatprep.subr.mxu0 0.0
    %154 = vmatpush1.msra.mxu0 0.0
    %155 = vmatprep.subr.mxu0 0.0
    %156 = vmatpush1.msra.mxu0 0.0
    %157 = vmatprep.subr.mxu0 0.0
    %158 = vmatpush1.msra.mxu0 0.0
    %159 = vmatprep.subr.mxu0 0.0
    %160 = vmatpush1.msra.mxu0 0.0
    %161 = vmatprep.subr.mxu0 0.0
    %162 = vmatpush1.msra.mxu0 0.0
    %163 = vmatprep.subr.mxu0 0.0
    %164 = vmatpush1.msra.mxu0 0.0
    %165 = vmatprep.subr.mxu0 0.0
    %166 = vmatpush1.msra.mxu0 0.0
    %167 = vmatprep.subr.mxu0 0.0
    %168 = vmatpush1.msra.mxu0 0.0
    %169 = vmatprep.subr.mxu0 0.0
    %170 = vmatpush1.msra.mxu0 0.0
    %171 = vmatprep.subr.mxu0 0.0
    %172 = vmatpush1.msra.mxu0 0.0
    %173 = vmatprep.subr.mxu0 0.0
    %174 = vmatpush1.msra.mxu0 0.0
    %175 = vmatprep.subr.mxu0 0.0
    %176 = vmatpush1.msra.mxu0 0.0
    %177 = vmatprep.subr.mxu0 0.0
    %178 = vmatpush1.msra.mxu0 0.0
    %179 = vmatprep.subr.mxu0 0.0
    %180 = vmatpush1.msra.mxu0 0.0
    %181 = vmatprep.subr.mxu0 0.0
    %182 = vmatpush1.msra.mxu0 0.0
    %183 = vmatprep.subr.mxu0 0.0
    %184 = vmatpush1.msra.mxu0 0.0
    %185 = vmatprep.subr.mxu0 0.0
    %186 = vmatpush1.msra.mxu0 0.0
    %187 = vmatprep.subr.mxu0 0.0
    %188 = vmatpush1.msra.mxu0 0.0
    %189 = vmatprep.subr.mxu0 0.0
    %190 = vmatpush1.msra.mxu0 0.0
    %191 = vmatprep.subr.mxu0 0.0
    %192 = vmatpush1.msra.mxu0 0.0
    %193 = vmatprep.subr.mxu0 0.0
    %194 = vmatpush1.msra.mxu0 0.0
    %195 = vmatprep.subr.mxu0 0.0
    %196 = vmatpush1.msra.mxu0 0.0
    %197 = vmatprep.mubr.f32.mxu0 0.0
    %v198 = vand.u32 %v114, 4294901760
    %v199 = vsub.f32 %v114, %v198
    %v200 = vand.u32 %v199, 4294901760
    %v201 = vsub.f32 %v199, %v200
    %v202 = vand.u32 %v201, 4294901760
    %203 = vmatmul.mubr.f32.gmra.mrb[0].mxu0 %v202
    %v204 = vpop.f32.mrb[0].mxu0
    %v205 = vadd.f32 0.0, %v204
    %v206 = vpop.f32.mrb[0].mxu0
    %207 = vmatprep.mubr.f32.mxu0 0.0
    %v208 = vand.u32 %v117, 4294901760
    %v209 = vsub.f32 %v117, %v208
    %v210 = vand.u32 %v209, 4294901760
    %v211 = vsub.f32 %v209, %v210
    %v212 = vand.u32 %v211, 4294901760
    %213 = vmatmul.mubr.f32.gmra.mrb[0].mxu0 %v212
    %v214 = vpop.f32.mrb[0].mxu0
    %v215 = vadd.f32 0.0, %v214
    %v216 = vpop.f32.mrb[0].mxu0
    %217 = vmatprep.mubr.f32.mxu0 0.0
    %v218 = vand.u32 %v120, 4294901760
    %v219 = vsub.f32 %v120, %v218
    %v220 = vand.u32 %v219, 4294901760
    %v221 = vsub.f32 %v219, %v220
    %v222 = vand.u32 %v221, 4294901760
    %223 = vmatmul.mubr.f32.gmra.mrb[0].mxu0 %v222
    %v224 = vpop.f32.mrb[0].mxu0
    %v225 = vadd.f32 0.0, %v224
    %v226 = vpop.f32.mrb[0].mxu0
    %227 = vmatprep.mubr.f32.mxu0 0.0
    %v228 = vand.u32 %v123, 4294901760
    %v229 = vsub.f32 %v123, %v228
    %v230 = vand.u32 %v229, 4294901760
    %v231 = vsub.f32 %v229, %v230
    %v232 = vand.u32 %v231, 4294901760
    %233 = vmatmul.mubr.f32.gmra.mrb[0].mxu0 %v232
    %v234 = vpop.f32.mrb[0].mxu0
    %v235 = vadd.f32 0.0, %v234
    %v236 = vpop.f32.mrb[0].mxu0
    %237 = vdwg.mxu0
    %238 = vmatprep.subr.mxu0 0.0
    %v239 = vand.u32 %v104, 4294901760
    %v240 = vsub.f32 %v104, %v239
    %v241 = vand.u32 %v240, 4294901760
    %v242 = vsub.f32 %v240, %v241
    %v243 = vand.u32 %v242, 4294901760
    %244 = vmatpush1.msra.mxu0 %v243
    %245 = vmatprep.subr.mxu0 0.0
    %v246 = vand.u32 %v105, 4294901760
    %v247 = vsub.f32 %v105, %v246
    %v248 = vand.u32 %v247, 4294901760
    %v249 = vsub.f32 %v247, %v248
    %v250 = vand.u32 %v249, 4294901760
    %251 = vmatpush1.msra.mxu0 %v250
    %252 = vmatprep.subr.mxu0 0.0
    %v253 = vand.u32 %v106, 4294901760
    %v254 = vsub.f32 %v106, %v253
    %v255 = vand.u32 %v254, 4294901760
    %v256 = vsub.f32 %v254, %v255
    %v257 = vand.u32 %v256, 4294901760
    %258 = vmatpush1.msra.mxu0 %v257
    %259 = vmatprep.subr.mxu0 0.0
    %v260 = vand.u32 %v107, 4294901760
    %v261 = vsub.f32 %v107, %v260
    %v262 = vand.u32 %v261, 4294901760
    %v263 = vsub.f32 %v261, %v262
    %v264 = vand.u32 %v263, 4294901760
    %265 = vmatpush1.msra.mxu0 %v264
    %266 = vmatprep.subr.mxu0 0.0
    %v267 = vand.u32 %v108, 4294901760
    %v268 = vsub.f32 %v108, %v267
    %v269 = vand.u32 %v268, 4294901760
    %v270 = vsub.f32 %v268, %v269
    %v271 = vand.u32 %v270, 4294901760
    %272 = vmatpush1.msra.mxu0 %v271
    %273 = vmatprep.subr.mxu0 0.0
    %v274 = vand.u32 %v109, 4294901760
    %v275 = vsub.f32 %v109, %v274
    %v276 = vand.u32 %v275, 4294901760
    %v277 = vsub.f32 %v275, %v276
    %v278 = vand.u32 %v277, 4294901760
    %279 = vmatpush1.msra.mxu0 %v278
    %280 = vmatprep.subr.mxu0 0.0
    %v281 = vand.u32 %v110, 4294901760
    %v282 = vsub.f32 %v110, %v281
    %v283 = vand.u32 %v282, 4294901760
    %v284 = vsub.f32 %v282, %v283
    %v285 = vand.u32 %v284, 4294901760
    %286 = vmatpush1.msra.mxu0 %v285
    %287 = vmatprep.subr.mxu0 0.0
    %v288 = vand.u32 %v111, 4294901760
    %v289 = vsub.f32 %v111, %v288
    %v290 = vand.u32 %v289, 4294901760
    %v291 = vsub.f32 %v289, %v290
    %v292 = vand.u32 %v291, 4294901760
    %293 = vmatpush1.msra.mxu0 %v292
    %294 = vmatprep.subr.mxu0 0.0
    %295 = vmatpush1.msra.mxu0 0.0
    %296 = vmatprep.subr.mxu0 0.0
    %297 = vmatpush1.msra.mxu0 0.0
    %298 = vmatprep.subr.mxu0 0.0
    %299 = vmatpush1.msra.mxu0 0.0
    %300 = vmatprep.subr.mxu0 0.0
    %301 = vmatpush1.msra.mxu0 0.0
    %302 = vmatprep.subr.mxu0 0.0
    %303 = vmatpush1.msra.mxu0 0.0
    %304 = vmatprep.subr.mxu0 0.0
    %305 = vmatpush1.msra.mxu0 0.0
    %306 = vmatprep.subr.mxu0 0.0
    %307 = vmatpush1.msra.mxu0 0.0
    %308 = vmatprep.subr.mxu0 0.0
    %309 = vmatpush1.msra.mxu0 0.0
    %310 = vmatprep.subr.mxu0 0.0
    %311 = vmatpush1.msra.mxu0 0.0
    %312 = vmatprep.subr.mxu0 0.0
    %313 = vmatpush1.msra.mxu0 0.0
    %314 = vmatprep.subr.mxu0 0.0
    %315 = vmatpush1.msra.mxu0 0.0
    %316 = vmatprep.subr.mxu0 0.0
    %317 = vmatpush1.msra.mxu0 0.0
    %318 = vmatprep.subr.mxu0 0.0
    %319 = vmatpush1.msra.mxu0 0.0
    %320 = vmatprep.subr.mxu0 0.0
    %321 = vmatpush1.msra.mxu0 0.0
    %322 = vmatprep.subr.mxu0 0.0
    %323 = vmatpush1.msra.mxu0 0.0
    %324 = vmatprep.subr.mxu0 0.0
    %325 = vmatpush1.msra.mxu0 0.0
    %326 = vmatprep.subr.mxu0 0.0
    %327 = vmatpush1.msra.mxu0 0.0
    %328 = vmatprep.subr.mxu0 0.0
    %329 = vmatpush1.msra.mxu0 0.0
    %330 = vmatprep.subr.mxu0 0.0
    %331 = vmatpush1.msra.mxu0 0.0
    %332 = vmatprep.subr.mxu0 0.0
    %333 = vmatpush1.msra.mxu0 0.0
    %334 = vmatprep.subr.mxu0 0.0
    %335 = vmatpush1.msra.mxu0 0.0
    %336 = vmatprep.subr.mxu0 0.0
    %337 = vmatpush1.msra.mxu0 0.0
    %338 = vmatprep.subr.mxu0 0.0
    %339 = vmatpush1.msra.mxu0 0.0
    %340 = vmatprep.subr.mxu0 0.0
    %341 = vmatpush1.msra.mxu0 0.0
    %342 = vmatprep.mubr.f32.mxu0 0.0
    %v343 = vand.u32 %v114, 4294901760
    %344 = vmatmul.mubr.f32.gmra.mrb[0].mxu0 %v343
    %v345 = vpop.f32.mrb[0].mxu0
    %v346 = vadd.f32 %v205, %v345
    %v347 = vpop.f32.mrb[0].mxu0
    %348 = vmatprep.mubr.f32.mxu0 0.0
    %v349 = vand.u32 %v117, 4294901760
    %350 = vmatmul.mubr.f32.gmra.mrb[0].mxu0 %v349
    %v351 = vpop.f32.mrb[0].mxu0
    %v352 = vadd.f32 %v215, %v351
    %v353 = vpop.f32.mrb[0].mxu0
    %354 = vmatprep.mubr.f32.mxu0 0.0
    %v355 = vand.u32 %v120, 4294901760
    %356 = vmatmul.mubr.f32.gmra.mrb[0].mxu0 %v355
    %v357 = vpop.f32.mrb[0].mxu0
    %v358 = vadd.f32 %v225, %v357
    %v359 = vpop.f32.mrb[0].mxu0
    %360 = vmatprep.mubr.f32.mxu0 0.0
    %v361 = vand.u32 %v123, 4294901760
    %362 = vmatmul.mubr.f32.gmra.mrb[0].mxu0 %v361
    %v363 = vpop.f32.mrb[0].mxu0
    %v364 = vadd.f32 %v235, %v363
    %v365 = vpop.f32.mrb[0].mxu0
    %366 = vdwg.mxu0
    %367 = vmatprep.subr.mxu0 0.0
    %v368 = vand.u32 %v104, 4294901760
    %v369 = vsub.f32 %v104, %v368
    %370 = vmatpush1.msra.mxu0 %v369
    %371 = vmatprep.subr.mxu0 0.0
    %v372 = vand.u32 %v105, 4294901760
    %v373 = vsub.f32 %v105, %v372
    %374 = vmatpush1.msra.mxu0 %v373
    %375 = vmatprep.subr.mxu0 0.0
    %v376 = vand.u32 %v106, 4294901760
    %v377 = vsub.f32 %v106, %v376
    %378 = vmatpush1.msra.mxu0 %v377
    %379 = vmatprep.subr.mxu0 0.0
    %v380 = vand.u32 %v107, 4294901760
    %v381 = vsub.f32 %v107, %v380
    %382 = vmatpush1.msra.mxu0 %v381
    %383 = vmatprep.subr.mxu0 0.0
    %v384 = vand.u32 %v108, 4294901760
    %v385 = vsub.f32 %v108, %v384
    %386 = vmatpush1.msra.mxu0 %v385
    %387 = vmatprep.subr.mxu0 0.0
    %v388 = vand.u32 %v109, 4294901760
    %v389 = vsub.f32 %v109, %v388
    %390 = vmatpush1.msra.mxu0 %v389
    %391 = vmatprep.subr.mxu0 0.0
    %v392 = vand.u32 %v110, 4294901760
    %v393 = vsub.f32 %v110, %v392
    %394 = vmatpush1.msra.mxu0 %v393
    %395 = vmatprep.subr.mxu0 0.0
    %v396 = vand.u32 %v111, 4294901760
    %v397 = vsub.f32 %v111, %v396
    %398 = vmatpush1.msra.mxu0 %v397
    %399 = vmatprep.subr.mxu0 0.0
    %400 = vmatpush1.msra.mxu0 0.0
    %401 = vmatprep.subr.mxu0 0.0
    %402 = vmatpush1.msra.mxu0 0.0
    %403 = vmatprep.subr.mxu0 0.0
    %404 = vmatpush1.msra.mxu0 0.0
    %405 = vmatprep.subr.mxu0 0.0
    %406 = vmatpush1.msra.mxu0 0.0
    %407 = vmatprep.subr.mxu0 0.0
    %408 = vmatpush1.msra.mxu0 0.0
    %409 = vmatprep.subr.mxu0 0.0
    %410 = vmatpush1.msra.mxu0 0.0
    %411 = vmatprep.subr.mxu0 0.0
    %412 = vmatpush1.msra.mxu0 0.0
    %413 = vmatprep.subr.mxu0 0.0
    %414 = vmatpush1.msra.mxu0 0.0
    %415 = vmatprep.subr.mxu0 0.0
    %416 = vmatpush1.msra.mxu0 0.0
    %417 = vmatprep.subr.mxu0 0.0
    %418 = vmatpush1.msra.mxu0 0.0
    %419 = vmatprep.subr.mxu0 0.0
    %420 = vmatpush1.msra.mxu0 0.0
    %421 = vmatprep.subr.mxu0 0.0
    %422 = vmatpush1.msra.mxu0 0.0
    %423 = vmatprep.subr.mxu0 0.0
    %424 = vmatpush1.msra.mxu0 0.0
    %425 = vmatprep.subr.mxu0 0.0
    %426 = vmatpush1.msra.mxu0 0.0
    %427 = vmatprep.subr.mxu0 0.0
    %428 = vmatpush1.msra.mxu0 0.0
    %429 = vmatprep.subr.mxu0 0.0
    %430 = vmatpush1.msra.mxu0 0.0
    %431 = vmatprep.subr.mxu0 0.0
    %432 = vmatpush1.msra.mxu0 0.0
    %433 = vmatprep.subr.mxu0 0.0
    %434 = vmatpush1.msra.mxu0 0.0
    %435 = vmatprep.subr.mxu0 0.0
    %436 = vmatpush1.msra.mxu0 0.0
    %437 = vmatprep.subr.mxu0 0.0
    %438 = vmatpush1.msra.mxu0 0.0
    %439 = vmatprep.subr.mxu0 0.0
    %440 = vmatpush1.msra.mxu0 0.0
    %441 = vmatprep.subr.mxu0 0.0
    %442 = vmatpush1.msra.mxu0 0.0
    %443 = vmatprep.subr.mxu0 0.0
    %444 = vmatpush1.msra.mxu0 0.0
    %445 = vmatprep.subr.mxu0 0.0
    %446 = vmatpush1.msra.mxu0 0.0
    %447 = vmatprep.mubr.f32.mxu0 0.0
    %v448 = vand.u32 %v114, 4294901760
    %v449 = vsub.f32 %v114, %v448
    %450 = vmatmul.mubr.f32.gmra.mrb[0].mxu0 %v449
    %v451 = vpop.f32.mrb[0].mxu0
    %v452 = vadd.f32 %v346, %v451
    %v453 = vpop.f32.mrb[0].mxu0
    %454 = vmatprep.mubr.f32.mxu0 0.0
    %v455 = vand.u32 %v117, 4294901760
    %v456 = vsub.f32 %v117, %v455
    %457 = vmatmul.mubr.f32.gmra.mrb[0].mxu0 %v456
    %v458 = vpop.f32.mrb[0].mxu0
    %v459 = vadd.f32 %v352, %v458
    %v460 = vpop.f32.mrb[0].mxu0
    %461 = vmatprep.mubr.f32.mxu0 0.0
    %v462 = vand.u32 %v120, 4294901760
    %v463 = vsub.f32 %v120, %v462
    %464 = vmatmul.mubr.f32.gmra.mrb[0].mxu0 %v463
    %v465 = vpop.f32.mrb[0].mxu0
    %v466 = vadd.f32 %v358, %v465
    %v467 = vpop.f32.mrb[0].mxu0
    %468 = vmatprep.mubr.f32.mxu0 0.0
    %v469 = vand.u32 %v123, 4294901760
    %v470 = vsub.f32 %v123, %v469
    %471 = vmatmul.mubr.f32.gmra.mrb[0].mxu0 %v470
    %v472 = vpop.f32.mrb[0].mxu0
    %v473 = vadd.f32 %v364, %v472
    %v474 = vpop.f32.mrb[0].mxu0
    %475 = vdwg.mxu0
    %476 = vmatprep.subr.mxu0 0.0
    %v477 = vand.u32 %v104, 4294901760
    %478 = vmatpush1.msra.mxu0 %v477
    %479 = vmatprep.subr.mxu0 0.0
    %v480 = vand.u32 %v105, 4294901760
    %481 = vmatpush1.msra.mxu0 %v480
    %482 = vmatprep.subr.mxu0 0.0
    %v483 = vand.u32 %v106, 4294901760
    %484 = vmatpush1.msra.mxu0 %v483
    %485 = vmatprep.subr.mxu0 0.0
    %v486 = vand.u32 %v107, 4294901760
    %487 = vmatpush1.msra.mxu0 %v486
    %488 = vmatprep.subr.mxu0 0.0
    %v489 = vand.u32 %v108, 4294901760
    %490 = vmatpush1.msra.mxu0 %v489
    %491 = vmatprep.subr.mxu0 0.0
    %v492 = vand.u32 %v109, 4294901760
    %493 = vmatpush1.msra.mxu0 %v492
    %494 = vmatprep.subr.mxu0 0.0
    %v495 = vand.u32 %v110, 4294901760
    %496 = vmatpush1.msra.mxu0 %v495
    %497 = vmatprep.subr.mxu0 0.0
    %v498 = vand.u32 %v111, 4294901760
    %499 = vmatpush1.msra.mxu0 %v498
    %500 = vmatprep.subr.mxu0 0.0
    %501 = vmatpush1.msra.mxu0 0.0
    %502 = vmatprep.subr.mxu0 0.0
    %503 = vmatpush1.msra.mxu0 0.0
    %504 = vmatprep.subr.mxu0 0.0
    %505 = vmatpush1.msra.mxu0 0.0
    %506 = vmatprep.subr.mxu0 0.0
    %507 = vmatpush1.msra.mxu0 0.0
    %508 = vmatprep.subr.mxu0 0.0
    %509 = vmatpush1.msra.mxu0 0.0
    %510 = vmatprep.subr.mxu0 0.0
    %511 = vmatpush1.msra.mxu0 0.0
    %512 = vmatprep.subr.mxu0 0.0
    %513 = vmatpush1.msra.mxu0 0.0
    %514 = vmatprep.subr.mxu0 0.0
    %515 = vmatpush1.msra.mxu0 0.0
    %516 = vmatprep.subr.mxu0 0.0
    %517 = vmatpush1.msra.mxu0 0.0
    %518 = vmatprep.subr.mxu0 0.0
    %519 = vmatpush1.msra.mxu0 0.0
    %520 = vmatprep.subr.mxu0 0.0
    %521 = vmatpush1.msra.mxu0 0.0
    %522 = vmatprep.subr.mxu0 0.0
    %523 = vmatpush1.msra.mxu0 0.0
    %524 = vmatprep.subr.mxu0 0.0
    %525 = vmatpush1.msra.mxu0 0.0
    %526 = vmatprep.subr.mxu0 0.0
    %527 = vmatpush1.msra.mxu0 0.0
    %528 = vmatprep.subr.mxu0 0.0
    %529 = vmatpush1.msra.mxu0 0.0
    %530 = vmatprep.subr.mxu0 0.0
    %531 = vmatpush1.msra.mxu0 0.0
    %532 = vmatprep.subr.mxu0 0.0
    %533 = vmatpush1.msra.mxu0 0.0
    %534 = vmatprep.subr.mxu0 0.0
    %535 = vmatpush1.msra.mxu0 0.0
    %536 = vmatprep.subr.mxu0 0.0
    %537 = vmatpush1.msra.mxu0 0.0
    %538 = vmatprep.subr.mxu0 0.0
    %539 = vmatpush1.msra.mxu0 0.0
    %540 = vmatprep.subr.mxu0 0.0
    %541 = vmatpush1.msra.mxu0 0.0
    %542 = vmatprep.subr.mxu0 0.0
    %543 = vmatpush1.msra.mxu0 0.0
    %544 = vmatprep.subr.mxu0 0.0
    %545 = vmatpush1.msra.mxu0 0.0
    %546 = vmatprep.subr.mxu0 0.0
    %547 = vmatpush1.msra.mxu0 0.0
    %548 = vmatprep.mubr.f32.mxu0 0.0
    %v549 = vand.u32 %v114, 4294901760
    %v550 = vsub.f32 %v114, %v549
    %v551 = vand.u32 %v550, 4294901760
    %552 = vmatmul.mubr.f32.gmra.mrb[0].mxu0 %v551
    %v553 = vpop.f32.mrb[0].mxu0
    %v554 = vadd.f32 %v452, %v553
    %v555 = vpop.f32.mrb[0].mxu0
    %556 = vmatprep.mubr.f32.mxu0 0.0
    %v557 = vand.u32 %v117, 4294901760
    %v558 = vsub.f32 %v117, %v557
    %v559 = vand.u32 %v558, 4294901760
    %560 = vmatmul.mubr.f32.gmra.mrb[0].mxu0 %v559
    %v561 = vpop.f32.mrb[0].mxu0
    %v562 = vadd.f32 %v459, %v561
    %v563 = vpop.f32.mrb[0].mxu0
    %564 = vmatprep.mubr.f32.mxu0 0.0
    %v565 = vand.u32 %v120, 4294901760
    %v566 = vsub.f32 %v120, %v565
    %v567 = vand.u32 %v566, 4294901760
    %568 = vmatmul.mubr.f32.gmra.mrb[0].mxu0 %v567
    %v569 = vpop.f32.mrb[0].mxu0
    %v570 = vadd.f32 %v466, %v569
    %v571 = vpop.f32.mrb[0].mxu0
    %572 = vmatprep.mubr.f32.mxu0 0.0
    %v573 = vand.u32 %v123, 4294901760
    %v574 = vsub.f32 %v123, %v573
    %v575 = vand.u32 %v574, 4294901760
    %576 = vmatmul.mubr.f32.gmra.mrb[0].mxu0 %v575
    %v577 = vpop.f32.mrb[0].mxu0
    %v578 = vadd.f32 %v473, %v577
    %v579 = vpop.f32.mrb[0].mxu0
    %580 = vdwg.mxu0
    %581 = vmatprep.subr.mxu0 0.0
    %v582 = vand.u32 %v104, 4294901760
    %v583 = vsub.f32 %v104, %v582
    %v584 = vand.u32 %v583, 4294901760
    %585 = vmatpush1.msra.mxu0 %v584
    %586 = vmatprep.subr.mxu0 0.0
    %v587 = vand.u32 %v105, 4294901760
    %v588 = vsub.f32 %v105, %v587
    %v589 = vand.u32 %v588, 4294901760
    %590 = vmatpush1.msra.mxu0 %v589
    %591 = vmatprep.subr.mxu0 0.0
    %v592 = vand.u32 %v106, 4294901760
    %v593 = vsub.f32 %v106, %v592
    %v594 = vand.u32 %v593, 4294901760
    %595 = vmatpush1.msra.mxu0 %v594
    %596 = vmatprep.subr.mxu0 0.0
    %v597 = vand.u32 %v107, 4294901760
    %v598 = vsub.f32 %v107, %v597
    %v599 = vand.u32 %v598, 4294901760
    %600 = vmatpush1.msra.mxu0 %v599
    %601 = vmatprep.subr.mxu0 0.0
    %v602 = vand.u32 %v108, 4294901760
    %v603 = vsub.f32 %v108, %v602
    %v604 = vand.u32 %v603, 4294901760
    %605 = vmatpush1.msra.mxu0 %v604
    %606 = vmatprep.subr.mxu0 0.0
    %v607 = vand.u32 %v109, 4294901760
    %v608 = vsub.f32 %v109, %v607
    %v609 = vand.u32 %v608, 4294901760
    %610 = vmatpush1.msra.mxu0 %v609
    %611 = vmatprep.subr.mxu0 0.0
    %v612 = vand.u32 %v110, 4294901760
    %v613 = vsub.f32 %v110, %v612
    %v614 = vand.u32 %v613, 4294901760
    %615 = vmatpush1.msra.mxu0 %v614
    %616 = vmatprep.subr.mxu0 0.0
    %v617 = vand.u32 %v111, 4294901760
    %v618 = vsub.f32 %v111, %v617
    %v619 = vand.u32 %v618, 4294901760
    %620 = vmatpush1.msra.mxu0 %v619
    %621 = vmatprep.subr.mxu0 0.0
    %622 = vmatpush1.msra.mxu0 0.0
    %623 = vmatprep.subr.mxu0 0.0
    %624 = vmatpush1.msra.mxu0 0.0
    %625 = vmatprep.subr.mxu0 0.0
    %626 = vmatpush1.msra.mxu0 0.0
    %627 = vmatprep.subr.mxu0 0.0
    %628 = vmatpush1.msra.mxu0 0.0
    %629 = vmatprep.subr.mxu0 0.0
    %630 = vmatpush1.msra.mxu0 0.0
    %631 = vmatprep.subr.mxu0 0.0
    %632 = vmatpush1.msra.mxu0 0.0
    %633 = vmatprep.subr.mxu0 0.0
    %634 = vmatpush1.msra.mxu0 0.0
    %635 = vmatprep.subr.mxu0 0.0
    %636 = vmatpush1.msra.mxu0 0.0
    %637 = vmatprep.subr.mxu0 0.0
    %638 = vmatpush1.msra.mxu0 0.0
    %639 = vmatprep.subr.mxu0 0.0
    %640 = vmatpush1.msra.mxu0 0.0
    %641 = vmatprep.subr.mxu0 0.0
    %642 = vmatpush1.msra.mxu0 0.0
    %643 = vmatprep.subr.mxu0 0.0
    %644 = vmatpush1.msra.mxu0 0.0
    %645 = vmatprep.subr.mxu0 0.0
    %646 = vmatpush1.msra.mxu0 0.0
    %647 = vmatprep.subr.mxu0 0.0
    %648 = vmatpush1.msra.mxu0 0.0
    %649 = vmatprep.subr.mxu0 0.0
    %650 = vmatpush1.msra.mxu0 0.0
    %651 = vmatprep.subr.mxu0 0.0
    %652 = vmatpush1.msra.mxu0 0.0
    %653 = vmatprep.subr.mxu0 0.0
    %654 = vmatpush1.msra.mxu0 0.0
    %655 = vmatprep.subr.mxu0 0.0
    %656 = vmatpush1.msra.mxu0 0.0
    %657 = vmatprep.subr.mxu0 0.0
    %658 = vmatpush1.msra.mxu0 0.0
    %659 = vmatprep.subr.mxu0 0.0
    %660 = vmatpush1.msra.mxu0 0.0
    %661 = vmatprep.subr.mxu0 0.0
    %662 = vmatpush1.msra.mxu0 0.0
    %663 = vmatprep.subr.mxu0 0.0
    %664 = vmatpush1.msra.mxu0 0.0
    %665 = vmatprep.subr.mxu0 0.0
    %666 = vmatpush1.msra.mxu0 0.0
    %667 = vmatprep.subr.mxu0 0.0
    %668 = vmatpush1.msra.mxu0 0.0
    %669 = vmatprep.mubr.f32.mxu0 0.0
    %v670 = vand.u32 %v114, 4294901760
    %671 = vmatmul.mubr.f32.gmra.mrb[0].mxu0 %v670
    %v672 = vpop.f32.mrb[0].mxu0
    %v673 = vadd.f32 %v554, %v672
    %v674 = vpop.f32.mrb[0].mxu0
    %675 = vmatprep.mubr.f32.mxu0 0.0
    %v676 = vand.u32 %v117, 4294901760
    %677 = vmatmul.mubr.f32.gmra.mrb[0].mxu0 %v676
    %v678 = vpop.f32.mrb[0].mxu0
    %v679 = vadd.f32 %v562, %v678
    %v680 = vpop.f32.mrb[0].mxu0
    %681 = vmatprep.mubr.f32.mxu0 0.0
    %v682 = vand.u32 %v120, 4294901760
    %683 = vmatmul.mubr.f32.gmra.mrb[0].mxu0 %v682
    %v684 = vpop.f32.mrb[0].mxu0
    %v685 = vadd.f32 %v570, %v684
    %v686 = vpop.f32.mrb[0].mxu0
    %687 = vmatprep.mubr.f32.mxu0 0.0
    %v688 = vand.u32 %v123, 4294901760
    %689 = vmatmul.mubr.f32.gmra.mrb[0].mxu0 %v688
    %v690 = vpop.f32.mrb[0].mxu0
    %v691 = vadd.f32 %v578, %v690
    %v692 = vpop.f32.mrb[0].mxu0
    %693 = vdwg.mxu0
    %694 = vmatprep.subr.mxu0 0.0
    %v695 = vand.u32 %v104, 4294901760
    %696 = vmatpush1.msra.mxu0 %v695
    %697 = vmatprep.subr.mxu0 0.0
    %v698 = vand.u32 %v105, 4294901760
    %699 = vmatpush1.msra.mxu0 %v698
    %700 = vmatprep.subr.mxu0 0.0
    %v701 = vand.u32 %v106, 4294901760
    %702 = vmatpush1.msra.mxu0 %v701
    %703 = vmatprep.subr.mxu0 0.0
    %v704 = vand.u32 %v107, 4294901760
    %705 = vmatpush1.msra.mxu0 %v704
    %706 = vmatprep.subr.mxu0 0.0
    %v707 = vand.u32 %v108, 4294901760
    %708 = vmatpush1.msra.mxu0 %v707
    %709 = vmatprep.subr.mxu0 0.0
    %v710 = vand.u32 %v109, 4294901760
    %711 = vmatpush1.msra.mxu0 %v710
    %712 = vmatprep.subr.mxu0 0.0
    %v713 = vand.u32 %v110, 4294901760
    %714 = vmatpush1.msra.mxu0 %v713
    %715 = vmatprep.subr.mxu0 0.0
    %v716 = vand.u32 %v111, 4294901760
    %717 = vmatpush1.msra.mxu0 %v716
    %718 = vmatprep.subr.mxu0 0.0
    %719 = vmatpush1.msra.mxu0 0.0
    %720 = vmatprep.subr.mxu0 0.0
    %721 = vmatpush1.msra.mxu0 0.0
    %722 = vmatprep.subr.mxu0 0.0
    %723 = vmatpush1.msra.mxu0 0.0
    %724 = vmatprep.subr.mxu0 0.0
    %725 = vmatpush1.msra.mxu0 0.0
    %726 = vmatprep.subr.mxu0 0.0
    %727 = vmatpush1.msra.mxu0 0.0
    %728 = vmatprep.subr.mxu0 0.0
    %729 = vmatpush1.msra.mxu0 0.0
    %730 = vmatprep.subr.mxu0 0.0
    %731 = vmatpush1.msra.mxu0 0.0
    %732 = vmatprep.subr.mxu0 0.0
    %733 = vmatpush1.msra.mxu0 0.0
    %734 = vmatprep.subr.mxu0 0.0
    %735 = vmatpush1.msra.mxu0 0.0
    %736 = vmatprep.subr.mxu0 0.0
    %737 = vmatpush1.msra.mxu0 0.0
    %738 = vmatprep.subr.mxu0 0.0
    %739 = vmatpush1.msra.mxu0 0.0
    %740 = vmatprep.subr.mxu0 0.0
    %741 = vmatpush1.msra.mxu0 0.0
    %742 = vmatprep.subr.mxu0 0.0
    %743 = vmatpush1.msra.mxu0 0.0
    %744 = vmatprep.subr.mxu0 0.0
    %745 = vmatpush1.msra.mxu0 0.0
    %746 = vmatprep.subr.mxu0 0.0
    %747 = vmatpush1.msra.mxu0 0.0
    %748 = vmatprep.subr.mxu0 0.0
    %749 = vmatpush1.msra.mxu0 0.0
    %750 = vmatprep.subr.mxu0 0.0
    %751 = vmatpush1.msra.mxu0 0.0
    %752 = vmatprep.subr.mxu0 0.0
    %753 = vmatpush1.msra.mxu0 0.0
    %754 = vmatprep.subr.mxu0 0.0
    %755 = vmatpush1.msra.mxu0 0.0
    %756 = vmatprep.subr.mxu0 0.0
    %757 = vmatpush1.msra.mxu0 0.0
    %758 = vmatprep.subr.mxu0 0.0
    %759 = vmatpush1.msra.mxu0 0.0
    %760 = vmatprep.subr.mxu0 0.0
    %761 = vmatpush1.msra.mxu0 0.0
    %762 = vmatprep.subr.mxu0 0.0
    %763 = vmatpush1.msra.mxu0 0.0
    %764 = vmatprep.subr.mxu0 0.0
    %765 = vmatpush1.msra.mxu0 0.0
    %766 = vmatprep.mubr.f32.mxu0 0.0
    %v767 = vand.u32 %v114, 4294901760
    %768 = vmatmul.mubr.f32.gmra.mrb[0].mxu0 %v767
    %v769 = vpop.f32.mrb[0].mxu0
    %v770 = vadd.f32 %v673, %v769
    %v771 = vpop.f32.mrb[0].mxu0
    %772 = vmatprep.mubr.f32.mxu0 0.0
    %v773 = vand.u32 %v117, 4294901760
    %774 = vmatmul.mubr.f32.gmra.mrb[0].mxu0 %v773
    %v775 = vpop.f32.mrb[0].mxu0
    %v776 = vadd.f32 %v679, %v775
    %v777 = vpop.f32.mrb[0].mxu0
    %778 = vmatprep.mubr.f32.mxu0 0.0
    %v779 = vand.u32 %v120, 4294901760
    %780 = vmatmul.mubr.f32.gmra.mrb[0].mxu0 %v779
    %v781 = vpop.f32.mrb[0].mxu0
    %v782 = vadd.f32 %v685, %v781
    %v783 = vpop.f32.mrb[0].mxu0
    %784 = vmatprep.mubr.f32.mxu0 0.0
    %v785 = vand.u32 %v123, 4294901760
    %786 = vmatmul.mubr.f32.gmra.mrb[0].mxu0 %v785
    %v787 = vpop.f32.mrb[0].mxu0
    %v788 = vadd.f32 %v691, %v787
    %v789 = vpop.f32.mrb[0].mxu0
    %790 = vdwg.mxu0
    %v791 = vsel %vm112, %v770, 0.0
    %v792 = vsel %vm112, %v776, 0.0
    %v793 = vadd.f32 %v791, %v792
    %v794 = vsel %vm112, %v782, 0.0
    %v795 = vadd.f32 %v793, %v794
    %v796 = vsel %vm112, %v788, 0.0
    %v797 = vadd.f32 %v795, %v796
    %v798 = vrot.slane %v797, 4
    %v799 = vadd.f32 %v797, %v798
    %v800 = vrot.slane %v799, 2
    %v801 = vadd.f32 %v799, %v800
    %v802 = vrot.slane %v801, 1
    %v803 = vadd.f32 %v801, %v802
    %v804 = vmul.f32 %v803, 0.03125
    %v805 = vmul.f32 %v770, %v770
    %v806 = vmul.f32 %v776, %v776
    %v807 = vmul.f32 %v782, %v782
    %v808 = vmul.f32 %v788, %v788
    %v809 = vsel %vm112, %v805, 0.0
    %v810 = vsel %vm112, %v806, 0.0
    %v811 = vadd.f32 %v809, %v810
    %v812 = vsel %vm112, %v807, 0.0
    %v813 = vadd.f32 %v811, %v812
    %v814 = vsel %vm112, %v808, 0.0
    %v815 = vadd.f32 %v813, %v814
    %v816 = vrot.slane %v815, 4
    %v817 = vadd.f32 %v815, %v816
    %v818 = vrot.slane %v817, 2
    %v819 = vadd.f32 %v817, %v818
    %v820 = vrot.slane %v819, 1
    %v821 = vadd.f32 %v819, %v820
    %v822 = vmul.f32 %v821, 0.03125
    %v823 = vmul.f32 %v804, %v804
    %v824 = vsub.f32 %v822, %v823
    %v825 = vadd.f32 %v824, 1e-05
    %v826 = vrsqrt.pop %v825
    %v827 = vmul.f32 %v18, %v826
    %v828 = vmul.f32 %v804, %v827
    %v829 = vsub.f32 %v19, %v828
    %v830 = vlaneseq
    %v831 = vshrl.u32 %v830, 7
    %v832 = vsub.s32 0, %v831
    %v833 = vrot.slane %v827, %v832
    %v834 = vmul.f32 %v770, %v833
    %v835 = vmul.f32 %v776, %v833
    %v836 = vmul.f32 %v782, %v833
    %v837 = vmul.f32 %v788, %v833
    %v838 = vlaneseq
    %v839 = vshrl.u32 %v838, 7
    %v840 = vsub.s32 0, %v839
    %v841 = vrot.slane %v829, %v840
    %v842 = vadd.f32 %v834, %v841
    %v843 = vadd.f32 %v835, %v841
    %v844 = vadd.f32 %v836, %v841
    %v845 = vadd.f32 %v837, %v841
    %vm846 = vcmp.ge.f32.partialorder %v842, 0.0
    %vm847 = vcmp.ge.f32.partialorder %v843, 0.0
    %vm848 = vcmp.ge.f32.partialorder %v844, 0.0
    %vm849 = vcmp.ge.f32.partialorder %v845, 0.0
    %v850 = vmul.f32 %v842, 0.2
    %v851 = vmul.f32 %v843, 0.2
    %v852 = vmul.f32 %v844, 0.2
    %v853 = vmul.f32 %v845, 0.2
    %v854 = vsel %vm846, %v842, %v850
    %v855 = vsel %vm847, %v843, %v851
    %v856 = vsel %vm848, %v844, %v852
    %v857 = vsel %vm849, %v845, %v853
    %v860 = vrot.slane %v855, 4
    %v861 = vrot.slane %v857, 4
    %vm866 = vcmask 1043456
    %v867 = vrot.slane %v854, 4
    %v868 = vsel %vm866, %v867, %v860
    %v869 = vrot.slane %v856, 4
    %v870 = vsel %vm866, %v869, %v861
    %v875 = vsel %vm866, %v860, %v867
    %v876 = vsel %vm866, %v861, %v869
    %vm879 = vcmask 1046528
    %v880 = vrot.slane %v875, 1
    %v881 = vrot.slane %v868, 1
    %v882 = vsel %vm879, %v880, %v881
    %v883 = vsel %vm879, %v881, %v880
    %v884 = vrot.slane %v876, 1
    %v885 = vrot.slane %v870, 1
    %v886 = vsel %vm879, %v884, %v885
    %v887 = vsel %vm879, %v885, %v884
    %888 = vrot.lane.b32.xlu0 %v882, 64
    %v889 = vpop.permute.xlu0 %888
    %890 = vrot.lane.b32.xlu0 %v883, 64
    %v891 = vpop.permute.xlu0 %890
    %892 = vrot.lane.b32.xlu0 %v886, 64
    %v893 = vpop.permute.xlu0 %892
    %894 = vrot.lane.b32.xlu0 %v887, 64
    %v895 = vpop.permute.xlu0 %894
    %vm900 = vcmask 1045504
    %v901 = vrot.slane %v875, 2
    %v902 = vrot.slane %v868, 2
    %v903 = vsel %vm900, %v901, %v902
    %v904 = vsel %vm900, %v902, %v901
    %v905 = vrot.slane %v876, 2
    %v906 = vrot.slane %v870, 2
    %v907 = vsel %vm900, %v905, %v906
    %v908 = vsel %vm900, %v906, %v905
    %vm913 = vcmask 1044480
    %v914 = vrot.slane %v875, 3
    %v915 = vrot.slane %v868, 3
    %v916 = vsel %vm913, %v914, %v915
    %v917 = vsel %vm913, %v915, %v914
    %v918 = vrot.slane %v876, 3
    %v919 = vrot.slane %v870, 3
    %v920 = vsel %vm913, %v918, %v919
    %v921 = vsel %vm913, %v919, %v918
    %922 = vrot.lane.b32.xlu0 %v916, 64
    %v923 = vpop.permute.xlu0 %922
    %924 = vrot.lane.b32.xlu0 %v917, 64
    %v925 = vpop.permute.xlu0 %924
    %926 = vrot.lane.b32.xlu0 %v920, 64
    %v927 = vpop.permute.xlu0 %926
    %928 = vrot.lane.b32.xlu0 %v921, 64
    %v929 = vpop.permute.xlu0 %928
    %v934 = vrot.slane %v875, 4
    %v935 = vrot.slane %v868, 4
    %v936 = vsel %vm866, %v934, %v935
    %v937 = vsel %vm866, %v935, %v934
    %v938 = vrot.slane %v876, 4
    %v939 = vrot.slane %v870, 4
    %v940 = vsel %vm866, %v938, %v939
    %v941 = vsel %vm866, %v939, %v938
    %vm946 = vcmask 1042432
    %v947 = vrot.slane %v875, 5
    %v948 = vrot.slane %v868, 5
    %v949 = vsel %vm946, %v947, %v948
    %v950 = vsel %vm946, %v948, %v947
    %v951 = vrot.slane %v876, 5
    %v952 = vrot.slane %v870, 5
    %v953 = vsel %vm946, %v951, %v952
    %v954 = vsel %vm946, %v952, %v951
    %955 = vrot.lane.b32.xlu0 %v949, 64
    %v956 = vpop.permute.xlu0 %955
    %957 = vrot.lane.b32.xlu0 %v950, 64
    %v958 = vpop.permute.xlu0 %957
    %959 = vrot.lane.b32.xlu0 %v953, 64
    %v960 = vpop.permute.xlu0 %959
    %961 = vrot.lane.b32.xlu0 %v954, 64
    %v962 = vpop.permute.xlu0 %961
    %vm967 = vcmask 1041408
    %v968 = vrot.slane %v875, 6
    %v969 = vrot.slane %v868, 6
    %v970 = vsel %vm967, %v968, %v969
    %v971 = vsel %vm967, %v969, %v968
    %v972 = vrot.slane %v876, 6
    %v973 = vrot.slane %v870, 6
    %v974 = vsel %vm967, %v972, %v973
    %v975 = vsel %vm967, %v973, %v972
    %vm980 = vcmask 1040384
    %v981 = vrot.slane %v875, 7
    %v982 = vrot.slane %v868, 7
    %v983 = vsel %vm980, %v981, %v982
    %v984 = vsel %vm980, %v982, %v981
    %v985 = vrot.slane %v876, 7
    %v986 = vrot.slane %v870, 7
    %v987 = vsel %vm980, %v985, %v986
    %v988 = vsel %vm980, %v986, %v985
    %989 = vrot.lane.b32.xlu0 %v983, 64
    %v990 = vpop.permute.xlu0 %989
    %991 = vrot.lane.b32.xlu0 %v984, 64
    %v992 = vpop.permute.xlu0 %991
    %993 = vrot.lane.b32.xlu0 %v987, 64
    %v994 = vpop.permute.xlu0 %993
    %995 = vrot.lane.b32.xlu0 %v988, 64
    %v996 = vpop.permute.xlu0 %995
    %v1001 = vsel %vm112, %v875, %v889
    %v1002 = vsel %vm112, %v868, %v891
    %v1003 = vsel %vm112, %v876, %v893
    %v1004 = vsel %vm112, %v870, %v895
    %v1005 = vsel %vm112, %v903, %v923
    %v1006 = vsel %vm112, %v904, %v925
    %v1007 = vsel %vm112, %v907, %v927
    %v1008 = vsel %vm112, %v908, %v929
    %v1009 = vsel %vm112, %v936, %v956
    %v1010 = vsel %vm112, %v937, %v958
    %v1011 = vsel %vm112, %v940, %v960
    %v1012 = vsel %vm112, %v941, %v962
    %v1013 = vsel %vm112, %v970, %v990
    %v1014 = vsel %vm112, %v971, %v992
    %v1015 = vsel %vm112, %v974, %v994
    %v1016 = vsel %vm112, %v975, %v996
    %v1017 = vld [vmem:[%s2] sm:$0xff]
    %v1018 = vld [vmem:[%s2 + $0x8] sm:$0xff]
    %v1019 = vld [vmem:[%s2 + $0x10] sm:$0xff]
    %v1020 = vld [vmem:[%s2 + $0x18] sm:$0xff]
    %v1021 = vld [vmem:[%s2 + $0x20] sm:$0xff]
    %v1022 = vld [vmem:[%s2 + $0x28] sm:$0xff]
    %v1023 = vld [vmem:[%s2 + $0x30] sm:$0xff]
    %v1024 = vld [vmem:[%s2 + $0x38] sm:$0xff]
    %v1025 = vld [vmem:[%s2 + $0x40] sm:$0xff]
    %v1026 = vld [vmem:[%s2 + $0x48] sm:$0xff]
    %v1027 = vld [vmem:[%s2 + $0x50] sm:$0xff]
    %v1028 = vld [vmem:[%s2 + $0x58] sm:$0xff]
    %v1029 = vld [vmem:[%s2 + $0x60] sm:$0xff]
    %v1030 = vld [vmem:[%s2 + $0x68] sm:$0xff]
    %v1031 = vld [vmem:[%s2 + $0x70] sm:$0xff]
    %v1032 = vld [vmem:[%s2 + $0x78] sm:$0xff]
    %v1033 = vld [vmem:[%s2 + $0x80] sm:$0xff]
    %v1034 = vld [vmem:[%s2 + $0x88] sm:$0xff]
    %v1035 = vld [vmem:[%s2 + $0x90] sm:$0xff]
    %v1036 = vld [vmem:[%s2 + $0x98] sm:$0xff]
    %v1037 = vld [vmem:[%s2 + $0xa0] sm:$0xff]
    %v1038 = vld [vmem:[%s2 + $0xa8] sm:$0xff]
    %v1039 = vld [vmem:[%s2 + $0xb0] sm:$0xff]
    %v1040 = vld [vmem:[%s2 + $0xb8] sm:$0xff]
    %v1041 = vld [vmem:[%s2 + $0xc0] sm:$0xff]
    %v1042 = vld [vmem:[%s2 + $0xc8] sm:$0xff]
    %v1043 = vld [vmem:[%s2 + $0xd0] sm:$0xff]
    %v1044 = vld [vmem:[%s2 + $0xd8] sm:$0xff]
    %v1045 = vld [vmem:[%s2 + $0xe0] sm:$0xff]
    %v1046 = vld [vmem:[%s2 + $0xe8] sm:$0xff]
    %v1047 = vld [vmem:[%s2 + $0xf0] sm:$0xff]
    %v1048 = vld [vmem:[%s2 + $0xf8] sm:$0xff]
    %v1049 = vld [vmem:[%s2 + $0x100] sm:$0xff]
    %v1050 = vld [vmem:[%s2 + $0x108] sm:$0xff]
    %v1051 = vld [vmem:[%s2 + $0x110] sm:$0xff]
    %v1052 = vld [vmem:[%s2 + $0x118] sm:$0xff]
    %v1053 = vld [vmem:[%s2 + $0x120] sm:$0xff]
    %v1054 = vld [vmem:[%s2 + $0x128] sm:$0xff]
    %v1055 = vld [vmem:[%s2 + $0x130] sm:$0xff]
    %v1056 = vld [vmem:[%s2 + $0x138] sm:$0xff]
    %v1057 = vld [vmem:[%s2 + $0x140] sm:$0xff]
    %v1058 = vld [vmem:[%s2 + $0x148] sm:$0xff]
    %v1059 = vld [vmem:[%s2 + $0x150] sm:$0xff]
    %v1060 = vld [vmem:[%s2 + $0x158] sm:$0xff]
    %v1061 = vld [vmem:[%s2 + $0x160] sm:$0xff]
    %v1062 = vld [vmem:[%s2 + $0x168] sm:$0xff]
    %v1063 = vld [vmem:[%s2 + $0x170] sm:$0xff]
    %v1064 = vld [vmem:[%s2 + $0x178] sm:$0xff]
    %v1065 = vld [vmem:[%s2 + $0x180] sm:$0xff]
    %v1066 = vld [vmem:[%s2 + $0x188] sm:$0xff]
    %v1067 = vld [vmem:[%s2 + $0x190] sm:$0xff]
    %v1068 = vld [vmem:[%s2 + $0x198] sm:$0xff]
    %v1069 = vld [vmem:[%s2 + $0x1a0] sm:$0xff]
    %v1070 = vld [vmem:[%s2 + $0x1a8] sm:$0xff]
    %v1071 = vld [vmem:[%s2 + $0x1b0] sm:$0xff]
    %v1072 = vld [vmem:[%s2 + $0x1b8] sm:$0xff]
    %v1073 = vld [vmem:[%s2 + $0x1c0] sm:$0xff]
    %v1074 = vld [vmem:[%s2 + $0x1c8] sm:$0xff]
    %v1075 = vld [vmem:[%s2 + $0x1d0] sm:$0xff]
    %v1076 = vld [vmem:[%s2 + $0x1d8] sm:$0xff]
    %v1077 = vld [vmem:[%s2 + $0x1e0] sm:$0xff]
    %v1078 = vld [vmem:[%s2 + $0x1e8] sm:$0xff]
    %v1079 = vld [vmem:[%s2 + $0x1f0] sm:$0xff]
    %v1080 = vld [vmem:[%s2 + $0x1f8] sm:$0xff]
    %v1081 = vld [vmem:[%s2 + $0x200] sm:$0xff]
    %v1082 = vld [vmem:[%s2 + $0x208] sm:$0xff]
    %v1083 = vld [vmem:[%s2 + $0x210] sm:$0xff]
    %v1084 = vld [vmem:[%s2 + $0x218] sm:$0xff]
    %v1085 = vld [vmem:[%s2 + $0x220] sm:$0xff]
    %v1086 = vld [vmem:[%s2 + $0x228] sm:$0xff]
    %v1087 = vld [vmem:[%s2 + $0x230] sm:$0xff]
    %v1088 = vld [vmem:[%s2 + $0x238] sm:$0xff]
    %v1089 = vsel %vm112, %v868, 0
    %v1091 = vsel %vm112, %v875, 0
    %v1093 = vsel %vm112, %v870, 0
    %v1095 = vsel %vm112, %v876, 0
    %1097 = vmatprep.subr.mxu0 0.0
    %v1098 = vand.u32 %v1017, 4294901760
    %1099 = vmatpush1.msra.mxu0 %v1098
    %1100 = vmatprep.subr.mxu0 0.0
    %v1101 = vand.u32 %v1018, 4294901760
    %1102 = vmatpush1.msra.mxu0 %v1101
    %1103 = vmatprep.subr.mxu0 0.0
    %v1104 = vand.u32 %v1019, 4294901760
    %1105 = vmatpush1.msra.mxu0 %v1104
    %1106 = vmatprep.subr.mxu0 0.0
    %v1107 = vand.u32 %v1020, 4294901760
    %1108 = vmatpush1.msra.mxu0 %v1107
    %1109 = vmatprep.subr.mxu0 0.0
    %v1110 = vand.u32 %v1021, 4294901760
    %1111 = vmatpush1.msra.mxu0 %v1110
    %1112 = vmatprep.subr.mxu0 0.0
    %v1113 = vand.u32 %v1022, 4294901760
    %1114 = vmatpush1.msra.mxu0 %v1113
    %1115 = vmatprep.subr.mxu0 0.0
    %v1116 = vand.u32 %v1023, 4294901760
    %1117 = vmatpush1.msra.mxu0 %v1116
    %1118 = vmatprep.subr.mxu0 0.0
    %v1119 = vand.u32 %v1024, 4294901760
    %1120 = vmatpush1.msra.mxu0 %v1119
    %1121 = vmatprep.subr.mxu0 0.0
    %v1122 = vand.u32 %v1025, 4294901760
    %1123 = vmatpush1.msra.mxu0 %v1122
    %1124 = vmatprep.subr.mxu0 0.0
    %v1125 = vand.u32 %v1026, 4294901760
    %1126 = vmatpush1.msra.mxu0 %v1125
    %1127 = vmatprep.subr.mxu0 0.0
    %v1128 = vand.u32 %v1027, 4294901760
    %1129 = vmatpush1.msra.mxu0 %v1128
    %1130 = vmatprep.subr.mxu0 0.0
    %v1131 = vand.u32 %v1028, 4294901760
    %1132 = vmatpush1.msra.mxu0 %v1131
    %1133 = vmatprep.subr.mxu0 0.0
    %v1134 = vand.u32 %v1029, 4294901760
    %1135 = vmatpush1.msra.mxu0 %v1134
    %1136 = vmatprep.subr.mxu0 0.0
    %v1137 = vand.u32 %v1030, 4294901760
    %1138 = vmatpush1.msra.mxu0 %v1137
    %1139 = vmatprep.subr.mxu0 0.0
    %v1140 = vand.u32 %v1031, 4294901760
    %1141 = vmatpush1.msra.mxu0 %v1140
    %1142 = vmatprep.subr.mxu0 0.0
    %v1143 = vand.u32 %v1032, 4294901760
    %1144 = vmatpush1.msra.mxu0 %v1143
    %1145 = vmatprep.subr.mxu0 0.0
    %v1146 = vand.u32 %v1033, 4294901760
    %1147 = vmatpush1.msra.mxu0 %v1146
    %1148 = vmatprep.subr.mxu0 0.0
    %v1149 = vand.u32 %v1034, 4294901760
    %1150 = vmatpush1.msra.mxu0 %v1149
    %1151 = vmatprep.subr.mxu0 0.0
    %v1152 = vand.u32 %v1035, 4294901760
    %1153 = vmatpush1.msra.mxu0 %v1152
    %1154 = vmatprep.subr.mxu0 0.0
    %v1155 = vand.u32 %v1036, 4294901760
    %1156 = vmatpush1.msra.mxu0 %v1155
    %1157 = vmatprep.subr.mxu0 0.0
    %v1158 = vand.u32 %v1037, 4294901760
    %1159 = vmatpush1.msra.mxu0 %v1158
    %1160 = vmatprep.subr.mxu0 0.0
    %v1161 = vand.u32 %v1038, 4294901760
    %1162 = vmatpush1.msra.mxu0 %v1161
    %1163 = vmatprep.subr.mxu0 0.0
    %v1164 = vand.u32 %v1039, 4294901760
    %1165 = vmatpush1.msra.mxu0 %v1164
    %1166 = vmatprep.subr.mxu0 0.0
    %v1167 = vand.u32 %v1040, 4294901760
    %1168 = vmatpush1.msra.mxu0 %v1167
    %1169 = vmatprep.subr.mxu0 0.0
    %v1170 = vand.u32 %v1041, 4294901760
    %1171 = vmatpush1.msra.mxu0 %v1170
    %1172 = vmatprep.subr.mxu0 0.0
    %v1173 = vand.u32 %v1042, 4294901760
    %1174 = vmatpush1.msra.mxu0 %v1173
    %1175 = vmatprep.subr.mxu0 0.0
    %v1176 = vand.u32 %v1043, 4294901760
    %1177 = vmatpush1.msra.mxu0 %v1176
    %1178 = vmatprep.subr.mxu0 0.0
    %v1179 = vand.u32 %v1044, 4294901760
    %1180 = vmatpush1.msra.mxu0 %v1179
    %1181 = vmatprep.subr.mxu0 0.0
    %v1182 = vand.u32 %v1045, 4294901760
    %1183 = vmatpush1.msra.mxu0 %v1182
    %1184 = vmatprep.subr.mxu0 0.0
    %v1185 = vand.u32 %v1046, 4294901760
    %1186 = vmatpush1.msra.mxu0 %v1185
    %1187 = vmatprep.subr.mxu0 0.0
    %v1188 = vand.u32 %v1047, 4294901760
    %1189 = vmatpush1.msra.mxu0 %v1188
    %1190 = vmatprep.subr.mxu0 0.0
    %v1191 = vand.u32 %v1048, 4294901760
    %1192 = vmatpush1.msra.mxu0 %v1191
    %v1193 = vand.u32 %v1005, 4294901760
    %v1194 = vsub.f32 %v1005, %v1193
    %v1195 = vand.u32 %v1194, 4294901760
    %v1196 = vsub.f32 %v1194, %v1195
    %v1197 = vand.u32 %v1196, 4294901760
    %1198 = vmatprep.mubr.f32.mxu0 %v1197
    %v1199 = vand.u32 %v1001, 4294901760
    %v1200 = vsub.f32 %v1001, %v1199
    %v1201 = vand.u32 %v1200, 4294901760
    %v1202 = vsub.f32 %v1200, %v1201
    %v1203 = vand.u32 %v1202, 4294901760
    %1204 = vmatmul.mubr.f32.gmra.mrb[0].mxu0 %v1203
    %v1205 = vpop.f32.mrb[0].mxu0
    %v1206 = vadd.f32 0.0, %v1205
    %v1207 = vpop.f32.mrb[0].mxu0
    %v1208 = vand.u32 %v1006, 4294901760
    %v1209 = vsub.f32 %v1006, %v1208
    %v1210 = vand.u32 %v1209, 4294901760
    %v1211 = vsub.f32 %v1209, %v1210
    %v1212 = vand.u32 %v1211, 4294901760
    %1213 = vmatprep.mubr.f32.mxu0 %v1212
    %v1214 = vand.u32 %v1002, 4294901760
    %v1215 = vsub.f32 %v1002, %v1214
    %v1216 = vand.u32 %v1215, 4294901760
    %v1217 = vsub.f32 %v1215, %v1216
    %v1218 = vand.u32 %v1217, 4294901760
    %1219 = vmatmul.mubr.f32.gmra.mrb[0].mxu0 %v1218
    %v1220 = vpop.f32.mrb[0].mxu0
    %v1221 = vadd.f32 0.0, %v1220
    %v1222 = vpop.f32.mrb[0].mxu0
    %v1223 = vand.u32 %v1007, 4294901760
    %v1224 = vsub.f32 %v1007, %v1223
    %v1225 = vand.u32 %v1224, 4294901760
    %v1226 = vsub.f32 %v1224, %v1225
    %v1227 = vand.u32 %v1226, 4294901760
    %1228 = vmatprep.mubr.f32.mxu0 %v1227
    %v1229 = vand.u32 %v1003, 4294901760
    %v1230 = vsub.f32 %v1003, %v1229
    %v1231 = vand.u32 %v1230, 4294901760
    %v1232 = vsub.f32 %v1230, %v1231
    %v1233 = vand.u32 %v1232, 4294901760
    %1234 = vmatmul.mubr.f32.gmra.mrb[0].mxu0 %v1233
    %v1235 = vpop.f32.mrb[0].mxu0
    %v1236 = vadd.f32 0.0, %v1235
    %v1237 = vpop.f32.mrb[0].mxu0
    %v1238 = vand.u32 %v1008, 4294901760
    %v1239 = vsub.f32 %v1008, %v1238
    %v1240 = vand.u32 %v1239, 4294901760
    %v1241 = vsub.f32 %v1239, %v1240
    %v1242 = vand.u32 %v1241, 4294901760
    %1243 = vmatprep.mubr.f32.mxu0 %v1242
    %v1244 = vand.u32 %v1004, 4294901760
    %v1245 = vsub.f32 %v1004, %v1244
    %v1246 = vand.u32 %v1245, 4294901760
    %v1247 = vsub.f32 %v1245, %v1246
    %v1248 = vand.u32 %v1247, 4294901760
    %1249 = vmatmul.mubr.f32.gmra.mrb[0].mxu0 %v1248
    %v1250 = vpop.f32.mrb[0].mxu0
    %v1251 = vadd.f32 0.0, %v1250
    %v1252 = vpop.f32.mrb[0].mxu0
    %1253 = vdwg.mxu0
    %1254 = vmatprep.subr.mxu0 0.0
    %v1255 = vand.u32 %v1017, 4294901760
    %v1256 = vsub.f32 %v1017, %v1255
    %v1257 = vand.u32 %v1256, 4294901760
    %v1258 = vsub.f32 %v1256, %v1257
    %v1259 = vand.u32 %v1258, 4294901760
    %1260 = vmatpush1.msra.mxu0 %v1259
    %1261 = vmatprep.subr.mxu0 0.0
    %v1262 = vand.u32 %v1018, 4294901760
    %v1263 = vsub.f32 %v1018, %v1262
    %v1264 = vand.u32 %v1263, 4294901760
    %v1265 = vsub.f32 %v1263, %v1264
    %v1266 = vand.u32 %v1265, 4294901760
    %1267 = vmatpush1.msra.mxu0 %v1266
    %1268 = vmatprep.subr.mxu0 0.0
    %v1269 = vand.u32 %v1019, 4294901760
    %v1270 = vsub.f32 %v1019, %v1269
    %v1271 = vand.u32 %v1270, 4294901760
    %v1272 = vsub.f32 %v1270, %v1271
    %v1273 = vand.u32 %v1272, 4294901760
    %1274 = vmatpush1.msra.mxu0 %v1273
    %1275 = vmatprep.subr.mxu0 0.0
    %v1276 = vand.u32 %v1020, 4294901760
    %v1277 = vsub.f32 %v1020, %v1276
    %v1278 = vand.u32 %v1277, 4294901760
    %v1279 = vsub.f32 %v1277, %v1278
    %v1280 = vand.u32 %v1279, 4294901760
    %1281 = vmatpush1.msra.mxu0 %v1280
    %1282 = vmatprep.subr.mxu0 0.0
    %v1283 = vand.u32 %v1021, 4294901760
    %v1284 = vsub.f32 %v1021, %v1283
    %v1285 = vand.u32 %v1284, 4294901760
    %v1286 = vsub.f32 %v1284, %v1285
    %v1287 = vand.u32 %v1286, 4294901760
    %1288 = vmatpush1.msra.mxu0 %v1287
    %1289 = vmatprep.subr.mxu0 0.0
    %v1290 = vand.u32 %v1022, 4294901760
    %v1291 = vsub.f32 %v1022, %v1290
    %v1292 = vand.u32 %v1291, 4294901760
    %v1293 = vsub.f32 %v1291, %v1292
    %v1294 = vand.u32 %v1293, 4294901760
    %1295 = vmatpush1.msra.mxu0 %v1294
    %1296 = vmatprep.subr.mxu0 0.0
    %v1297 = vand.u32 %v1023, 4294901760
    %v1298 = vsub.f32 %v1023, %v1297
    %v1299 = vand.u32 %v1298, 4294901760
    %v1300 = vsub.f32 %v1298, %v1299
    %v1301 = vand.u32 %v1300, 4294901760
    %1302 = vmatpush1.msra.mxu0 %v1301
    %1303 = vmatprep.subr.mxu0 0.0
    %v1304 = vand.u32 %v1024, 4294901760
    %v1305 = vsub.f32 %v1024, %v1304
    %v1306 = vand.u32 %v1305, 4294901760
    %v1307 = vsub.f32 %v1305, %v1306
    %v1308 = vand.u32 %v1307, 4294901760
    %1309 = vmatpush1.msra.mxu0 %v1308
    %1310 = vmatprep.subr.mxu0 0.0
    %v1311 = vand.u32 %v1025, 4294901760
    %v1312 = vsub.f32 %v1025, %v1311
    %v1313 = vand.u32 %v1312, 4294901760
    %v1314 = vsub.f32 %v1312, %v1313
    %v1315 = vand.u32 %v1314, 4294901760
    %1316 = vmatpush1.msra.mxu0 %v1315
    %1317 = vmatprep.subr.mxu0 0.0
    %v1318 = vand.u32 %v1026, 4294901760
    %v1319 = vsub.f32 %v1026, %v1318
    %v1320 = vand.u32 %v1319, 4294901760
    %v1321 = vsub.f32 %v1319, %v1320
    %v1322 = vand.u32 %v1321, 4294901760
    %1323 = vmatpush1.msra.mxu0 %v1322
    %1324 = vmatprep.subr.mxu0 0.0
    %v1325 = vand.u32 %v1027, 4294901760
    %v1326 = vsub.f32 %v1027, %v1325
    %v1327 = vand.u32 %v1326, 4294901760
    %v1328 = vsub.f32 %v1326, %v1327
    %v1329 = vand.u32 %v1328, 4294901760
    %1330 = vmatpush1.msra.mxu0 %v1329
    %1331 = vmatprep.subr.mxu0 0.0
    %v1332 = vand.u32 %v1028, 4294901760
    %v1333 = vsub.f32 %v1028, %v1332
    %v1334 = vand.u32 %v1333, 4294901760
    %v1335 = vsub.f32 %v1333, %v1334
    %v1336 = vand.u32 %v1335, 4294901760
    %1337 = vmatpush1.msra.mxu0 %v1336
    %1338 = vmatprep.subr.mxu0 0.0
    %v1339 = vand.u32 %v1029, 4294901760
    %v1340 = vsub.f32 %v1029, %v1339
    %v1341 = vand.u32 %v1340, 4294901760
    %v1342 = vsub.f32 %v1340, %v1341
    %v1343 = vand.u32 %v1342, 4294901760
    %1344 = vmatpush1.msra.mxu0 %v1343
    %1345 = vmatprep.subr.mxu0 0.0
    %v1346 = vand.u32 %v1030, 4294901760
    %v1347 = vsub.f32 %v1030, %v1346
    %v1348 = vand.u32 %v1347, 4294901760
    %v1349 = vsub.f32 %v1347, %v1348
    %v1350 = vand.u32 %v1349, 4294901760
    %1351 = vmatpush1.msra.mxu0 %v1350
    %1352 = vmatprep.subr.mxu0 0.0
    %v1353 = vand.u32 %v1031, 4294901760
    %v1354 = vsub.f32 %v1031, %v1353
    %v1355 = vand.u32 %v1354, 4294901760
    %v1356 = vsub.f32 %v1354, %v1355
    %v1357 = vand.u32 %v1356, 4294901760
    %1358 = vmatpush1.msra.mxu0 %v1357
    %1359 = vmatprep.subr.mxu0 0.0
    %v1360 = vand.u32 %v1032, 4294901760
    %v1361 = vsub.f32 %v1032, %v1360
    %v1362 = vand.u32 %v1361, 4294901760
    %v1363 = vsub.f32 %v1361, %v1362
    %v1364 = vand.u32 %v1363, 4294901760
    %1365 = vmatpush1.msra.mxu0 %v1364
    %1366 = vmatprep.subr.mxu0 0.0
    %v1367 = vand.u32 %v1033, 4294901760
    %v1368 = vsub.f32 %v1033, %v1367
    %v1369 = vand.u32 %v1368, 4294901760
    %v1370 = vsub.f32 %v1368, %v1369
    %v1371 = vand.u32 %v1370, 4294901760
    %1372 = vmatpush1.msra.mxu0 %v1371
    %1373 = vmatprep.subr.mxu0 0.0
    %v1374 = vand.u32 %v1034, 4294901760
    %v1375 = vsub.f32 %v1034, %v1374
    %v1376 = vand.u32 %v1375, 4294901760
    %v1377 = vsub.f32 %v1375, %v1376
    %v1378 = vand.u32 %v1377, 4294901760
    %1379 = vmatpush1.msra.mxu0 %v1378
    %1380 = vmatprep.subr.mxu0 0.0
    %v1381 = vand.u32 %v1035, 4294901760
    %v1382 = vsub.f32 %v1035, %v1381
    %v1383 = vand.u32 %v1382, 4294901760
    %v1384 = vsub.f32 %v1382, %v1383
    %v1385 = vand.u32 %v1384, 4294901760
    %1386 = vmatpush1.msra.mxu0 %v1385
    %1387 = vmatprep.subr.mxu0 0.0
    %v1388 = vand.u32 %v1036, 4294901760
    %v1389 = vsub.f32 %v1036, %v1388
    %v1390 = vand.u32 %v1389, 4294901760
    %v1391 = vsub.f32 %v1389, %v1390
    %v1392 = vand.u32 %v1391, 4294901760
    %1393 = vmatpush1.msra.mxu0 %v1392
    %1394 = vmatprep.subr.mxu0 0.0
    %v1395 = vand.u32 %v1037, 4294901760
    %v1396 = vsub.f32 %v1037, %v1395
    %v1397 = vand.u32 %v1396, 4294901760
    %v1398 = vsub.f32 %v1396, %v1397
    %v1399 = vand.u32 %v1398, 4294901760
    %1400 = vmatpush1.msra.mxu0 %v1399
    %1401 = vmatprep.subr.mxu0 0.0
    %v1402 = vand.u32 %v1038, 4294901760
    %v1403 = vsub.f32 %v1038, %v1402
    %v1404 = vand.u32 %v1403, 4294901760
    %v1405 = vsub.f32 %v1403, %v1404
    %v1406 = vand.u32 %v1405, 4294901760
    %1407 = vmatpush1.msra.mxu0 %v1406
    %1408 = vmatprep.subr.mxu0 0.0
    %v1409 = vand.u32 %v1039, 4294901760
    %v1410 = vsub.f32 %v1039, %v1409
    %v1411 = vand.u32 %v1410, 4294901760
    %v1412 = vsub.f32 %v1410, %v1411
    %v1413 = vand.u32 %v1412, 4294901760
    %1414 = vmatpush1.msra.mxu0 %v1413
    %1415 = vmatprep.subr.mxu0 0.0
    %v1416 = vand.u32 %v1040, 4294901760
    %v1417 = vsub.f32 %v1040, %v1416
    %v1418 = vand.u32 %v1417, 4294901760
    %v1419 = vsub.f32 %v1417, %v1418
    %v1420 = vand.u32 %v1419, 4294901760
    %1421 = vmatpush1.msra.mxu0 %v1420
    %1422 = vmatprep.subr.mxu0 0.0
    %v1423 = vand.u32 %v1041, 4294901760
    %v1424 = vsub.f32 %v1041, %v1423
    %v1425 = vand.u32 %v1424, 4294901760
    %v1426 = vsub.f32 %v1424, %v1425
    %v1427 = vand.u32 %v1426, 4294901760
    %1428 = vmatpush1.msra.mxu0 %v1427
    %1429 = vmatprep.subr.mxu0 0.0
    %v1430 = vand.u32 %v1042, 4294901760
    %v1431 = vsub.f32 %v1042, %v1430
    %v1432 = vand.u32 %v1431, 4294901760
    %v1433 = vsub.f32 %v1431, %v1432
    %v1434 = vand.u32 %v1433, 4294901760
    %1435 = vmatpush1.msra.mxu0 %v1434
    %1436 = vmatprep.subr.mxu0 0.0
    %v1437 = vand.u32 %v1043, 4294901760
    %v1438 = vsub.f32 %v1043, %v1437
    %v1439 = vand.u32 %v1438, 4294901760
    %v1440 = vsub.f32 %v1438, %v1439
    %v1441 = vand.u32 %v1440, 4294901760
    %1442 = vmatpush1.msra.mxu0 %v1441
    %1443 = vmatprep.subr.mxu0 0.0
    %v1444 = vand.u32 %v1044, 4294901760
    %v1445 = vsub.f32 %v1044, %v1444
    %v1446 = vand.u32 %v1445, 4294901760
    %v1447 = vsub.f32 %v1445, %v1446
    %v1448 = vand.u32 %v1447, 4294901760
    %1449 = vmatpush1.msra.mxu0 %v1448
    %1450 = vmatprep.subr.mxu0 0.0
    %v1451 = vand.u32 %v1045, 4294901760
    %v1452 = vsub.f32 %v1045, %v1451
    %v1453 = vand.u32 %v1452, 4294901760
    %v1454 = vsub.f32 %v1452, %v1453
    %v1455 = vand.u32 %v1454, 4294901760
    %1456 = vmatpush1.msra.mxu0 %v1455
    %1457 = vmatprep.subr.mxu0 0.0
    %v1458 = vand.u32 %v1046, 4294901760
    %v1459 = vsub.f32 %v1046, %v1458
    %v1460 = vand.u32 %v1459, 4294901760
    %v1461 = vsub.f32 %v1459, %v1460
    %v1462 = vand.u32 %v1461, 4294901760
    %1463 = vmatpush1.msra.mxu0 %v1462
    %1464 = vmatprep.subr.mxu0 0.0
    %v1465 = vand.u32 %v1047, 4294901760
    %v1466 = vsub.f32 %v1047, %v1465
    %v1467 = vand.u32 %v1466, 4294901760
    %v1468 = vsub.f32 %v1466, %v1467
    %v1469 = vand.u32 %v1468, 4294901760
    %1470 = vmatpush1.msra.mxu0 %v1469
    %1471 = vmatprep.subr.mxu0 0.0
    %v1472 = vand.u32 %v1048, 4294901760
    %v1473 = vsub.f32 %v1048, %v1472
    %v1474 = vand.u32 %v1473, 4294901760
    %v1475 = vsub.f32 %v1473, %v1474
    %v1476 = vand.u32 %v1475, 4294901760
    %1477 = vmatpush1.msra.mxu0 %v1476
    %v1478 = vand.u32 %v1005, 4294901760
    %1479 = vmatprep.mubr.f32.mxu0 %v1478
    %v1480 = vand.u32 %v1001, 4294901760
    %1481 = vmatmul.mubr.f32.gmra.mrb[0].mxu0 %v1480
    %v1482 = vpop.f32.mrb[0].mxu0
    %v1483 = vadd.f32 %v1206, %v1482
    %v1484 = vpop.f32.mrb[0].mxu0
    %v1485 = vand.u32 %v1006, 4294901760
    %1486 = vmatprep.mubr.f32.mxu0 %v1485
    %v1487 = vand.u32 %v1002, 4294901760
    %1488 = vmatmul.mubr.f32.gmra.mrb[0].mxu0 %v1487
    %v1489 = vpop.f32.mrb[0].mxu0
    %v1490 = vadd.f32 %v1221, %v1489
    %v1491 = vpop.f32.mrb[0].mxu0
    %v1492 = vand.u32 %v1007, 4294901760
    %1493 = vmatprep.mubr.f32.mxu0 %v1492
    %v1494 = vand.u32 %v1003, 4294901760
    %1495 = vmatmul.mubr.f32.gmra.mrb[0].mxu0 %v1494
    %v1496 = vpop.f32.mrb[0].mxu0
    %v1497 = vadd.f32 %v1236, %v1496
    %v1498 = vpop.f32.mrb[0].mxu0
    %v1499 = vand.u32 %v1008, 4294901760
    %1500 = vmatprep.mubr.f32.mxu0 %v1499
    %v1501 = vand.u32 %v1004, 4294901760
    %1502 = vmatmul.mubr.f32.gmra.mrb[0].mxu0 %v1501
    %v1503 = vpop.f32.mrb[0].mxu0
    %v1504 = vadd.f32 %v1251, %v1503
    %v1505 = vpop.f32.mrb[0].mxu0
    %1506 = vdwg.mxu0
    %1507 = vmatprep.subr.mxu0 0.0
    %v1508 = vand.u32 %v1017, 4294901760
    %v1509 = vsub.f32 %v1017, %v1508
    %1510 = vmatpush1.msra.mxu0 %v1509
    %1511 = vmatprep.subr.mxu0 0.0
    %v1512 = vand.u32 %v1018, 4294901760
    %v1513 = vsub.f32 %v1018, %v1512
    %1514 = vmatpush1.msra.mxu0 %v1513
    %1515 = vmatprep.subr.mxu0 0.0
    %v1516 = vand.u32 %v1019, 4294901760
    %v1517 = vsub.f32 %v1019, %v1516
    %1518 = vmatpush1.msra.mxu0 %v1517
    %1519 = vmatprep.subr.mxu0 0.0
    %v1520 = vand.u32 %v1020, 4294901760
    %v1521 = vsub.f32 %v1020, %v1520
    %1522 = vmatpush1.msra.mxu0 %v1521
    %1523 = vmatprep.subr.mxu0 0.0
    %v1524 = vand.u32 %v1021, 4294901760
    %v1525 = vsub.f32 %v1021, %v1524
    %1526 = vmatpush1.msra.mxu0 %v1525
    %1527 = vmatprep.subr.mxu0 0.0
    %v1528 = vand.u32 %v1022, 4294901760
    %v1529 = vsub.f32 %v1022, %v1528
    %1530 = vmatpush1.msra.mxu0 %v1529
    %1531 = vmatprep.subr.mxu0 0.0
    %v1532 = vand.u32 %v1023, 4294901760
    %v1533 = vsub.f32 %v1023, %v1532
    %1534 = vmatpush1.msra.mxu0 %v1533
    %1535 = vmatprep.subr.mxu0 0.0
    %v1536 = vand.u32 %v1024, 4294901760
    %v1537 = vsub.f32 %v1024, %v1536
    %1538 = vmatpush1.msra.mxu0 %v1537
    %1539 = vmatprep.subr.mxu0 0.0
    %v1540 = vand.u32 %v1025, 4294901760
    %v1541 = vsub.f32 %v1025, %v1540
    %1542 = vmatpush1.msra.mxu0 %v1541
    %1543 = vmatprep.subr.mxu0 0.0
    %v1544 = vand.u32 %v1026, 4294901760
    %v1545 = vsub.f32 %v1026, %v1544
    %1546 = vmatpush1.msra.mxu0 %v1545
    %1547 = vmatprep.subr.mxu0 0.0
    %v1548 = vand.u32 %v1027, 4294901760
    %v1549 = vsub.f32 %v1027, %v1548
    %1550 = vmatpush1.msra.mxu0 %v1549
    %1551 = vmatprep.subr.mxu0 0.0
    %v1552 = vand.u32 %v1028, 4294901760
    %v1553 = vsub.f32 %v1028, %v1552
    %1554 = vmatpush1.msra.mxu0 %v1553
    %1555 = vmatprep.subr.mxu0 0.0
    %v1556 = vand.u32 %v1029, 4294901760
    %v1557 = vsub.f32 %v1029, %v1556
    %1558 = vmatpush1.msra.mxu0 %v1557
    %1559 = vmatprep.subr.mxu0 0.0
    %v1560 = vand.u32 %v1030, 4294901760
    %v1561 = vsub.f32 %v1030, %v1560
    %1562 = vmatpush1.msra.mxu0 %v1561
    %1563 = vmatprep.subr.mxu0 0.0
    %v1564 = vand.u32 %v1031, 4294901760
    %v1565 = vsub.f32 %v1031, %v1564
    %1566 = vmatpush1.msra.mxu0 %v1565
    %1567 = vmatprep.subr.mxu0 0.0
    %v1568 = vand.u32 %v1032, 4294901760
    %v1569 = vsub.f32 %v1032, %v1568
    %1570 = vmatpush1.msra.mxu0 %v1569
    %1571 = vmatprep.subr.mxu0 0.0
    %v1572 = vand.u32 %v1033, 4294901760
    %v1573 = vsub.f32 %v1033, %v1572
    %1574 = vmatpush1.msra.mxu0 %v1573
    %1575 = vmatprep.subr.mxu0 0.0
    %v1576 = vand.u32 %v1034, 4294901760
    %v1577 = vsub.f32 %v1034, %v1576
    %1578 = vmatpush1.msra.mxu0 %v1577
    %1579 = vmatprep.subr.mxu0 0.0
    %v1580 = vand.u32 %v1035, 4294901760
    %v1581 = vsub.f32 %v1035, %v1580
    %1582 = vmatpush1.msra.mxu0 %v1581
    %1583 = vmatprep.subr.mxu0 0.0
    %v1584 = vand.u32 %v1036, 4294901760
    %v1585 = vsub.f32 %v1036, %v1584
    %1586 = vmatpush1.msra.mxu0 %v1585
    %1587 = vmatprep.subr.mxu0 0.0
    %v1588 = vand.u32 %v1037, 4294901760
    %v1589 = vsub.f32 %v1037, %v1588
    %1590 = vmatpush1.msra.mxu0 %v1589
    %1591 = vmatprep.subr.mxu0 0.0
    %v1592 = vand.u32 %v1038, 4294901760
    %v1593 = vsub.f32 %v1038, %v1592
    %1594 = vmatpush1.msra.mxu0 %v1593
    %1595 = vmatprep.subr.mxu0 0.0
    %v1596 = vand.u32 %v1039, 4294901760
    %v1597 = vsub.f32 %v1039, %v1596
    %1598 = vmatpush1.msra.mxu0 %v1597
    %1599 = vmatprep.subr.mxu0 0.0
    %v1600 = vand.u32 %v1040, 4294901760
    %v1601 = vsub.f32 %v1040, %v1600
    %1602 = vmatpush1.msra.mxu0 %v1601
    %1603 = vmatprep.subr.mxu0 0.0
    %v1604 = vand.u32 %v1041, 4294901760
    %v1605 = vsub.f32 %v1041, %v1604
    %1606 = vmatpush1.msra.mxu0 %v1605
    %1607 = vmatprep.subr.mxu0 0.0
    %v1608 = vand.u32 %v1042, 4294901760
    %v1609 = vsub.f32 %v1042, %v1608
    %1610 = vmatpush1.msra.mxu0 %v1609
    %1611 = vmatprep.subr.mxu0 0.0
    %v1612 = vand.u32 %v1043, 4294901760
    %v1613 = vsub.f32 %v1043, %v1612
    %1614 = vmatpush1.msra.mxu0 %v1613
    %1615 = vmatprep.subr.mxu0 0.0
    %v1616 = vand.u32 %v1044, 4294901760
    %v1617 = vsub.f32 %v1044, %v1616
    %1618 = vmatpush1.msra.mxu0 %v1617
    %1619 = vmatprep.subr.mxu0 0.0
    %v1620 = vand.u32 %v1045, 4294901760
    %v1621 = vsub.f32 %v1045, %v1620
    %1622 = vmatpush1.msra.mxu0 %v1621
    %1623 = vmatprep.subr.mxu0 0.0
    %v1624 = vand.u32 %v1046, 4294901760
    %v1625 = vsub.f32 %v1046, %v1624
    %1626 = vmatpush1.msra.mxu0 %v1625
    %1627 = vmatprep.subr.mxu0 0.0
    %v1628 = vand.u32 %v1047, 4294901760
    %v1629 = vsub.f32 %v1047, %v1628
    %1630 = vmatpush1.msra.mxu0 %v1629
    %1631 = vmatprep.subr.mxu0 0.0
    %v1632 = vand.u32 %v1048, 4294901760
    %v1633 = vsub.f32 %v1048, %v1632
    %1634 = vmatpush1.msra.mxu0 %v1633
    %v1635 = vand.u32 %v1005, 4294901760
    %v1636 = vsub.f32 %v1005, %v1635
    %1637 = vmatprep.mubr.f32.mxu0 %v1636
    %v1638 = vand.u32 %v1001, 4294901760
    %v1639 = vsub.f32 %v1001, %v1638
    %1640 = vmatmul.mubr.f32.gmra.mrb[0].mxu0 %v1639
    %v1641 = vpop.f32.mrb[0].mxu0
    %v1642 = vadd.f32 %v1483, %v1641
    %v1643 = vpop.f32.mrb[0].mxu0
    %v1644 = vand.u32 %v1006, 4294901760
    %v1645 = vsub.f32 %v1006, %v1644
    %1646 = vmatprep.mubr.f32.mxu0 %v1645
    %v1647 = vand.u32 %v1002, 4294901760
    %v1648 = vsub.f32 %v1002, %v1647
    %1649 = vmatmul.mubr.f32.gmra.mrb[0].mxu0 %v1648
    %v1650 = vpop.f32.mrb[0].mxu0
    %v1651 = vadd.f32 %v1490, %v1650
    %v1652 = vpop.f32.mrb[0].mxu0
    %v1653 = vand.u32 %v1007, 4294901760
    %v1654 = vsub.f32 %v1007, %v1653
    %1655 = vmatprep.mubr.f32.mxu0 %v1654
    %v1656 = vand.u32 %v1003, 4294901760
    %v1657 = vsub.f32 %v1003, %v1656
    %1658 = vmatmul.mubr.f32.gmra.mrb[0].mxu0 %v1657
    %v1659 = vpop.f32.mrb[0].mxu0
    %v1660 = vadd.f32 %v1497, %v1659
    %v1661 = vpop.f32.mrb[0].mxu0
    %v1662 = vand.u32 %v1008, 4294901760
    %v1663 = vsub.f32 %v1008, %v1662
    %1664 = vmatprep.mubr.f32.mxu0 %v1663
    %v1665 = vand.u32 %v1004, 4294901760
    %v1666 = vsub.f32 %v1004, %v1665
    %1667 = vmatmul.mubr.f32.gmra.mrb[0].mxu0 %v1666
    %v1668 = vpop.f32.mrb[0].mxu0
    %v1669 = vadd.f32 %v1504, %v1668
    %v1670 = vpop.f32.mrb[0].mxu0
    %1671 = vdwg.mxu0
    %1672 = vmatprep.subr.mxu0 0.0
    %v1673 = vand.u32 %v1017, 4294901760
    %1674 = vmatpush1.msra.mxu0 %v1673
    %1675 = vmatprep.subr.mxu0 0.0
    %v1676 = vand.u32 %v1018, 4294901760
    %1677 = vmatpush1.msra.mxu0 %v1676
    %1678 = vmatprep.subr.mxu0 0.0
    %v1679 = vand.u32 %v1019, 4294901760
    %1680 = vmatpush1.msra.mxu0 %v1679
    %1681 = vmatprep.subr.mxu0 0.0
    %v1682 = vand.u32 %v1020, 4294901760
    %1683 = vmatpush1.msra.mxu0 %v1682
    %1684 = vmatprep.subr.mxu0 0.0
    %v1685 = vand.u32 %v1021, 4294901760
    %1686 = vmatpush1.msra.mxu0 %v1685
    %1687 = vmatprep.subr.mxu0 0.0
    %v1688 = vand.u32 %v1022, 4294901760
    %1689 = vmatpush1.msra.mxu0 %v1688
    %1690 = vmatprep.subr.mxu0 0.0
    %v1691 = vand.u32 %v1023, 4294901760
    %1692 = vmatpush1.msra.mxu0 %v1691
    %1693 = vmatprep.subr.mxu0 0.0
    %v1694 = vand.u32 %v1024, 4294901760
    %1695 = vmatpush1.msra.mxu0 %v1694
    %1696 = vmatprep.subr.mxu0 0.0
    %v1697 = vand.u32 %v1025, 4294901760
    %1698 = vmatpush1.msra.mxu0 %v1697
    %1699 = vmatprep.subr.mxu0 0.0
    %v1700 = vand.u32 %v1026, 4294901760
    %1701 = vmatpush1.msra.mxu0 %v1700
    %1702 = vmatprep.subr.mxu0 0.0
    %v1703 = vand.u32 %v1027, 4294901760
    %1704 = vmatpush1.msra.mxu0 %v1703
    %1705 = vmatprep.subr.mxu0 0.0
    %v1706 = vand.u32 %v1028, 4294901760
    %1707 = vmatpush1.msra.mxu0 %v1706
    %1708 = vmatprep.subr.mxu0 0.0
    %v1709 = vand.u32 %v1029, 4294901760
    %1710 = vmatpush1.msra.mxu0 %v1709
    %1711 = vmatprep.subr.mxu0 0.0
    %v1712 = vand.u32 %v1030, 4294901760
    %1713 = vmatpush1.msra.mxu0 %v1712
    %1714 = vmatprep.subr.mxu0 0.0
    %v1715 = vand.u32 %v1031, 4294901760
    %1716 = vmatpush1.msra.mxu0 %v1715
    %1717 = vmatprep.subr.mxu0 0.0
    %v1718 = vand.u32 %v1032, 4294901760
    %1719 = vmatpush1.msra.mxu0 %v1718
    %1720 = vmatprep.subr.mxu0 0.0
    %v1721 = vand.u32 %v1033, 4294901760
    %1722 = vmatpush1.msra.mxu0 %v1721
    %1723 = vmatprep.subr.mxu0 0.0
    %v1724 = vand.u32 %v1034, 4294901760
    %1725 = vmatpush1.msra.mxu0 %v1724
    %1726 = vmatprep.subr.mxu0 0.0
    %v1727 = vand.u32 %v1035, 4294901760
    %1728 = vmatpush1.msra.mxu0 %v1727
    %1729 = vmatprep.subr.mxu0 0.0
    %v1730 = vand.u32 %v1036, 4294901760
    %1731 = vmatpush1.msra.mxu0 %v1730
    %1732 = vmatprep.subr.mxu0 0.0
    %v1733 = vand.u32 %v1037, 4294901760
    %1734 = vmatpush1.msra.mxu0 %v1733
    %1735 = vmatprep.subr.mxu0 0.0
    %v1736 = vand.u32 %v1038, 4294901760
    %1737 = vmatpush1.msra.mxu0 %v1736
    %1738 = vmatprep.subr.mxu0 0.0
    %v1739 = vand.u32 %v1039, 4294901760
    %1740 = vmatpush1.msra.mxu0 %v1739
    %1741 = vmatprep.subr.mxu0 0.0
    %v1742 = vand.u32 %v1040, 4294901760
    %1743 = vmatpush1.msra.mxu0 %v1742
    %1744 = vmatprep.subr.mxu0 0.0
    %v1745 = vand.u32 %v1041, 4294901760
    %1746 = vmatpush1.msra.mxu0 %v1745
    %1747 = vmatprep.subr.mxu0 0.0
    %v1748 = vand.u32 %v1042, 4294901760
    %1749 = vmatpush1.msra.mxu0 %v1748
    %1750 = vmatprep.subr.mxu0 0.0
    %v1751 = vand.u32 %v1043, 4294901760
    %1752 = vmatpush1.msra.mxu0 %v1751
    %1753 = vmatprep.subr.mxu0 0.0
    %v1754 = vand.u32 %v1044, 4294901760
    %1755 = vmatpush1.msra.mxu0 %v1754
    %1756 = vmatprep.subr.mxu0 0.0
    %v1757 = vand.u32 %v1045, 4294901760
    %1758 = vmatpush1.msra.mxu0 %v1757
    %1759 = vmatprep.subr.mxu0 0.0
    %v1760 = vand.u32 %v1046, 4294901760
    %1761 = vmatpush1.msra.mxu0 %v1760
    %1762 = vmatprep.subr.mxu0 0.0
    %v1763 = vand.u32 %v1047, 4294901760
    %1764 = vmatpush1.msra.mxu0 %v1763
    %1765 = vmatprep.subr.mxu0 0.0
    %v1766 = vand.u32 %v1048, 4294901760
    %1767 = vmatpush1.msra.mxu0 %v1766
    %v1768 = vand.u32 %v1005, 4294901760
    %v1769 = vsub.f32 %v1005, %v1768
    %v1770 = vand.u32 %v1769, 4294901760
    %1771 = vmatprep.mubr.f32.mxu0 %v1770
    %v1772 = vand.u32 %v1001, 4294901760
    %v1773 = vsub.f32 %v1001, %v1772
    %v1774 = vand.u32 %v1773, 4294901760
    %1775 = vmatmul.mubr.f32.gmra.mrb[0].mxu0 %v1774
    %v1776 = vpop.f32.mrb[0].mxu0
    %v1777 = vadd.f32 %v1642, %v1776
    %v1778 = vpop.f32.mrb[0].mxu0
    %v1779 = vand.u32 %v1006, 4294901760
    %v1780 = vsub.f32 %v1006, %v1779
    %v1781 = vand.u32 %v1780, 4294901760
    %1782 = vmatprep.mubr.f32.mxu0 %v1781
    %v1783 = vand.u32 %v1002, 4294901760
    %v1784 = vsub.f32 %v1002, %v1783
    %v1785 = vand.u32 %v1784, 4294901760
    %1786 = vmatmul.mubr.f32.gmra.mrb[0].mxu0 %v1785
    %v1787 = vpop.f32.mrb[0].mxu0
    %v1788 = vadd.f32 %v1651, %v1787
    %v1789 = vpop.f32.mrb[0].mxu0
    %v1790 = vand.u32 %v1007, 4294901760
    %v1791 = vsub.f32 %v1007, %v1790
    %v1792 = vand.u32 %v1791, 4294901760
    %1793 = vmatprep.mubr.f32.mxu0 %v1792
    %v1794 = vand.u32 %v1003, 4294901760
    %v1795 = vsub.f32 %v1003, %v1794
    %v1796 = vand.u32 %v1795, 4294901760
    %1797 = vmatmul.mubr.f32.gmra.mrb[0].mxu0 %v1796
    %v1798 = vpop.f32.mrb[0].mxu0
    %v1799 = vadd.f32 %v1660, %v1798
    %v1800 = vpop.f32.mrb[0].mxu0
    %v1801 = vand.u32 %v1008, 4294901760
    %v1802 = vsub.f32 %v1008, %v1801
    %v1803 = vand.u32 %v1802, 4294901760
    %1804 = vmatprep.mubr.f32.mxu0 %v1803
    %v1805 = vand.u32 %v1004, 4294901760
    %v1806 = vsub.f32 %v1004, %v1805
    %v1807 = vand.u32 %v1806, 4294901760
    %1808 = vmatmul.mubr.f32.gmra.mrb[0].mxu0 %v1807
    %v1809 = vpop.f32.mrb[0].mxu0
    %v1810 = vadd.f32 %v1669, %v1809
    %v1811 = vpop.f32.mrb[0].mxu0
    %1812 = vdwg.mxu0
    %1813 = vmatprep.subr.mxu0 0.0
    %v1814 = vand.u32 %v1017, 4294901760
    %v1815 = vsub.f32 %v1017, %v1814
    %v1816 = vand.u32 %v1815, 4294901760
    %1817 = vmatpush1.msra.mxu0 %v1816
    %1818 = vmatprep.subr.mxu0 0.0
    %v1819 = vand.u32 %v1018, 4294901760
    %v1820 = vsub.f32 %v1018, %v1819
    %v1821 = vand.u32 %v1820, 4294901760
    %1822 = vmatpush1.msra.mxu0 %v1821
    %1823 = vmatprep.subr.mxu0 0.0
    %v1824 = vand.u32 %v1019, 4294901760
    %v1825 = vsub.f32 %v1019, %v1824
    %v1826 = vand.u32 %v1825, 4294901760
    %1827 = vmatpush1.msra.mxu0 %v1826
    %1828 = vmatprep.subr.mxu0 0.0
    %v1829 = vand.u32 %v1020, 4294901760
    %v1830 = vsub.f32 %v1020, %v1829
    %v1831 = vand.u32 %v1830, 4294901760
    %1832 = vmatpush1.msra.mxu0 %v1831
    %1833 = vmatprep.subr.mxu0 0.0
    %v1834 = vand.u32 %v1021, 4294901760
    %v1835 = vsub.f32 %v1021, %v1834
    %v1836 = vand.u32 %v1835, 4294901760
    %1837 = vmatpush1.msra.mxu0 %v1836
    %1838 = vmatprep.subr.mxu0 0.0
    %v1839 = vand.u32 %v1022, 4294901760
    %v1840 = vsub.f32 %v1022, %v1839
    %v1841 = vand.u32 %v1840, 4294901760
    %1842 = vmatpush1.msra.mxu0 %v1841
    %1843 = vmatprep.subr.mxu0 0.0
    %v1844 = vand.u32 %v1023, 4294901760
    %v1845 = vsub.f32 %v1023, %v1844
    %v1846 = vand.u32 %v1845, 4294901760
    %1847 = vmatpush1.msra.mxu0 %v1846
    %1848 = vmatprep.subr.mxu0 0.0
    %v1849 = vand.u32 %v1024, 4294901760
    %v1850 = vsub.f32 %v1024, %v1849
    %v1851 = vand.u32 %v1850, 4294901760
    %1852 = vmatpush1.msra.mxu0 %v1851
    %1853 = vmatprep.subr.mxu0 0.0
    %v1854 = vand.u32 %v1025, 4294901760
    %v1855 = vsub.f32 %v1025, %v1854
    %v1856 = vand.u32 %v1855, 4294901760
    %1857 = vmatpush1.msra.mxu0 %v1856
    %1858 = vmatprep.subr.mxu0 0.0
    %v1859 = vand.u32 %v1026, 4294901760
    %v1860 = vsub.f32 %v1026, %v1859
    %v1861 = vand.u32 %v1860, 4294901760
    %1862 = vmatpush1.msra.mxu0 %v1861
    %1863 = vmatprep.subr.mxu0 0.0
    %v1864 = vand.u32 %v1027, 4294901760
    %v1865 = vsub.f32 %v1027, %v1864
    %v1866 = vand.u32 %v1865, 4294901760
    %1867 = vmatpush1.msra.mxu0 %v1866
    %1868 = vmatprep.subr.mxu0 0.0
    %v1869 = vand.u32 %v1028, 4294901760
    %v1870 = vsub.f32 %v1028, %v1869
    %v1871 = vand.u32 %v1870, 4294901760
    %1872 = vmatpush1.msra.mxu0 %v1871
    %1873 = vmatprep.subr.mxu0 0.0
    %v1874 = vand.u32 %v1029, 4294901760
    %v1875 = vsub.f32 %v1029, %v1874
    %v1876 = vand.u32 %v1875, 4294901760
    %1877 = vmatpush1.msra.mxu0 %v1876
    %1878 = vmatprep.subr.mxu0 0.0
    %v1879 = vand.u32 %v1030, 4294901760
    %v1880 = vsub.f32 %v1030, %v1879
    %v1881 = vand.u32 %v1880, 4294901760
    %1882 = vmatpush1.msra.mxu0 %v1881
    %1883 = vmatprep.subr.mxu0 0.0
    %v1884 = vand.u32 %v1031, 4294901760
    %v1885 = vsub.f32 %v1031, %v1884
    %v1886 = vand.u32 %v1885, 4294901760
    %1887 = vmatpush1.msra.mxu0 %v1886
    %1888 = vmatprep.subr.mxu0 0.0
    %v1889 = vand.u32 %v1032, 4294901760
    %v1890 = vsub.f32 %v1032, %v1889
    %v1891 = vand.u32 %v1890, 4294901760
    %1892 = vmatpush1.msra.mxu0 %v1891
    %1893 = vmatprep.subr.mxu0 0.0
    %v1894 = vand.u32 %v1033, 4294901760
    %v1895 = vsub.f32 %v1033, %v1894
    %v1896 = vand.u32 %v1895, 4294901760
    %1897 = vmatpush1.msra.mxu0 %v1896
    %1898 = vmatprep.subr.mxu0 0.0
    %v1899 = vand.u32 %v1034, 4294901760
    %v1900 = vsub.f32 %v1034, %v1899
    %v1901 = vand.u32 %v1900, 4294901760
    %1902 = vmatpush1.msra.mxu0 %v1901
    %1903 = vmatprep.subr.mxu0 0.0
    %v1904 = vand.u32 %v1035, 4294901760
    %v1905 = vsub.f32 %v1035, %v1904
    %v1906 = vand.u32 %v1905, 4294901760
    %1907 = vmatpush1.msra.mxu0 %v1906
    %1908 = vmatprep.subr.mxu0 0.0
    %v1909 = vand.u32 %v1036, 4294901760
    %v1910 = vsub.f32 %v1036, %v1909
    %v1911 = vand.u32 %v1910, 4294901760
    %1912 = vmatpush1.msra.mxu0 %v1911
    %1913 = vmatprep.subr.mxu0 0.0
    %v1914 = vand.u32 %v1037, 4294901760
    %v1915 = vsub.f32 %v1037, %v1914
    %v1916 = vand.u32 %v1915, 4294901760
    %1917 = vmatpush1.msra.mxu0 %v1916
    %1918 = vmatprep.subr.mxu0 0.0
    %v1919 = vand.u32 %v1038, 4294901760
    %v1920 = vsub.f32 %v1038, %v1919
    %v1921 = vand.u32 %v1920, 4294901760
    %1922 = vmatpush1.msra.mxu0 %v1921
    %1923 = vmatprep.subr.mxu0 0.0
    %v1924 = vand.u32 %v1039, 4294901760
    %v1925 = vsub.f32 %v1039, %v1924
    %v1926 = vand.u32 %v1925, 4294901760
    %1927 = vmatpush1.msra.mxu0 %v1926
    %1928 = vmatprep.subr.mxu0 0.0
    %v1929 = vand.u32 %v1040, 4294901760
    %v1930 = vsub.f32 %v1040, %v1929
    %v1931 = vand.u32 %v1930, 4294901760
    %1932 = vmatpush1.msra.mxu0 %v1931
    %1933 = vmatprep.subr.mxu0 0.0
    %v1934 = vand.u32 %v1041, 4294901760
    %v1935 = vsub.f32 %v1041, %v1934
    %v1936 = vand.u32 %v1935, 4294901760
    %1937 = vmatpush1.msra.mxu0 %v1936
    %1938 = vmatprep.subr.mxu0 0.0
    %v1939 = vand.u32 %v1042, 4294901760
    %v1940 = vsub.f32 %v1042, %v1939
    %v1941 = vand.u32 %v1940, 4294901760
    %1942 = vmatpush1.msra.mxu0 %v1941
    %1943 = vmatprep.subr.mxu0 0.0
    %v1944 = vand.u32 %v1043, 4294901760
    %v1945 = vsub.f32 %v1043, %v1944
    %v1946 = vand.u32 %v1945, 4294901760
    %1947 = vmatpush1.msra.mxu0 %v1946
    %1948 = vmatprep.subr.mxu0 0.0
    %v1949 = vand.u32 %v1044, 4294901760
    %v1950 = vsub.f32 %v1044, %v1949
    %v1951 = vand.u32 %v1950, 4294901760
    %1952 = vmatpush1.msra.mxu0 %v1951
    %1953 = vmatprep.subr.mxu0 0.0
    %v1954 = vand.u32 %v1045, 4294901760
    %v1955 = vsub.f32 %v1045, %v1954
    %v1956 = vand.u32 %v1955, 4294901760
    %1957 = vmatpush1.msra.mxu0 %v1956
    %1958 = vmatprep.subr.mxu0 0.0
    %v1959 = vand.u32 %v1046, 4294901760
    %v1960 = vsub.f32 %v1046, %v1959
    %v1961 = vand.u32 %v1960, 4294901760
    %1962 = vmatpush1.msra.mxu0 %v1961
    %1963 = vmatprep.subr.mxu0 0.0
    %v1964 = vand.u32 %v1047, 4294901760
    %v1965 = vsub.f32 %v1047, %v1964
    %v1966 = vand.u32 %v1965, 4294901760
    %1967 = vmatpush1.msra.mxu0 %v1966
    %1968 = vmatprep.subr.mxu0 0.0
    %v1969 = vand.u32 %v1048, 4294901760
    %v1970 = vsub.f32 %v1048, %v1969
    %v1971 = vand.u32 %v1970, 4294901760
    %1972 = vmatpush1.msra.mxu0 %v1971
    %v1973 = vand.u32 %v1005, 4294901760
    %1974 = vmatprep.mubr.f32.mxu0 %v1973
    %v1975 = vand.u32 %v1001, 4294901760
    %1976 = vmatmul.mubr.f32.gmra.mrb[0].mxu0 %v1975
    %v1977 = vpop.f32.mrb[0].mxu0
    %v1978 = vadd.f32 %v1777, %v1977
    %v1979 = vpop.f32.mrb[0].mxu0
    %v1980 = vand.u32 %v1006, 4294901760
    %1981 = vmatprep.mubr.f32.mxu0 %v1980
    %v1982 = vand.u32 %v1002, 4294901760
    %1983 = vmatmul.mubr.f32.gmra.mrb[0].mxu0 %v1982
    %v1984 = vpop.f32.mrb[0].mxu0
    %v1985 = vadd.f32 %v1788, %v1984
    %v1986 = vpop.f32.mrb[0].mxu0
    %v1987 = vand.u32 %v1007, 4294901760
    %1988 = vmatprep.mubr.f32.mxu0 %v1987
    %v1989 = vand.u32 %v1003, 4294901760
    %1990 = vmatmul.mubr.f32.gmra.mrb[0].mxu0 %v1989
    %v1991 = vpop.f32.mrb[0].mxu0
    %v1992 = vadd.f32 %v1799, %v1991
    %v1993 = vpop.f32.mrb[0].mxu0
    %v1994 = vand.u32 %v1008, 4294901760
    %1995 = vmatprep.mubr.f32.mxu0 %v1994
    %v1996 = vand.u32 %v1004, 4294901760
    %1997 = vmatmul.mubr.f32.gmra.mrb[0].mxu0 %v1996
    %v1998 = vpop.f32.mrb[0].mxu0
    %v1999 = vadd.f32 %v1810, %v1998
    %v2000 = vpop.f32.mrb[0].mxu0
    %2001 = vdwg.mxu0
    %2002 = vmatprep.subr.mxu0 0.0
    %v2003 = vand.u32 %v1017, 4294901760
    %2004 = vmatpush1.msra.mxu0 %v2003
    %2005 = vmatprep.subr.mxu0 0.0
    %v2006 = vand.u32 %v1018, 4294901760
    %2007 = vmatpush1.msra.mxu0 %v2006
    %2008 = vmatprep.subr.mxu0 0.0
    %v2009 = vand.u32 %v1019, 4294901760
    %2010 = vmatpush1.msra.mxu0 %v2009
    %2011 = vmatprep.subr.mxu0 0.0
    %v2012 = vand.u32 %v1020, 4294901760
    %2013 = vmatpush1.msra.mxu0 %v2012
    %2014 = vmatprep.subr.mxu0 0.0
    %v2015 = vand.u32 %v1021, 4294901760
    %2016 = vmatpush1.msra.mxu0 %v2015
    %2017 = vmatprep.subr.mxu0 0.0
    %v2018 = vand.u32 %v1022, 4294901760
    %2019 = vmatpush1.msra.mxu0 %v2018
    %2020 = vmatprep.subr.mxu0 0.0
    %v2021 = vand.u32 %v1023, 4294901760
    %2022 = vmatpush1.msra.mxu0 %v2021
    %2023 = vmatprep.subr.mxu0 0.0
    %v2024 = vand.u32 %v1024, 4294901760
    %2025 = vmatpush1.msra.mxu0 %v2024
    %2026 = vmatprep.subr.mxu0 0.0
    %v2027 = vand.u32 %v1025, 4294901760
    %2028 = vmatpush1.msra.mxu0 %v2027
    %2029 = vmatprep.subr.mxu0 0.0
    %v2030 = vand.u32 %v1026, 4294901760
    %2031 = vmatpush1.msra.mxu0 %v2030
    %2032 = vmatprep.subr.mxu0 0.0
    %v2033 = vand.u32 %v1027, 4294901760
    %2034 = vmatpush1.msra.mxu0 %v2033
    %2035 = vmatprep.subr.mxu0 0.0
    %v2036 = vand.u32 %v1028, 4294901760
    %2037 = vmatpush1.msra.mxu0 %v2036
    %2038 = vmatprep.subr.mxu0 0.0
    %v2039 = vand.u32 %v1029, 4294901760
    %2040 = vmatpush1.msra.mxu0 %v2039
    %2041 = vmatprep.subr.mxu0 0.0
    %v2042 = vand.u32 %v1030, 4294901760
    %2043 = vmatpush1.msra.mxu0 %v2042
    %2044 = vmatprep.subr.mxu0 0.0
    %v2045 = vand.u32 %v1031, 4294901760
    %2046 = vmatpush1.msra.mxu0 %v2045
    %2047 = vmatprep.subr.mxu0 0.0
    %v2048 = vand.u32 %v1032, 4294901760
    %2049 = vmatpush1.msra.mxu0 %v2048
    %2050 = vmatprep.subr.mxu0 0.0
    %v2051 = vand.u32 %v1033, 4294901760
    %2052 = vmatpush1.msra.mxu0 %v2051
    %2053 = vmatprep.subr.mxu0 0.0
    %v2054 = vand.u32 %v1034, 4294901760
    %2055 = vmatpush1.msra.mxu0 %v2054
    %2056 = vmatprep.subr.mxu0 0.0
    %v2057 = vand.u32 %v1035, 4294901760
    %2058 = vmatpush1.msra.mxu0 %v2057
    %2059 = vmatprep.subr.mxu0 0.0
    %v2060 = vand.u32 %v1036, 4294901760
    %2061 = vmatpush1.msra.mxu0 %v2060
    %2062 = vmatprep.subr.mxu0 0.0
    %v2063 = vand.u32 %v1037, 4294901760
    %2064 = vmatpush1.msra.mxu0 %v2063
    %2065 = vmatprep.subr.mxu0 0.0
    %v2066 = vand.u32 %v1038, 4294901760
    %2067 = vmatpush1.msra.mxu0 %v2066
    %2068 = vmatprep.subr.mxu0 0.0
    %v2069 = vand.u32 %v1039, 4294901760
    %2070 = vmatpush1.msra.mxu0 %v2069
    %2071 = vmatprep.subr.mxu0 0.0
    %v2072 = vand.u32 %v1040, 4294901760
    %2073 = vmatpush1.msra.mxu0 %v2072
    %2074 = vmatprep.subr.mxu0 0.0
    %v2075 = vand.u32 %v1041, 4294901760
    %2076 = vmatpush1.msra.mxu0 %v2075
    %2077 = vmatprep.subr.mxu0 0.0
    %v2078 = vand.u32 %v1042, 4294901760
    %2079 = vmatpush1.msra.mxu0 %v2078
    %2080 = vmatprep.subr.mxu0 0.0
    %v2081 = vand.u32 %v1043, 4294901760
    %2082 = vmatpush1.msra.mxu0 %v2081
    %2083 = vmatprep.subr.mxu0 0.0
    %v2084 = vand.u32 %v1044, 4294901760
    %2085 = vmatpush1.msra.mxu0 %v2084
    %2086 = vmatprep.subr.mxu0 0.0
    %v2087 = vand.u32 %v1045, 4294901760
    %2088 = vmatpush1.msra.mxu0 %v2087
    %2089 = vmatprep.subr.mxu0 0.0
    %v2090 = vand.u32 %v1046, 4294901760
    %2091 = vmatpush1.msra.mxu0 %v2090
    %2092 = vmatprep.subr.mxu0 0.0
    %v2093 = vand.u32 %v1047, 4294901760
    %2094 = vmatpush1.msra.mxu0 %v2093
    %2095 = vmatprep.subr.mxu0 0.0
    %v2096 = vand.u32 %v1048, 4294901760
    %2097 = vmatpush1.msra.mxu0 %v2096
    %v2098 = vand.u32 %v1005, 4294901760
    %2099 = vmatprep.mubr.f32.mxu0 %v2098
    %v2100 = vand.u32 %v1001, 4294901760
    %2101 = vmatmul.mubr.f32.gmra.mrb[0].mxu0 %v2100
    %v2102 = vpop.f32.mrb[0].mxu0
    %v2103 = vadd.f32 %v1978, %v2102
    %v2104 = vpop.f32.mrb[0].mxu0
    %v2105 = vand.u32 %v1006, 4294901760
    %2106 = vmatprep.mubr.f32.mxu0 %v2105
    %v2107 = vand.u32 %v1002, 4294901760
    %2108 = vmatmul.mubr.f32.gmra.mrb[0].mxu0 %v2107
    %v2109 = vpop.f32.mrb[0].mxu0
    %v2110 = vadd.f32 %v1985, %v2109
    %v2111 = vpop.f32.mrb[0].mxu0
    %v2112 = vand.u32 %v1007, 4294901760
    %2113 = vmatprep.mubr.f32.mxu0 %v2112
    %v2114 = vand.u32 %v1003, 4294901760
    %2115 = vmatmul.mubr.f32.gmra.mrb[0].mxu0 %v2114
    %v2116 = vpop.f32.mrb[0].mxu0
    %v2117 = vadd.f32 %v1992, %v2116
    %v2118 = vpop.f32.mrb[0].mxu0
    %v2119 = vand.u32 %v1008, 4294901760
    %2120 = vmatprep.mubr.f32.mxu0 %v2119
    %v2121 = vand.u32 %v1004, 4294901760
    %2122 = vmatmul.mubr.f32.gmra.mrb[0].mxu0 %v2121
    %v2123 = vpop.f32.mrb[0].mxu0
    %v2124 = vadd.f32 %v1999, %v2123
    %v2125 = vpop.f32.mrb[0].mxu0
    %2126 = vdwg.mxu0
    %2127 = vmatprep.subr.mxu0 0.0
    %v2128 = vand.u32 %v1049, 4294901760
    %2129 = vmatpush1.msra.mxu0 %v2128
    %2130 = vmatprep.subr.mxu0 0.0
    %v2131 = vand.u32 %v1050, 4294901760
    %2132 = vmatpush1.msra.mxu0 %v2131
    %2133 = vmatprep.subr.mxu0 0.0
    %v2134 = vand.u32 %v1051, 4294901760
    %2135 = vmatpush1.msra.mxu0 %v2134
    %2136 = vmatprep.subr.mxu0 0.0
    %v2137 = vand.u32 %v1052, 4294901760
    %2138 = vmatpush1.msra.mxu0 %v2137
    %2139 = vmatprep.subr.mxu0 0.0
    %v2140 = vand.u32 %v1053, 4294901760
    %2141 = vmatpush1.msra.mxu0 %v2140
    %2142 = vmatprep.subr.mxu0 0.0
    %v2143 = vand.u32 %v1054, 4294901760
    %2144 = vmatpush1.msra.mxu0 %v2143
    %2145 = vmatprep.subr.mxu0 0.0
    %v2146 = vand.u32 %v1055, 4294901760
    %2147 = vmatpush1.msra.mxu0 %v2146
    %2148 = vmatprep.subr.mxu0 0.0
    %v2149 = vand.u32 %v1056, 4294901760
    %2150 = vmatpush1.msra.mxu0 %v2149
    %2151 = vmatprep.subr.mxu0 0.0
    %v2152 = vand.u32 %v1057, 4294901760
    %2153 = vmatpush1.msra.mxu0 %v2152
    %2154 = vmatprep.subr.mxu0 0.0
    %v2155 = vand.u32 %v1058, 4294901760
    %2156 = vmatpush1.msra.mxu0 %v2155
    %2157 = vmatprep.subr.mxu0 0.0
    %v2158 = vand.u32 %v1059, 4294901760
    %2159 = vmatpush1.msra.mxu0 %v2158
    %2160 = vmatprep.subr.mxu0 0.0
    %v2161 = vand.u32 %v1060, 4294901760
    %2162 = vmatpush1.msra.mxu0 %v2161
    %2163 = vmatprep.subr.mxu0 0.0
    %v2164 = vand.u32 %v1061, 4294901760
    %2165 = vmatpush1.msra.mxu0 %v2164
    %2166 = vmatprep.subr.mxu0 0.0
    %v2167 = vand.u32 %v1062, 4294901760
    %2168 = vmatpush1.msra.mxu0 %v2167
    %2169 = vmatprep.subr.mxu0 0.0
    %v2170 = vand.u32 %v1063, 4294901760
    %2171 = vmatpush1.msra.mxu0 %v2170
    %2172 = vmatprep.subr.mxu0 0.0
    %v2173 = vand.u32 %v1064, 4294901760
    %2174 = vmatpush1.msra.mxu0 %v2173
    %2175 = vmatprep.subr.mxu0 0.0
    %v2176 = vand.u32 %v1065, 4294901760
    %2177 = vmatpush1.msra.mxu0 %v2176
    %2178 = vmatprep.subr.mxu0 0.0
    %v2179 = vand.u32 %v1066, 4294901760
    %2180 = vmatpush1.msra.mxu0 %v2179
    %2181 = vmatprep.subr.mxu0 0.0
    %v2182 = vand.u32 %v1067, 4294901760
    %2183 = vmatpush1.msra.mxu0 %v2182
    %2184 = vmatprep.subr.mxu0 0.0
    %v2185 = vand.u32 %v1068, 4294901760
    %2186 = vmatpush1.msra.mxu0 %v2185
    %2187 = vmatprep.subr.mxu0 0.0
    %v2188 = vand.u32 %v1069, 4294901760
    %2189 = vmatpush1.msra.mxu0 %v2188
    %2190 = vmatprep.subr.mxu0 0.0
    %v2191 = vand.u32 %v1070, 4294901760
    %2192 = vmatpush1.msra.mxu0 %v2191
    %2193 = vmatprep.subr.mxu0 0.0
    %v2194 = vand.u32 %v1071, 4294901760
    %2195 = vmatpush1.msra.mxu0 %v2194
    %2196 = vmatprep.subr.mxu0 0.0
    %v2197 = vand.u32 %v1072, 4294901760
    %2198 = vmatpush1.msra.mxu0 %v2197
    %2199 = vmatprep.subr.mxu0 0.0
    %v2200 = vand.u32 %v1073, 4294901760
    %2201 = vmatpush1.msra.mxu0 %v2200
    %2202 = vmatprep.subr.mxu0 0.0
    %v2203 = vand.u32 %v1074, 4294901760
    %2204 = vmatpush1.msra.mxu0 %v2203
    %2205 = vmatprep.subr.mxu0 0.0
    %v2206 = vand.u32 %v1075, 4294901760
    %2207 = vmatpush1.msra.mxu0 %v2206
    %2208 = vmatprep.subr.mxu0 0.0
    %v2209 = vand.u32 %v1076, 4294901760
    %2210 = vmatpush1.msra.mxu0 %v2209
    %2211 = vmatprep.subr.mxu0 0.0
    %v2212 = vand.u32 %v1077, 4294901760
    %2213 = vmatpush1.msra.mxu0 %v2212
    %2214 = vmatprep.subr.mxu0 0.0
    %v2215 = vand.u32 %v1078, 4294901760
    %2216 = vmatpush1.msra.mxu0 %v2215
    %2217 = vmatprep.subr.mxu0 0.0
    %v2218 = vand.u32 %v1079, 4294901760
    %2219 = vmatpush1.msra.mxu0 %v2218
    %2220 = vmatprep.subr.mxu0 0.0
    %v2221 = vand.u32 %v1080, 4294901760
    %2222 = vmatpush1.msra.mxu0 %v2221
    %v2223 = vand.u32 %v1013, 4294901760
    %v2224 = vsub.f32 %v1013, %v2223
    %v2225 = vand.u32 %v2224, 4294901760
    %v2226 = vsub.f32 %v2224, %v2225
    %v2227 = vand.u32 %v2226, 4294901760
    %2228 = vmatprep.mubr.f32.mxu0 %v2227
    %v2229 = vand.u32 %v1009, 4294901760
    %v2230 = vsub.f32 %v1009, %v2229
    %v2231 = vand.u32 %v2230, 4294901760
    %v2232 = vsub.f32 %v2230, %v2231
    %v2233 = vand.u32 %v2232, 4294901760
    %2234 = vmatmul.mubr.f32.gmra.mrb[0].mxu0 %v2233
    %v2235 = vpop.f32.mrb[0].mxu0
    %v2236 = vadd.f32 %v2103, %v2235
    %v2237 = vpop.f32.mrb[0].mxu0
    %v2238 = vand.u32 %v1014, 4294901760
    %v2239 = vsub.f32 %v1014, %v2238
    %v2240 = vand.u32 %v2239, 4294901760
    %v2241 = vsub.f32 %v2239, %v2240
    %v2242 = vand.u32 %v2241, 4294901760
    %2243 = vmatprep.mubr.f32.mxu0 %v2242
    %v2244 = vand.u32 %v1010, 4294901760
    %v2245 = vsub.f32 %v1010, %v2244
    %v2246 = vand.u32 %v2245, 4294901760
    %v2247 = vsub.f32 %v2245, %v2246
    %v2248 = vand.u32 %v2247, 4294901760
    %2249 = vmatmul.mubr.f32.gmra.mrb[0].mxu0 %v2248
    %v2250 = vpop.f32.mrb[0].mxu0
    %v2251 = vadd.f32 %v2110, %v2250
    %v2252 = vpop.f32.mrb[0].mxu0
    %v2253 = vand.u32 %v1015, 4294901760
    %v2254 = vsub.f32 %v1015, %v2253
    %v2255 = vand.u32 %v2254, 4294901760
    %v2256 = vsub.f32 %v2254, %v2255
    %v2257 = vand.u32 %v2256, 4294901760
    %2258 = vmatprep.mubr.f32.mxu0 %v2257
    %v2259 = vand.u32 %v1011, 4294901760
    %v2260 = vsub.f32 %v1011, %v2259
    %v2261 = vand.u32 %v2260, 4294901760
    %v2262 = vsub.f32 %v2260, %v2261
    %v2263 = vand.u32 %v2262, 4294901760
    %2264 = vmatmul.mubr.f32.gmra.mrb[0].mxu0 %v2263
    %v2265 = vpop.f32.mrb[0].mxu0
    %v2266 = vadd.f32 %v2117, %v2265
    %v2267 = vpop.f32.mrb[0].mxu0
    %v2268 = vand.u32 %v1016, 4294901760
    %v2269 = vsub.f32 %v1016, %v2268
    %v2270 = vand.u32 %v2269, 4294901760
    %v2271 = vsub.f32 %v2269, %v2270
    %v2272 = vand.u32 %v2271, 4294901760
    %2273 = vmatprep.mubr.f32.mxu0 %v2272
    %v2274 = vand.u32 %v1012, 4294901760
    %v2275 = vsub.f32 %v1012, %v2274
    %v2276 = vand.u32 %v2275, 4294901760
    %v2277 = vsub.f32 %v2275, %v2276
    %v2278 = vand.u32 %v2277, 4294901760
    %2279 = vmatmul.mubr.f32.gmra.mrb[0].mxu0 %v2278
    %v2280 = vpop.f32.mrb[0].mxu0
    %v2281 = vadd.f32 %v2124, %v2280
    %v2282 = vpop.f32.mrb[0].mxu0
    %2283 = vdwg.mxu0
    %2284 = vmatprep.subr.mxu0 0.0
    %v2285 = vand.u32 %v1049, 4294901760
    %v2286 = vsub.f32 %v1049, %v2285
    %v2287 = vand.u32 %v2286, 4294901760
    %v2288 = vsub.f32 %v2286, %v2287
    %v2289 = vand.u32 %v2288, 4294901760
    %2290 = vmatpush1.msra.mxu0 %v2289
    %2291 = vmatprep.subr.mxu0 0.0
    %v2292 = vand.u32 %v1050, 4294901760
    %v2293 = vsub.f32 %v1050, %v2292
    %v2294 = vand.u32 %v2293, 4294901760
    %v2295 = vsub.f32 %v2293, %v2294
    %v2296 = vand.u32 %v2295, 4294901760
    %2297 = vmatpush1.msra.mxu0 %v2296
    %2298 = vmatprep.subr.mxu0 0.0
    %v2299 = vand.u32 %v1051, 4294901760
    %v2300 = vsub.f32 %v1051, %v2299
    %v2301 = vand.u32 %v2300, 4294901760
    %v2302 = vsub.f32 %v2300, %v2301
    %v2303 = vand.u32 %v2302, 4294901760
    %2304 = vmatpush1.msra.mxu0 %v2303
    %2305 = vmatprep.subr.mxu0 0.0
    %v2306 = vand.u32 %v1052, 4294901760
    %v2307 = vsub.f32 %v1052, %v2306
    %v2308 = vand.u32 %v2307, 4294901760
    %v2309 = vsub.f32 %v2307, %v2308
    %v2310 = vand.u32 %v2309, 4294901760
    %2311 = vmatpush1.msra.mxu0 %v2310
    %2312 = vmatprep.subr.mxu0 0.0
    %v2313 = vand.u32 %v1053, 4294901760
    %v2314 = vsub.f32 %v1053, %v2313
    %v2315 = vand.u32 %v2314, 4294901760
    %v2316 = vsub.f32 %v2314, %v2315
    %v2317 = vand.u32 %v2316, 4294901760
    %2318 = vmatpush1.msra.mxu0 %v2317
    %2319 = vmatprep.subr.mxu0 0.0
    %v2320 = vand.u32 %v1054, 4294901760
    %v2321 = vsub.f32 %v1054, %v2320
    %v2322 = vand.u32 %v2321, 4294901760
    %v2323 = vsub.f32 %v2321, %v2322
    %v2324 = vand.u32 %v2323, 4294901760
    %2325 = vmatpush1.msra.mxu0 %v2324
    %2326 = vmatprep.subr.mxu0 0.0
    %v2327 = vand.u32 %v1055, 4294901760
    %v2328 = vsub.f32 %v1055, %v2327
    %v2329 = vand.u32 %v2328, 4294901760
    %v2330 = vsub.f32 %v2328, %v2329
    %v2331 = vand.u32 %v2330, 4294901760
    %2332 = vmatpush1.msra.mxu0 %v2331
    %2333 = vmatprep.subr.mxu0 0.0
    %v2334 = vand.u32 %v1056, 4294901760
    %v2335 = vsub.f32 %v1056, %v2334
    %v2336 = vand.u32 %v2335, 4294901760
    %v2337 = vsub.f32 %v2335, %v2336
    %v2338 = vand.u32 %v2337, 4294901760
    %2339 = vmatpush1.msra.mxu0 %v2338
    %2340 = vmatprep.subr.mxu0 0.0
    %v2341 = vand.u32 %v1057, 4294901760
    %v2342 = vsub.f32 %v1057, %v2341
    %v2343 = vand.u32 %v2342, 4294901760
    %v2344 = vsub.f32 %v2342, %v2343
    %v2345 = vand.u32 %v2344, 4294901760
    %2346 = vmatpush1.msra.mxu0 %v2345
    %2347 = vmatprep.subr.mxu0 0.0
    %v2348 = vand.u32 %v1058, 4294901760
    %v2349 = vsub.f32 %v1058, %v2348
    %v2350 = vand.u32 %v2349, 4294901760
    %v2351 = vsub.f32 %v2349, %v2350
    %v2352 = vand.u32 %v2351, 4294901760
    %2353 = vmatpush1.msra.mxu0 %v2352
    %2354 = vmatprep.subr.mxu0 0.0
    %v2355 = vand.u32 %v1059, 4294901760
    %v2356 = vsub.f32 %v1059, %v2355
    %v2357 = vand.u32 %v2356, 4294901760
    %v2358 = vsub.f32 %v2356, %v2357
    %v2359 = vand.u32 %v2358, 4294901760
    %2360 = vmatpush1.msra.mxu0 %v2359
    %2361 = vmatprep.subr.mxu0 0.0
    %v2362 = vand.u32 %v1060, 4294901760
    %v2363 = vsub.f32 %v1060, %v2362
    %v2364 = vand.u32 %v2363, 4294901760
    %v2365 = vsub.f32 %v2363, %v2364
    %v2366 = vand.u32 %v2365, 4294901760
    %2367 = vmatpush1.msra.mxu0 %v2366
    %2368 = vmatprep.subr.mxu0 0.0
    %v2369 = vand.u32 %v1061, 4294901760
    %v2370 = vsub.f32 %v1061, %v2369
    %v2371 = vand.u32 %v2370, 4294901760
    %v2372 = vsub.f32 %v2370, %v2371
    %v2373 = vand.u32 %v2372, 4294901760
    %2374 = vmatpush1.msra.mxu0 %v2373
    %2375 = vmatprep.subr.mxu0 0.0
    %v2376 = vand.u32 %v1062, 4294901760
    %v2377 = vsub.f32 %v1062, %v2376
    %v2378 = vand.u32 %v2377, 4294901760
    %v2379 = vsub.f32 %v2377, %v2378
    %v2380 = vand.u32 %v2379, 4294901760
    %2381 = vmatpush1.msra.mxu0 %v2380
    %2382 = vmatprep.subr.mxu0 0.0
    %v2383 = vand.u32 %v1063, 4294901760
    %v2384 = vsub.f32 %v1063, %v2383
    %v2385 = vand.u32 %v2384, 4294901760
    %v2386 = vsub.f32 %v2384, %v2385
    %v2387 = vand.u32 %v2386, 4294901760
    %2388 = vmatpush1.msra.mxu0 %v2387
    %2389 = vmatprep.subr.mxu0 0.0
    %v2390 = vand.u32 %v1064, 4294901760
    %v2391 = vsub.f32 %v1064, %v2390
    %v2392 = vand.u32 %v2391, 4294901760
    %v2393 = vsub.f32 %v2391, %v2392
    %v2394 = vand.u32 %v2393, 4294901760
    %2395 = vmatpush1.msra.mxu0 %v2394
    %2396 = vmatprep.subr.mxu0 0.0
    %v2397 = vand.u32 %v1065, 4294901760
    %v2398 = vsub.f32 %v1065, %v2397
    %v2399 = vand.u32 %v2398, 4294901760
    %v2400 = vsub.f32 %v2398, %v2399
    %v2401 = vand.u32 %v2400, 4294901760
    %2402 = vmatpush1.msra.mxu0 %v2401
    %2403 = vmatprep.subr.mxu0 0.0
    %v2404 = vand.u32 %v1066, 4294901760
    %v2405 = vsub.f32 %v1066, %v2404
    %v2406 = vand.u32 %v2405, 4294901760
    %v2407 = vsub.f32 %v2405, %v2406
    %v2408 = vand.u32 %v2407, 4294901760
    %2409 = vmatpush1.msra.mxu0 %v2408
    %2410 = vmatprep.subr.mxu0 0.0
    %v2411 = vand.u32 %v1067, 4294901760
    %v2412 = vsub.f32 %v1067, %v2411
    %v2413 = vand.u32 %v2412, 4294901760
    %v2414 = vsub.f32 %v2412, %v2413
    %v2415 = vand.u32 %v2414, 4294901760
    %2416 = vmatpush1.msra.mxu0 %v2415
    %2417 = vmatprep.subr.mxu0 0.0
    %v2418 = vand.u32 %v1068, 4294901760
    %v2419 = vsub.f32 %v1068, %v2418
    %v2420 = vand.u32 %v2419, 4294901760
    %v2421 = vsub.f32 %v2419, %v2420
    %v2422 = vand.u32 %v2421, 4294901760
    %2423 = vmatpush1.msra.mxu0 %v2422
    %2424 = vmatprep.subr.mxu0 0.0
    %v2425 = vand.u32 %v1069, 4294901760
    %v2426 = vsub.f32 %v1069, %v2425
    %v2427 = vand.u32 %v2426, 4294901760
    %v2428 = vsub.f32 %v2426, %v2427
    %v2429 = vand.u32 %v2428, 4294901760
    %2430 = vmatpush1.msra.mxu0 %v2429
    %2431 = vmatprep.subr.mxu0 0.0
    %v2432 = vand.u32 %v1070, 4294901760
    %v2433 = vsub.f32 %v1070, %v2432
    %v2434 = vand.u32 %v2433, 4294901760
    %v2435 = vsub.f32 %v2433, %v2434
    %v2436 = vand.u32 %v2435, 4294901760
    %2437 = vmatpush1.msra.mxu0 %v2436
    %2438 = vmatprep.subr.mxu0 0.0
    %v2439 = vand.u32 %v1071, 4294901760
    %v2440 = vsub.f32 %v1071, %v2439
    %v2441 = vand.u32 %v2440, 4294901760
    %v2442 = vsub.f32 %v2440, %v2441
    %v2443 = vand.u32 %v2442, 4294901760
    %2444 = vmatpush1.msra.mxu0 %v2443
    %2445 = vmatprep.subr.mxu0 0.0
    %v2446 = vand.u32 %v1072, 4294901760
    %v2447 = vsub.f32 %v1072, %v2446
    %v2448 = vand.u32 %v2447, 4294901760
    %v2449 = vsub.f32 %v2447, %v2448
    %v2450 = vand.u32 %v2449, 4294901760
    %2451 = vmatpush1.msra.mxu0 %v2450
    %2452 = vmatprep.subr.mxu0 0.0
    %v2453 = vand.u32 %v1073, 4294901760
    %v2454 = vsub.f32 %v1073, %v2453
    %v2455 = vand.u32 %v2454, 4294901760
    %v2456 = vsub.f32 %v2454, %v2455
    %v2457 = vand.u32 %v2456, 4294901760
    %2458 = vmatpush1.msra.mxu0 %v2457
    %2459 = vmatprep.subr.mxu0 0.0
    %v2460 = vand.u32 %v1074, 4294901760
    %v2461 = vsub.f32 %v1074, %v2460
    %v2462 = vand.u32 %v2461, 4294901760
    %v2463 = vsub.f32 %v2461, %v2462
    %v2464 = vand.u32 %v2463, 4294901760
    %2465 = vmatpush1.msra.mxu0 %v2464
    %2466 = vmatprep.subr.mxu0 0.0
    %v2467 = vand.u32 %v1075, 4294901760
    %v2468 = vsub.f32 %v1075, %v2467
    %v2469 = vand.u32 %v2468, 4294901760
    %v2470 = vsub.f32 %v2468, %v2469
    %v2471 = vand.u32 %v2470, 4294901760
    %2472 = vmatpush1.msra.mxu0 %v2471
    %2473 = vmatprep.subr.mxu0 0.0
    %v2474 = vand.u32 %v1076, 4294901760
    %v2475 = vsub.f32 %v1076, %v2474
    %v2476 = vand.u32 %v2475, 4294901760
    %v2477 = vsub.f32 %v2475, %v2476
    %v2478 = vand.u32 %v2477, 4294901760
    %2479 = vmatpush1.msra.mxu0 %v2478
    %2480 = vmatprep.subr.mxu0 0.0
    %v2481 = vand.u32 %v1077, 4294901760
    %v2482 = vsub.f32 %v1077, %v2481
    %v2483 = vand.u32 %v2482, 4294901760
    %v2484 = vsub.f32 %v2482, %v2483
    %v2485 = vand.u32 %v2484, 4294901760
    %2486 = vmatpush1.msra.mxu0 %v2485
    %2487 = vmatprep.subr.mxu0 0.0
    %v2488 = vand.u32 %v1078, 4294901760
    %v2489 = vsub.f32 %v1078, %v2488
    %v2490 = vand.u32 %v2489, 4294901760
    %v2491 = vsub.f32 %v2489, %v2490
    %v2492 = vand.u32 %v2491, 4294901760
    %2493 = vmatpush1.msra.mxu0 %v2492
    %2494 = vmatprep.subr.mxu0 0.0
    %v2495 = vand.u32 %v1079, 4294901760
    %v2496 = vsub.f32 %v1079, %v2495
    %v2497 = vand.u32 %v2496, 4294901760
    %v2498 = vsub.f32 %v2496, %v2497
    %v2499 = vand.u32 %v2498, 4294901760
    %2500 = vmatpush1.msra.mxu0 %v2499
    %2501 = vmatprep.subr.mxu0 0.0
    %v2502 = vand.u32 %v1080, 4294901760
    %v2503 = vsub.f32 %v1080, %v2502
    %v2504 = vand.u32 %v2503, 4294901760
    %v2505 = vsub.f32 %v2503, %v2504
    %v2506 = vand.u32 %v2505, 4294901760
    %2507 = vmatpush1.msra.mxu0 %v2506
    %v2508 = vand.u32 %v1013, 4294901760
    %2509 = vmatprep.mubr.f32.mxu0 %v2508
    %v2510 = vand.u32 %v1009, 4294901760
    %2511 = vmatmul.mubr.f32.gmra.mrb[0].mxu0 %v2510
    %v2512 = vpop.f32.mrb[0].mxu0
    %v2513 = vadd.f32 %v2236, %v2512
    %v2514 = vpop.f32.mrb[0].mxu0
    %v2515 = vand.u32 %v1014, 4294901760
    %2516 = vmatprep.mubr.f32.mxu0 %v2515
    %v2517 = vand.u32 %v1010, 4294901760
    %2518 = vmatmul.mubr.f32.gmra.mrb[0].mxu0 %v2517
    %v2519 = vpop.f32.mrb[0].mxu0
    %v2520 = vadd.f32 %v2251, %v2519
    %v2521 = vpop.f32.mrb[0].mxu0
    %v2522 = vand.u32 %v1015, 4294901760
    %2523 = vmatprep.mubr.f32.mxu0 %v2522
    %v2524 = vand.u32 %v1011, 4294901760
    %2525 = vmatmul.mubr.f32.gmra.mrb[0].mxu0 %v2524
    %v2526 = vpop.f32.mrb[0].mxu0
    %v2527 = vadd.f32 %v2266, %v2526
    %v2528 = vpop.f32.mrb[0].mxu0
    %v2529 = vand.u32 %v1016, 4294901760
    %2530 = vmatprep.mubr.f32.mxu0 %v2529
    %v2531 = vand.u32 %v1012, 4294901760
    %2532 = vmatmul.mubr.f32.gmra.mrb[0].mxu0 %v2531
    %v2533 = vpop.f32.mrb[0].mxu0
    %v2534 = vadd.f32 %v2281, %v2533
    %v2535 = vpop.f32.mrb[0].mxu0
    %2536 = vdwg.mxu0
    %2537 = vmatprep.subr.mxu0 0.0
    %v2538 = vand.u32 %v1049, 4294901760
    %v2539 = vsub.f32 %v1049, %v2538
    %2540 = vmatpush1.msra.mxu0 %v2539
    %2541 = vmatprep.subr.mxu0 0.0
    %v2542 = vand.u32 %v1050, 4294901760
    %v2543 = vsub.f32 %v1050, %v2542
    %2544 = vmatpush1.msra.mxu0 %v2543
    %2545 = vmatprep.subr.mxu0 0.0
    %v2546 = vand.u32 %v1051, 4294901760
    %v2547 = vsub.f32 %v1051, %v2546
    %2548 = vmatpush1.msra.mxu0 %v2547
    %2549 = vmatprep.subr.mxu0 0.0
    %v2550 = vand.u32 %v1052, 4294901760
    %v2551 = vsub.f32 %v1052, %v2550
    %2552 = vmatpush1.msra.mxu0 %v2551
    %2553 = vmatprep.subr.mxu0 0.0
    %v2554 = vand.u32 %v1053, 4294901760
    %v2555 = vsub.f32 %v1053, %v2554
    %2556 = vmatpush1.msra.mxu0 %v2555
    %2557 = vmatprep.subr.mxu0 0.0
    %v2558 = vand.u32 %v1054, 4294901760
    %v2559 = vsub.f32 %v1054, %v2558
    %2560 = vmatpush1.msra.mxu0 %v2559
    %2561 = vmatprep.subr.mxu0 0.0
    %v2562 = vand.u32 %v1055, 4294901760
    %v2563 = vsub.f32 %v1055, %v2562
    %2564 = vmatpush1.msra.mxu0 %v2563
    %2565 = vmatprep.subr.mxu0 0.0
    %v2566 = vand.u32 %v1056, 4294901760
    %v2567 = vsub.f32 %v1056, %v2566
    %2568 = vmatpush1.msra.mxu0 %v2567
    %2569 = vmatprep.subr.mxu0 0.0
    %v2570 = vand.u32 %v1057, 4294901760
    %v2571 = vsub.f32 %v1057, %v2570
    %2572 = vmatpush1.msra.mxu0 %v2571
    %2573 = vmatprep.subr.mxu0 0.0
    %v2574 = vand.u32 %v1058, 4294901760
    %v2575 = vsub.f32 %v1058, %v2574
    %2576 = vmatpush1.msra.mxu0 %v2575
    %2577 = vmatprep.subr.mxu0 0.0
    %v2578 = vand.u32 %v1059, 4294901760
    %v2579 = vsub.f32 %v1059, %v2578
    %2580 = vmatpush1.msra.mxu0 %v2579
    %2581 = vmatprep.subr.mxu0 0.0
    %v2582 = vand.u32 %v1060, 4294901760
    %v2583 = vsub.f32 %v1060, %v2582
    %2584 = vmatpush1.msra.mxu0 %v2583
    %2585 = vmatprep.subr.mxu0 0.0
    %v2586 = vand.u32 %v1061, 4294901760
    %v2587 = vsub.f32 %v1061, %v2586
    %2588 = vmatpush1.msra.mxu0 %v2587
    %2589 = vmatprep.subr.mxu0 0.0
    %v2590 = vand.u32 %v1062, 4294901760
    %v2591 = vsub.f32 %v1062, %v2590
    %2592 = vmatpush1.msra.mxu0 %v2591
    %2593 = vmatprep.subr.mxu0 0.0
    %v2594 = vand.u32 %v1063, 4294901760
    %v2595 = vsub.f32 %v1063, %v2594
    %2596 = vmatpush1.msra.mxu0 %v2595
    %2597 = vmatprep.subr.mxu0 0.0
    %v2598 = vand.u32 %v1064, 4294901760
    %v2599 = vsub.f32 %v1064, %v2598
    %2600 = vmatpush1.msra.mxu0 %v2599
    %2601 = vmatprep.subr.mxu0 0.0
    %v2602 = vand.u32 %v1065, 4294901760
    %v2603 = vsub.f32 %v1065, %v2602
    %2604 = vmatpush1.msra.mxu0 %v2603
    %2605 = vmatprep.subr.mxu0 0.0
    %v2606 = vand.u32 %v1066, 4294901760
    %v2607 = vsub.f32 %v1066, %v2606
    %2608 = vmatpush1.msra.mxu0 %v2607
    %2609 = vmatprep.subr.mxu0 0.0
    %v2610 = vand.u32 %v1067, 4294901760
    %v2611 = vsub.f32 %v1067, %v2610
    %2612 = vmatpush1.msra.mxu0 %v2611
    %2613 = vmatprep.subr.mxu0 0.0
    %v2614 = vand.u32 %v1068, 4294901760
    %v2615 = vsub.f32 %v1068, %v2614
    %2616 = vmatpush1.msra.mxu0 %v2615
    %2617 = vmatprep.subr.mxu0 0.0
    %v2618 = vand.u32 %v1069, 4294901760
    %v2619 = vsub.f32 %v1069, %v2618
    %2620 = vmatpush1.msra.mxu0 %v2619
    %2621 = vmatprep.subr.mxu0 0.0
    %v2622 = vand.u32 %v1070, 4294901760
    %v2623 = vsub.f32 %v1070, %v2622
    %2624 = vmatpush1.msra.mxu0 %v2623
    %2625 = vmatprep.subr.mxu0 0.0
    %v2626 = vand.u32 %v1071, 4294901760
    %v2627 = vsub.f32 %v1071, %v2626
    %2628 = vmatpush1.msra.mxu0 %v2627
    %2629 = vmatprep.subr.mxu0 0.0
    %v2630 = vand.u32 %v1072, 4294901760
    %v2631 = vsub.f32 %v1072, %v2630
    %2632 = vmatpush1.msra.mxu0 %v2631
    %2633 = vmatprep.subr.mxu0 0.0
    %v2634 = vand.u32 %v1073, 4294901760
    %v2635 = vsub.f32 %v1073, %v2634
    %2636 = vmatpush1.msra.mxu0 %v2635
    %2637 = vmatprep.subr.mxu0 0.0
    %v2638 = vand.u32 %v1074, 4294901760
    %v2639 = vsub.f32 %v1074, %v2638
    %2640 = vmatpush1.msra.mxu0 %v2639
    %2641 = vmatprep.subr.mxu0 0.0
    %v2642 = vand.u32 %v1075, 4294901760
    %v2643 = vsub.f32 %v1075, %v2642
    %2644 = vmatpush1.msra.mxu0 %v2643
    %2645 = vmatprep.subr.mxu0 0.0
    %v2646 = vand.u32 %v1076, 4294901760
    %v2647 = vsub.f32 %v1076, %v2646
    %2648 = vmatpush1.msra.mxu0 %v2647
    %2649 = vmatprep.subr.mxu0 0.0
    %v2650 = vand.u32 %v1077, 4294901760
    %v2651 = vsub.f32 %v1077, %v2650
    %2652 = vmatpush1.msra.mxu0 %v2651
    %2653 = vmatprep.subr.mxu0 0.0
    %v2654 = vand.u32 %v1078, 4294901760
    %v2655 = vsub.f32 %v1078, %v2654
    %2656 = vmatpush1.msra.mxu0 %v2655
    %2657 = vmatprep.subr.mxu0 0.0
    %v2658 = vand.u32 %v1079, 4294901760
    %v2659 = vsub.f32 %v1079, %v2658
    %2660 = vmatpush1.msra.mxu0 %v2659
    %2661 = vmatprep.subr.mxu0 0.0
    %v2662 = vand.u32 %v1080, 4294901760
    %v2663 = vsub.f32 %v1080, %v2662
    %2664 = vmatpush1.msra.mxu0 %v2663
    %v2665 = vand.u32 %v1013, 4294901760
    %v2666 = vsub.f32 %v1013, %v2665
    %2667 = vmatprep.mubr.f32.mxu0 %v2666
    %v2668 = vand.u32 %v1009, 4294901760
    %v2669 = vsub.f32 %v1009, %v2668
    %2670 = vmatmul.mubr.f32.gmra.mrb[0].mxu0 %v2669
    %v2671 = vpop.f32.mrb[0].mxu0
    %v2672 = vadd.f32 %v2513, %v2671
    %v2673 = vpop.f32.mrb[0].mxu0
    %v2674 = vand.u32 %v1014, 4294901760
    %v2675 = vsub.f32 %v1014, %v2674
    %2676 = vmatprep.mubr.f32.mxu0 %v2675
    %v2677 = vand.u32 %v1010, 4294901760
    %v2678 = vsub.f32 %v1010, %v2677
    %2679 = vmatmul.mubr.f32.gmra.mrb[0].mxu0 %v2678
    %v2680 = vpop.f32.mrb[0].mxu0
    %v2681 = vadd.f32 %v2520, %v2680
    %v2682 = vpop.f32.mrb[0].mxu0
    %v2683 = vand.u32 %v1015, 4294901760
    %v2684 = vsub.f32 %v1015, %v2683
    %2685 = vmatprep.mubr.f32.mxu0 %v2684
    %v2686 = vand.u32 %v1011, 4294901760
    %v2687 = vsub.f32 %v1011, %v2686
    %2688 = vmatmul.mubr.f32.gmra.mrb[0].mxu0 %v2687
    %v2689 = vpop.f32.mrb[0].mxu0
    %v2690 = vadd.f32 %v2527, %v2689
    %v2691 = vpop.f32.mrb[0].mxu0
    %v2692 = vand.u32 %v1016, 4294901760
    %v2693 = vsub.f32 %v1016, %v2692
    %2694 = vmatprep.mubr.f32.mxu0 %v2693
    %v2695 = vand.u32 %v1012, 4294901760
    %v2696 = vsub.f32 %v1012, %v2695
    %2697 = vmatmul.mubr.f32.gmra.mrb[0].mxu0 %v2696
    %v2698 = vpop.f32.mrb[0].mxu0
    %v2699 = vadd.f32 %v2534, %v2698
    %v2700 = vpop.f32.mrb[0].mxu0
    %2701 = vdwg.mxu0
    %2702 = vmatprep.subr.mxu0 0.0
    %v2703 = vand.u32 %v1049, 4294901760
    %2704 = vmatpush1.msra.mxu0 %v2703
    %2705 = vmatprep.subr.mxu0 0.0
    %v2706 = vand.u32 %v1050, 4294901760
    %2707 = vmatpush1.msra.mxu0 %v2706
    %2708 = vmatprep.subr.mxu0 0.0
    %v2709 = vand.u32 %v1051, 4294901760
    %2710 = vmatpush1.msra.mxu0 %v2709
    %2711 = vmatprep.subr.mxu0 0.0
    %v2712 = vand.u32 %v1052, 4294901760
    %2713 = vmatpush1.msra.mxu0 %v2712
    %2714 = vmatprep.subr.mxu0 0.0
    %v2715 = vand.u32 %v1053, 4294901760
    %2716 = vmatpush1.msra.mxu0 %v2715
    %2717 = vmatprep.subr.mxu0 0.0
    %v2718 = vand.u32 %v1054, 4294901760
    %2719 = vmatpush1.msra.mxu0 %v2718
    %2720 = vmatprep.subr.mxu0 0.0
    %v2721 = vand.u32 %v1055, 4294901760
    %2722 = vmatpush1.msra.mxu0 %v2721
    %2723 = vmatprep.subr.mxu0 0.0
    %v2724 = vand.u32 %v1056, 4294901760
    %2725 = vmatpush1.msra.mxu0 %v2724
    %2726 = vmatprep.subr.mxu0 0.0
    %v2727 = vand.u32 %v1057, 4294901760
    %2728 = vmatpush1.msra.mxu0 %v2727
    %2729 = vmatprep.subr.mxu0 0.0
    %v2730 = vand.u32 %v1058, 4294901760
    %2731 = vmatpush1.msra.mxu0 %v2730
    %2732 = vmatprep.subr.mxu0 0.0
    %v2733 = vand.u32 %v1059, 4294901760
    %2734 = vmatpush1.msra.mxu0 %v2733
    %2735 = vmatprep.subr.mxu0 0.0
    %v2736 = vand.u32 %v1060, 4294901760
    %2737 = vmatpush1.msra.mxu0 %v2736
    %2738 = vmatprep.subr.mxu0 0.0
    %v2739 = vand.u32 %v1061, 4294901760
    %2740 = vmatpush1.msra.mxu0 %v2739
    %2741 = vmatprep.subr.mxu0 0.0
    %v2742 = vand.u32 %v1062, 4294901760
    %2743 = vmatpush1.msra.mxu0 %v2742
    %2744 = vmatprep.subr.mxu0 0.0
    %v2745 = vand.u32 %v1063, 4294901760
    %2746 = vmatpush1.msra.mxu0 %v2745
    %2747 = vmatprep.subr.mxu0 0.0
    %v2748 = vand.u32 %v1064, 4294901760
    %2749 = vmatpush1.msra.mxu0 %v2748
    %2750 = vmatprep.subr.mxu0 0.0
    %v2751 = vand.u32 %v1065, 4294901760
    %2752 = vmatpush1.msra.mxu0 %v2751
    %2753 = vmatprep.subr.mxu0 0.0
    %v2754 = vand.u32 %v1066, 4294901760
    %2755 = vmatpush1.msra.mxu0 %v2754
    %2756 = vmatprep.subr.mxu0 0.0
    %v2757 = vand.u32 %v1067, 4294901760
    %2758 = vmatpush1.msra.mxu0 %v2757
    %2759 = vmatprep.subr.mxu0 0.0
    %v2760 = vand.u32 %v1068, 4294901760
    %2761 = vmatpush1.msra.mxu0 %v2760
    %2762 = vmatprep.subr.mxu0 0.0
    %v2763 = vand.u32 %v1069, 4294901760
    %2764 = vmatpush1.msra.mxu0 %v2763
    %2765 = vmatprep.subr.mxu0 0.0
    %v2766 = vand.u32 %v1070, 4294901760
    %2767 = vmatpush1.msra.mxu0 %v2766
    %2768 = vmatprep.subr.mxu0 0.0
    %v2769 = vand.u32 %v1071, 4294901760
    %2770 = vmatpush1.msra.mxu0 %v2769
    %2771 = vmatprep.subr.mxu0 0.0
    %v2772 = vand.u32 %v1072, 4294901760
    %2773 = vmatpush1.msra.mxu0 %v2772
    %2774 = vmatprep.subr.mxu0 0.0
    %v2775 = vand.u32 %v1073, 4294901760
    %2776 = vmatpush1.msra.mxu0 %v2775
    %2777 = vmatprep.subr.mxu0 0.0
    %v2778 = vand.u32 %v1074, 4294901760
    %2779 = vmatpush1.msra.mxu0 %v2778
    %2780 = vmatprep.subr.mxu0 0.0
    %v2781 = vand.u32 %v1075, 4294901760
    %2782 = vmatpush1.msra.mxu0 %v2781
    %2783 = vmatprep.subr.mxu0 0.0
    %v2784 = vand.u32 %v1076, 4294901760
    %2785 = vmatpush1.msra.mxu0 %v2784
    %2786 = vmatprep.subr.mxu0 0.0
    %v2787 = vand.u32 %v1077, 4294901760
    %2788 = vmatpush1.msra.mxu0 %v2787
    %2789 = vmatprep.subr.mxu0 0.0
    %v2790 = vand.u32 %v1078, 4294901760
    %2791 = vmatpush1.msra.mxu0 %v2790
    %2792 = vmatprep.subr.mxu0 0.0
    %v2793 = vand.u32 %v1079, 4294901760
    %2794 = vmatpush1.msra.mxu0 %v2793
    %2795 = vmatprep.subr.mxu0 0.0
    %v2796 = vand.u32 %v1080, 4294901760
    %2797 = vmatpush1.msra.mxu0 %v2796
    %v2798 = vand.u32 %v1013, 4294901760
    %v2799 = vsub.f32 %v1013, %v2798
    %v2800 = vand.u32 %v2799, 4294901760
    %2801 = vmatprep.mubr.f32.mxu0 %v2800
    %v2802 = vand.u32 %v1009, 4294901760
    %v2803 = vsub.f32 %v1009, %v2802
    %v2804 = vand.u32 %v2803, 4294901760
    %2805 = vmatmul.mubr.f32.gmra.mrb[0].mxu0 %v2804
    %v2806 = vpop.f32.mrb[0].mxu0
    %v2807 = vadd.f32 %v2672, %v2806
    %v2808 = vpop.f32.mrb[0].mxu0
    %v2809 = vand.u32 %v1014, 4294901760
    %v2810 = vsub.f32 %v1014, %v2809
    %v2811 = vand.u32 %v2810, 4294901760
    %2812 = vmatprep.mubr.f32.mxu0 %v2811
    %v2813 = vand.u32 %v1010, 4294901760
    %v2814 = vsub.f32 %v1010, %v2813
    %v2815 = vand.u32 %v2814, 4294901760
    %2816 = vmatmul.mubr.f32.gmra.mrb[0].mxu0 %v2815
    %v2817 = vpop.f32.mrb[0].mxu0
    %v2818 = vadd.f32 %v2681, %v2817
    %v2819 = vpop.f32.mrb[0].mxu0
    %v2820 = vand.u32 %v1015, 4294901760
    %v2821 = vsub.f32 %v1015, %v2820
    %v2822 = vand.u32 %v2821, 4294901760
    %2823 = vmatprep.mubr.f32.mxu0 %v2822
    %v2824 = vand.u32 %v1011, 4294901760
    %v2825 = vsub.f32 %v1011, %v2824
    %v2826 = vand.u32 %v2825, 4294901760
    %2827 = vmatmul.mubr.f32.gmra.mrb[0].mxu0 %v2826
    %v2828 = vpop.f32.mrb[0].mxu0
    %v2829 = vadd.f32 %v2690, %v2828
    %v2830 = vpop.f32.mrb[0].mxu0
    %v2831 = vand.u32 %v1016, 4294901760
    %v2832 = vsub.f32 %v1016, %v2831
    %v2833 = vand.u32 %v2832, 4294901760
    %2834 = vmatprep.mubr.f32.mxu0 %v2833
    %v2835 = vand.u32 %v1012, 4294901760
    %v2836 = vsub.f32 %v1012, %v2835
    %v2837 = vand.u32 %v2836, 4294901760
    %2838 = vmatmul.mubr.f32.gmra.mrb[0].mxu0 %v2837
    %v2839 = vpop.f32.mrb[0].mxu0
    %v2840 = vadd.f32 %v2699, %v2839
    %v2841 = vpop.f32.mrb[0].mxu0
    %2842 = vdwg.mxu0
    %2843 = vmatprep.subr.mxu0 0.0
    %v2844 = vand.u32 %v1049, 4294901760
    %v2845 = vsub.f32 %v1049, %v2844
    %v2846 = vand.u32 %v2845, 4294901760
    %2847 = vmatpush1.msra.mxu0 %v2846
    %2848 = vmatprep.subr.mxu0 0.0
    %v2849 = vand.u32 %v1050, 4294901760
    %v2850 = vsub.f32 %v1050, %v2849
    %v2851 = vand.u32 %v2850, 4294901760
    %2852 = vmatpush1.msra.mxu0 %v2851
    %2853 = vmatprep.subr.mxu0 0.0
    %v2854 = vand.u32 %v1051, 4294901760
    %v2855 = vsub.f32 %v1051, %v2854
    %v2856 = vand.u32 %v2855, 4294901760
    %2857 = vmatpush1.msra.mxu0 %v2856
    %2858 = vmatprep.subr.mxu0 0.0
    %v2859 = vand.u32 %v1052, 4294901760
    %v2860 = vsub.f32 %v1052, %v2859
    %v2861 = vand.u32 %v2860, 4294901760
    %2862 = vmatpush1.msra.mxu0 %v2861
    %2863 = vmatprep.subr.mxu0 0.0
    %v2864 = vand.u32 %v1053, 4294901760
    %v2865 = vsub.f32 %v1053, %v2864
    %v2866 = vand.u32 %v2865, 4294901760
    %2867 = vmatpush1.msra.mxu0 %v2866
    %2868 = vmatprep.subr.mxu0 0.0
    %v2869 = vand.u32 %v1054, 4294901760
    %v2870 = vsub.f32 %v1054, %v2869
    %v2871 = vand.u32 %v2870, 4294901760
    %2872 = vmatpush1.msra.mxu0 %v2871
    %2873 = vmatprep.subr.mxu0 0.0
    %v2874 = vand.u32 %v1055, 4294901760
    %v2875 = vsub.f32 %v1055, %v2874
    %v2876 = vand.u32 %v2875, 4294901760
    %2877 = vmatpush1.msra.mxu0 %v2876
    %2878 = vmatprep.subr.mxu0 0.0
    %v2879 = vand.u32 %v1056, 4294901760
    %v2880 = vsub.f32 %v1056, %v2879
    %v2881 = vand.u32 %v2880, 4294901760
    %2882 = vmatpush1.msra.mxu0 %v2881
    %2883 = vmatprep.subr.mxu0 0.0
    %v2884 = vand.u32 %v1057, 4294901760
    %v2885 = vsub.f32 %v1057, %v2884
    %v2886 = vand.u32 %v2885, 4294901760
    %2887 = vmatpush1.msra.mxu0 %v2886
    %2888 = vmatprep.subr.mxu0 0.0
    %v2889 = vand.u32 %v1058, 4294901760
    %v2890 = vsub.f32 %v1058, %v2889
    %v2891 = vand.u32 %v2890, 4294901760
    %2892 = vmatpush1.msra.mxu0 %v2891
    %2893 = vmatprep.subr.mxu0 0.0
    %v2894 = vand.u32 %v1059, 4294901760
    %v2895 = vsub.f32 %v1059, %v2894
    %v2896 = vand.u32 %v2895, 4294901760
    %2897 = vmatpush1.msra.mxu0 %v2896
    %2898 = vmatprep.subr.mxu0 0.0
    %v2899 = vand.u32 %v1060, 4294901760
    %v2900 = vsub.f32 %v1060, %v2899
    %v2901 = vand.u32 %v2900, 4294901760
    %2902 = vmatpush1.msra.mxu0 %v2901
    %2903 = vmatprep.subr.mxu0 0.0
    %v2904 = vand.u32 %v1061, 4294901760
    %v2905 = vsub.f32 %v1061, %v2904
    %v2906 = vand.u32 %v2905, 4294901760
    %2907 = vmatpush1.msra.mxu0 %v2906
    %2908 = vmatprep.subr.mxu0 0.0
    %v2909 = vand.u32 %v1062, 4294901760
    %v2910 = vsub.f32 %v1062, %v2909
    %v2911 = vand.u32 %v2910, 4294901760
    %2912 = vmatpush1.msra.mxu0 %v2911
    %2913 = vmatprep.subr.mxu0 0.0
    %v2914 = vand.u32 %v1063, 4294901760
    %v2915 = vsub.f32 %v1063, %v2914
    %v2916 = vand.u32 %v2915, 4294901760
    %2917 = vmatpush1.msra.mxu0 %v2916
    %2918 = vmatprep.subr.mxu0 0.0
    %v2919 = vand.u32 %v1064, 4294901760
    %v2920 = vsub.f32 %v1064, %v2919
    %v2921 = vand.u32 %v2920, 4294901760
    %2922 = vmatpush1.msra.mxu0 %v2921
    %2923 = vmatprep.subr.mxu0 0.0
    %v2924 = vand.u32 %v1065, 4294901760
    %v2925 = vsub.f32 %v1065, %v2924
    %v2926 = vand.u32 %v2925, 4294901760
    %2927 = vmatpush1.msra.mxu0 %v2926
    %2928 = vmatprep.subr.mxu0 0.0
    %v2929 = vand.u32 %v1066, 4294901760
    %v2930 = vsub.f32 %v1066, %v2929
    %v2931 = vand.u32 %v2930, 4294901760
    %2932 = vmatpush1.msra.mxu0 %v2931
    %2933 = vmatprep.subr.mxu0 0.0
    %v2934 = vand.u32 %v1067, 4294901760
    %v2935 = vsub.f32 %v1067, %v2934
    %v2936 = vand.u32 %v2935, 4294901760
    %2937 = vmatpush1.msra.mxu0 %v2936
    %2938 = vmatprep.subr.mxu0 0.0
    %v2939 = vand.u32 %v1068, 4294901760
    %v2940 = vsub.f32 %v1068, %v2939
    %v2941 = vand.u32 %v2940, 4294901760
    %2942 = vmatpush1.msra.mxu0 %v2941
    %2943 = vmatprep.subr.mxu0 0.0
    %v2944 = vand.u32 %v1069, 4294901760
    %v2945 = vsub.f32 %v1069, %v2944
    %v2946 = vand.u32 %v2945, 4294901760
    %2947 = vmatpush1.msra.mxu0 %v2946
    %2948 = vmatprep.subr.mxu0 0.0
    %v2949 = vand.u32 %v1070, 4294901760
    %v2950 = vsub.f32 %v1070, %v2949
    %v2951 = vand.u32 %v2950, 4294901760
    %2952 = vmatpush1.msra.mxu0 %v2951
    %2953 = vmatprep.subr.mxu0 0.0
    %v2954 = vand.u32 %v1071, 4294901760
    %v2955 = vsub.f32 %v1071, %v2954
    %v2956 = vand.u32 %v2955, 4294901760
    %2957 = vmatpush1.msra.mxu0 %v2956
    %2958 = vmatprep.subr.mxu0 0.0
    %v2959 = vand.u32 %v1072, 4294901760
    %v2960 = vsub.f32 %v1072, %v2959
    %v2961 = vand.u32 %v2960, 4294901760
    %2962 = vmatpush1.msra.mxu0 %v2961
    %2963 = vmatprep.subr.mxu0 0.0
    %v2964 = vand.u32 %v1073, 4294901760
    %v2965 = vsub.f32 %v1073, %v2964
    %v2966 = vand.u32 %v2965, 4294901760
    %2967 = vmatpush1.msra.mxu0 %v2966
    %2968 = vmatprep.subr.mxu0 0.0
    %v2969 = vand.u32 %v1074, 4294901760
    %v2970 = vsub.f32 %v1074, %v2969
    %v2971 = vand.u32 %v2970, 4294901760
    %2972 = vmatpush1.msra.mxu0 %v2971
    %2973 = vmatprep.subr.mxu0 0.0
    %v2974 = vand.u32 %v1075, 4294901760
    %v2975 = vsub.f32 %v1075, %v2974
    %v2976 = vand.u32 %v2975, 4294901760
    %2977 = vmatpush1.msra.mxu0 %v2976
    %2978 = vmatprep.subr.mxu0 0.0
    %v2979 = vand.u32 %v1076, 4294901760
    %v2980 = vsub.f32 %v1076, %v2979
    %v2981 = vand.u32 %v2980, 4294901760
    %2982 = vmatpush1.msra.mxu0 %v2981
    %2983 = vmatprep.subr.mxu0 0.0
    %v2984 = vand.u32 %v1077, 4294901760
    %v2985 = vsub.f32 %v1077, %v2984
    %v2986 = vand.u32 %v2985, 4294901760
    %2987 = vmatpush1.msra.mxu0 %v2986
    %2988 = vmatprep.subr.mxu0 0.0
    %v2989 = vand.u32 %v1078, 4294901760
    %v2990 = vsub.f32 %v1078, %v2989
    %v2991 = vand.u32 %v2990, 4294901760
    %2992 = vmatpush1.msra.mxu0 %v2991
    %2993 = vmatprep.subr.mxu0 0.0
    %v2994 = vand.u32 %v1079, 4294901760
    %v2995 = vsub.f32 %v1079, %v2994
    %v2996 = vand.u32 %v2995, 4294901760
    %2997 = vmatpush1.msra.mxu0 %v2996
    %2998 = vmatprep.subr.mxu0 0.0
    %v2999 = vand.u32 %v1080, 4294901760
    %v3000 = vsub.f32 %v1080, %v2999
    %v3001 = vand.u32 %v3000, 4294901760
    %3002 = vmatpush1.msra.mxu0 %v3001
    %v3003 = vand.u32 %v1013, 4294901760
    %3004 = vmatprep.mubr.f32.mxu0 %v3003
    %v3005 = vand.u32 %v1009, 4294901760
    %3006 = vmatmul.mubr.f32.gmra.mrb[0].mxu0 %v3005
    %v3007 = vpop.f32.mrb[0].mxu0
    %v3008 = vadd.f32 %v2807, %v3007
    %v3009 = vpop.f32.mrb[0].mxu0
    %v3010 = vand.u32 %v1014, 4294901760
    %3011 = vmatprep.mubr.f32.mxu0 %v3010
    %v3012 = vand.u32 %v1010, 4294901760
    %3013 = vmatmul.mubr.f32.gmra.mrb[0].mxu0 %v3012
    %v3014 = vpop.f32.mrb[0].mxu0
    %v3015 = vadd.f32 %v2818, %v3014
    %v3016 = vpop.f32.mrb[0].mxu0
    %v3017 = vand.u32 %v1015, 4294901760
    %3018 = vmatprep.mubr.f32.mxu0 %v3017
    %v3019 = vand.u32 %v1011, 4294901760
    %3020 = vmatmul.mubr.f32.gmra.mrb[0].mxu0 %v3019
    %v3021 = vpop.f32.mrb[0].mxu0
    %v3022 = vadd.f32 %v2829, %v3021
    %v3023 = vpop.f32.mrb[0].mxu0
    %v3024 = vand.u32 %v1016, 4294901760
    %3025 = vmatprep.mubr.f32.mxu0 %v3024
    %v3026 = vand.u32 %v1012, 4294901760
    %3027 = vmatmul.mubr.f32.gmra.mrb[0].mxu0 %v3026
    %v3028 = vpop.f32.mrb[0].mxu0
    %v3029 = vadd.f32 %v2840, %v3028
    %v3030 = vpop.f32.mrb[0].mxu0
    %3031 = vdwg.mxu0
    %3032 = vmatprep.subr.mxu0 0.0
    %v3033 = vand.u32 %v1049, 4294901760
    %3034 = vmatpush1.msra.mxu0 %v3033
    %3035 = vmatprep.subr.mxu0 0.0
    %v3036 = vand.u32 %v1050, 4294901760
    %3037 = vmatpush1.msra.mxu0 %v3036
    %3038 = vmatprep.subr.mxu0 0.0
    %v3039 = vand.u32 %v1051, 4294901760
    %3040 = vmatpush1.msra.mxu0 %v3039
    %3041 = vmatprep.subr.mxu0 0.0
    %v3042 = vand.u32 %v1052, 4294901760
    %3043 = vmatpush1.msra.mxu0 %v3042
    %3044 = vmatprep.subr.mxu0 0.0
    %v3045 = vand.u32 %v1053, 4294901760
    %3046 = vmatpush1.msra.mxu0 %v3045
    %3047 = vmatprep.subr.mxu0 0.0
    %v3048 = vand.u32 %v1054, 4294901760
    %3049 = vmatpush1.msra.mxu0 %v3048
    %3050 = vmatprep.subr.mxu0 0.0
    %v3051 = vand.u32 %v1055, 4294901760
    %3052 = vmatpush1.msra.mxu0 %v3051
    %3053 = vmatprep.subr.mxu0 0.0
    %v3054 = vand.u32 %v1056, 4294901760
    %3055 = vmatpush1.msra.mxu0 %v3054
    %3056 = vmatprep.subr.mxu0 0.0
    %v3057 = vand.u32 %v1057, 4294901760
    %3058 = vmatpush1.msra.mxu0 %v3057
    %3059 = vmatprep.subr.mxu0 0.0
    %v3060 = vand.u32 %v1058, 4294901760
    %3061 = vmatpush1.msra.mxu0 %v3060
    %3062 = vmatprep.subr.mxu0 0.0
    %v3063 = vand.u32 %v1059, 4294901760
    %3064 = vmatpush1.msra.mxu0 %v3063
    %3065 = vmatprep.subr.mxu0 0.0
    %v3066 = vand.u32 %v1060, 4294901760
    %3067 = vmatpush1.msra.mxu0 %v3066
    %3068 = vmatprep.subr.mxu0 0.0
    %v3069 = vand.u32 %v1061, 4294901760
    %3070 = vmatpush1.msra.mxu0 %v3069
    %3071 = vmatprep.subr.mxu0 0.0
    %v3072 = vand.u32 %v1062, 4294901760
    %3073 = vmatpush1.msra.mxu0 %v3072
    %3074 = vmatprep.subr.mxu0 0.0
    %v3075 = vand.u32 %v1063, 4294901760
    %3076 = vmatpush1.msra.mxu0 %v3075
    %3077 = vmatprep.subr.mxu0 0.0
    %v3078 = vand.u32 %v1064, 4294901760
    %3079 = vmatpush1.msra.mxu0 %v3078
    %3080 = vmatprep.subr.mxu0 0.0
    %v3081 = vand.u32 %v1065, 4294901760
    %3082 = vmatpush1.msra.mxu0 %v3081
    %3083 = vmatprep.subr.mxu0 0.0
    %v3084 = vand.u32 %v1066, 4294901760
    %3085 = vmatpush1.msra.mxu0 %v3084
    %3086 = vmatprep.subr.mxu0 0.0
    %v3087 = vand.u32 %v1067, 4294901760
    %3088 = vmatpush1.msra.mxu0 %v3087
    %3089 = vmatprep.subr.mxu0 0.0
    %v3090 = vand.u32 %v1068, 4294901760
    %3091 = vmatpush1.msra.mxu0 %v3090
    %3092 = vmatprep.subr.mxu0 0.0
    %v3093 = vand.u32 %v1069, 4294901760
    %3094 = vmatpush1.msra.mxu0 %v3093
    %3095 = vmatprep.subr.mxu0 0.0
    %v3096 = vand.u32 %v1070, 4294901760
    %3097 = vmatpush1.msra.mxu0 %v3096
    %3098 = vmatprep.subr.mxu0 0.0
    %v3099 = vand.u32 %v1071, 4294901760
    %3100 = vmatpush1.msra.mxu0 %v3099
    %3101 = vmatprep.subr.mxu0 0.0
    %v3102 = vand.u32 %v1072, 4294901760
    %3103 = vmatpush1.msra.mxu0 %v3102
    %3104 = vmatprep.subr.mxu0 0.0
    %v3105 = vand.u32 %v1073, 4294901760
    %3106 = vmatpush1.msra.mxu0 %v3105
    %3107 = vmatprep.subr.mxu0 0.0
    %v3108 = vand.u32 %v1074, 4294901760
    %3109 = vmatpush1.msra.mxu0 %v3108
    %3110 = vmatprep.subr.mxu0 0.0
    %v3111 = vand.u32 %v1075, 4294901760
    %3112 = vmatpush1.msra.mxu0 %v3111
    %3113 = vmatprep.subr.mxu0 0.0
    %v3114 = vand.u32 %v1076, 4294901760
    %3115 = vmatpush1.msra.mxu0 %v3114
    %3116 = vmatprep.subr.mxu0 0.0
    %v3117 = vand.u32 %v1077, 4294901760
    %3118 = vmatpush1.msra.mxu0 %v3117
    %3119 = vmatprep.subr.mxu0 0.0
    %v3120 = vand.u32 %v1078, 4294901760
    %3121 = vmatpush1.msra.mxu0 %v3120
    %3122 = vmatprep.subr.mxu0 0.0
    %v3123 = vand.u32 %v1079, 4294901760
    %3124 = vmatpush1.msra.mxu0 %v3123
    %3125 = vmatprep.subr.mxu0 0.0
    %v3126 = vand.u32 %v1080, 4294901760
    %3127 = vmatpush1.msra.mxu0 %v3126
    %v3128 = vand.u32 %v1013, 4294901760
    %3129 = vmatprep.mubr.f32.mxu0 %v3128
    %v3130 = vand.u32 %v1009, 4294901760
    %3131 = vmatmul.mubr.f32.gmra.mrb[0].mxu0 %v3130
    %v3132 = vpop.f32.mrb[0].mxu0
    %v3133 = vadd.f32 %v3008, %v3132
    %v3134 = vpop.f32.mrb[0].mxu0
    %v3135 = vand.u32 %v1014, 4294901760
    %3136 = vmatprep.mubr.f32.mxu0 %v3135
    %v3137 = vand.u32 %v1010, 4294901760
    %3138 = vmatmul.mubr.f32.gmra.mrb[0].mxu0 %v3137
    %v3139 = vpop.f32.mrb[0].mxu0
    %v3140 = vadd.f32 %v3015, %v3139
    %v3141 = vpop.f32.mrb[0].mxu0
    %v3142 = vand.u32 %v1015, 4294901760
    %3143 = vmatprep.mubr.f32.mxu0 %v3142
    %v3144 = vand.u32 %v1011, 4294901760
    %3145 = vmatmul.mubr.f32.gmra.mrb[0].mxu0 %v3144
    %v3146 = vpop.f32.mrb[0].mxu0
    %v3147 = vadd.f32 %v3022, %v3146
    %v3148 = vpop.f32.mrb[0].mxu0
    %v3149 = vand.u32 %v1016, 4294901760
    %3150 = vmatprep.mubr.f32.mxu0 %v3149
    %v3151 = vand.u32 %v1012, 4294901760
    %3152 = vmatmul.mubr.f32.gmra.mrb[0].mxu0 %v3151
    %v3153 = vpop.f32.mrb[0].mxu0
    %v3154 = vadd.f32 %v3029, %v3153
    %v3155 = vpop.f32.mrb[0].mxu0
    %3156 = vdwg.mxu0
    %3157 = vmatprep.subr.mxu0 0.0
    %v3158 = vand.u32 %v1081, 4294901760
    %3159 = vmatpush1.msra.mxu0 %v3158
    %3160 = vmatprep.subr.mxu0 0.0
    %v3161 = vand.u32 %v1082, 4294901760
    %3162 = vmatpush1.msra.mxu0 %v3161
    %3163 = vmatprep.subr.mxu0 0.0
    %v3164 = vand.u32 %v1083, 4294901760
    %3165 = vmatpush1.msra.mxu0 %v3164
    %3166 = vmatprep.subr.mxu0 0.0
    %v3167 = vand.u32 %v1084, 4294901760
    %3168 = vmatpush1.msra.mxu0 %v3167
    %3169 = vmatprep.subr.mxu0 0.0
    %v3170 = vand.u32 %v1085, 4294901760
    %3171 = vmatpush1.msra.mxu0 %v3170
    %3172 = vmatprep.subr.mxu0 0.0
    %v3173 = vand.u32 %v1086, 4294901760
    %3174 = vmatpush1.msra.mxu0 %v3173
    %3175 = vmatprep.subr.mxu0 0.0
    %v3176 = vand.u32 %v1087, 4294901760
    %3177 = vmatpush1.msra.mxu0 %v3176
    %3178 = vmatprep.subr.mxu0 0.0
    %v3179 = vand.u32 %v1088, 4294901760
    %3180 = vmatpush1.msra.mxu0 %v3179
    %3181 = vmatprep.subr.mxu0 0.0
    %3182 = vmatpush1.msra.mxu0 0.0
    %3183 = vmatprep.subr.mxu0 0.0
    %3184 = vmatpush1.msra.mxu0 0.0
    %3185 = vmatprep.subr.mxu0 0.0
    %3186 = vmatpush1.msra.mxu0 0.0
    %3187 = vmatprep.subr.mxu0 0.0
    %3188 = vmatpush1.msra.mxu0 0.0
    %3189 = vmatprep.subr.mxu0 0.0
    %3190 = vmatpush1.msra.mxu0 0.0
    %3191 = vmatprep.subr.mxu0 0.0
    %3192 = vmatpush1.msra.mxu0 0.0
    %3193 = vmatprep.subr.mxu0 0.0
    %3194 = vmatpush1.msra.mxu0 0.0
    %3195 = vmatprep.subr.mxu0 0.0
    %3196 = vmatpush1.msra.mxu0 0.0
    %3197 = vmatprep.subr.mxu0 0.0
    %3198 = vmatpush1.msra.mxu0 0.0
    %3199 = vmatprep.subr.mxu0 0.0
    %3200 = vmatpush1.msra.mxu0 0.0
    %3201 = vmatprep.subr.mxu0 0.0
    %3202 = vmatpush1.msra.mxu0 0.0
    %3203 = vmatprep.subr.mxu0 0.0
    %3204 = vmatpush1.msra.mxu0 0.0
    %3205 = vmatprep.subr.mxu0 0.0
    %3206 = vmatpush1.msra.mxu0 0.0
    %3207 = vmatprep.subr.mxu0 0.0
    %3208 = vmatpush1.msra.mxu0 0.0
    %3209 = vmatprep.subr.mxu0 0.0
    %3210 = vmatpush1.msra.mxu0 0.0
    %3211 = vmatprep.subr.mxu0 0.0
    %3212 = vmatpush1.msra.mxu0 0.0
    %3213 = vmatprep.subr.mxu0 0.0
    %3214 = vmatpush1.msra.mxu0 0.0
    %3215 = vmatprep.subr.mxu0 0.0
    %3216 = vmatpush1.msra.mxu0 0.0
    %3217 = vmatprep.subr.mxu0 0.0
    %3218 = vmatpush1.msra.mxu0 0.0
    %3219 = vmatprep.subr.mxu0 0.0
    %3220 = vmatpush1.msra.mxu0 0.0
    %3221 = vmatprep.subr.mxu0 0.0
    %3222 = vmatpush1.msra.mxu0 0.0
    %3223 = vmatprep.subr.mxu0 0.0
    %3224 = vmatpush1.msra.mxu0 0.0
    %3225 = vmatprep.subr.mxu0 0.0
    %3226 = vmatpush1.msra.mxu0 0.0
    %3227 = vmatprep.subr.mxu0 0.0
    %3228 = vmatpush1.msra.mxu0 0.0
    %3229 = vmatprep.mubr.f32.mxu0 0.0
    %v3230 = vand.u32 %v1089, 4294901760
    %v3231 = vsub.f32 %v1089, %v3230
    %v3232 = vand.u32 %v3231, 4294901760
    %v3233 = vsub.f32 %v3231, %v3232
    %v3234 = vand.u32 %v3233, 4294901760
    %3235 = vmatmul.mubr.f32.gmra.mrb[0].mxu0 %v3234
    %v3236 = vpop.f32.mrb[0].mxu0
    %v3237 = vadd.f32 %v3133, %v3236
    %v3238 = vpop.f32.mrb[0].mxu0
    %3239 = vmatprep.mubr.f32.mxu0 0.0
    %v3240 = vand.u32 %v1091, 4294901760
    %v3241 = vsub.f32 %v1091, %v3240
    %v3242 = vand.u32 %v3241, 4294901760
    %v3243 = vsub.f32 %v3241, %v3242
    %v3244 = vand.u32 %v3243, 4294901760
    %3245 = vmatmul.mubr.f32.gmra.mrb[0].mxu0 %v3244
    %v3246 = vpop.f32.mrb[0].mxu0
    %v3247 = vadd.f32 %v3140, %v3246
    %v3248 = vpop.f32.mrb[0].mxu0
    %3249 = vmatprep.mubr.f32.mxu0 0.0
    %v3250 = vand.u32 %v1093, 4294901760
    %v3251 = vsub.f32 %v1093, %v3250
    %v3252 = vand.u32 %v3251, 4294901760
    %v3253 = vsub.f32 %v3251, %v3252
    %v3254 = vand.u32 %v3253, 4294901760
    %3255 = vmatmul.mubr.f32.gmra.mrb[0].mxu0 %v3254
    %v3256 = vpop.f32.mrb[0].mxu0
    %v3257 = vadd.f32 %v3147, %v3256
    %v3258 = vpop.f32.mrb[0].mxu0
    %3259 = vmatprep.mubr.f32.mxu0 0.0
    %v3260 = vand.u32 %v1095, 4294901760
    %v3261 = vsub.f32 %v1095, %v3260
    %v3262 = vand.u32 %v3261, 4294901760
    %v3263 = vsub.f32 %v3261, %v3262
    %v3264 = vand.u32 %v3263, 4294901760
    %3265 = vmatmul.mubr.f32.gmra.mrb[0].mxu0 %v3264
    %v3266 = vpop.f32.mrb[0].mxu0
    %v3267 = vadd.f32 %v3154, %v3266
    %v3268 = vpop.f32.mrb[0].mxu0
    %3269 = vdwg.mxu0
    %3270 = vmatprep.subr.mxu0 0.0
    %v3271 = vand.u32 %v1081, 4294901760
    %v3272 = vsub.f32 %v1081, %v3271
    %v3273 = vand.u32 %v3272, 4294901760
    %v3274 = vsub.f32 %v3272, %v3273
    %v3275 = vand.u32 %v3274, 4294901760
    %3276 = vmatpush1.msra.mxu0 %v3275
    %3277 = vmatprep.subr.mxu0 0.0
    %v3278 = vand.u32 %v1082, 4294901760
    %v3279 = vsub.f32 %v1082, %v3278
    %v3280 = vand.u32 %v3279, 4294901760
    %v3281 = vsub.f32 %v3279, %v3280
    %v3282 = vand.u32 %v3281, 4294901760
    %3283 = vmatpush1.msra.mxu0 %v3282
    %3284 = vmatprep.subr.mxu0 0.0
    %v3285 = vand.u32 %v1083, 4294901760
    %v3286 = vsub.f32 %v1083, %v3285
    %v3287 = vand.u32 %v3286, 4294901760
    %v3288 = vsub.f32 %v3286, %v3287
    %v3289 = vand.u32 %v3288, 4294901760
    %3290 = vmatpush1.msra.mxu0 %v3289
    %3291 = vmatprep.subr.mxu0 0.0
    %v3292 = vand.u32 %v1084, 4294901760
    %v3293 = vsub.f32 %v1084, %v3292
    %v3294 = vand.u32 %v3293, 4294901760
    %v3295 = vsub.f32 %v3293, %v3294
    %v3296 = vand.u32 %v3295, 4294901760
    %3297 = vmatpush1.msra.mxu0 %v3296
    %3298 = vmatprep.subr.mxu0 0.0
    %v3299 = vand.u32 %v1085, 4294901760
    %v3300 = vsub.f32 %v1085, %v3299
    %v3301 = vand.u32 %v3300, 4294901760
    %v3302 = vsub.f32 %v3300, %v3301
    %v3303 = vand.u32 %v3302, 4294901760
    %3304 = vmatpush1.msra.mxu0 %v3303
    %3305 = vmatprep.subr.mxu0 0.0
    %v3306 = vand.u32 %v1086, 4294901760
    %v3307 = vsub.f32 %v1086, %v3306
    %v3308 = vand.u32 %v3307, 4294901760
    %v3309 = vsub.f32 %v3307, %v3308
    %v3310 = vand.u32 %v3309, 4294901760
    %3311 = vmatpush1.msra.mxu0 %v3310
    %3312 = vmatprep.subr.mxu0 0.0
    %v3313 = vand.u32 %v1087, 4294901760
    %v3314 = vsub.f32 %v1087, %v3313
    %v3315 = vand.u32 %v3314, 4294901760
    %v3316 = vsub.f32 %v3314, %v3315
    %v3317 = vand.u32 %v3316, 4294901760
    %3318 = vmatpush1.msra.mxu0 %v3317
    %3319 = vmatprep.subr.mxu0 0.0
    %v3320 = vand.u32 %v1088, 4294901760
    %v3321 = vsub.f32 %v1088, %v3320
    %v3322 = vand.u32 %v3321, 4294901760
    %v3323 = vsub.f32 %v3321, %v3322
    %v3324 = vand.u32 %v3323, 4294901760
    %3325 = vmatpush1.msra.mxu0 %v3324
    %3326 = vmatprep.subr.mxu0 0.0
    %3327 = vmatpush1.msra.mxu0 0.0
    %3328 = vmatprep.subr.mxu0 0.0
    %3329 = vmatpush1.msra.mxu0 0.0
    %3330 = vmatprep.subr.mxu0 0.0
    %3331 = vmatpush1.msra.mxu0 0.0
    %3332 = vmatprep.subr.mxu0 0.0
    %3333 = vmatpush1.msra.mxu0 0.0
    %3334 = vmatprep.subr.mxu0 0.0
    %3335 = vmatpush1.msra.mxu0 0.0
    %3336 = vmatprep.subr.mxu0 0.0
    %3337 = vmatpush1.msra.mxu0 0.0
    %3338 = vmatprep.subr.mxu0 0.0
    %3339 = vmatpush1.msra.mxu0 0.0
    %3340 = vmatprep.subr.mxu0 0.0
    %3341 = vmatpush1.msra.mxu0 0.0
    %3342 = vmatprep.subr.mxu0 0.0
    %3343 = vmatpush1.msra.mxu0 0.0
    %3344 = vmatprep.subr.mxu0 0.0
    %3345 = vmatpush1.msra.mxu0 0.0
    %3346 = vmatprep.subr.mxu0 0.0
    %3347 = vmatpush1.msra.mxu0 0.0
    %3348 = vmatprep.subr.mxu0 0.0
    %3349 = vmatpush1.msra.mxu0 0.0
    %3350 = vmatprep.subr.mxu0 0.0
    %3351 = vmatpush1.msra.mxu0 0.0
    %3352 = vmatprep.subr.mxu0 0.0
    %3353 = vmatpush1.msra.mxu0 0.0
    %3354 = vmatprep.subr.mxu0 0.0
    %3355 = vmatpush1.msra.mxu0 0.0
    %3356 = vmatprep.subr.mxu0 0.0
    %3357 = vmatpush1.msra.mxu0 0.0
    %3358 = vmatprep.subr.mxu0 0.0
    %3359 = vmatpush1.msra.mxu0 0.0
    %3360 = vmatprep.subr.mxu0 0.0
    %3361 = vmatpush1.msra.mxu0 0.0
    %3362 = vmatprep.subr.mxu0 0.0
    %3363 = vmatpush1.msra.mxu0 0.0
    %3364 = vmatprep.subr.mxu0 0.0
    %3365 = vmatpush1.msra.mxu0 0.0
    %3366 = vmatprep.subr.mxu0 0.0
    %3367 = vmatpush1.msra.mxu0 0.0
    %3368 = vmatprep.subr.mxu0 0.0
    %3369 = vmatpush1.msra.mxu0 0.0
    %3370 = vmatprep.subr.mxu0 0.0
    %3371 = vmatpush1.msra.mxu0 0.0
    %3372 = vmatprep.subr.mxu0 0.0
    %3373 = vmatpush1.msra.mxu0 0.0
    %3374 = vmatprep.mubr.f32.mxu0 0.0
    %v3375 = vand.u32 %v1089, 4294901760
    %3376 = vmatmul.mubr.f32.gmra.mrb[0].mxu0 %v3375
    %v3377 = vpop.f32.mrb[0].mxu0
    %v3378 = vadd.f32 %v3237, %v3377
    %v3379 = vpop.f32.mrb[0].mxu0
    %3380 = vmatprep.mubr.f32.mxu0 0.0
    %v3381 = vand.u32 %v1091, 4294901760
    %3382 = vmatmul.mubr.f32.gmra.mrb[0].mxu0 %v3381
    %v3383 = vpop.f32.mrb[0].mxu0
    %v3384 = vadd.f32 %v3247, %v3383
    %v3385 = vpop.f32.mrb[0].mxu0
    %3386 = vmatprep.mubr.f32.mxu0 0.0
    %v3387 = vand.u32 %v1093, 4294901760
    %3388 = vmatmul.mubr.f32.gmra.mrb[0].mxu0 %v3387
    %v3389 = vpop.f32.mrb[0].mxu0
    %v3390 = vadd.f32 %v3257, %v3389
    %v3391 = vpop.f32.mrb[0].mxu0
    %3392 = vmatprep.mubr.f32.mxu0 0.0
    %v3393 = vand.u32 %v1095, 4294901760
    %3394 = vmatmul.mubr.f32.gmra.mrb[0].mxu0 %v3393
    %v3395 = vpop.f32.mrb[0].mxu0
    %v3396 = vadd.f32 %v3267, %v3395
    %v3397 = vpop.f32.mrb[0].mxu0
    %3398 = vdwg.mxu0
    %3399 = vmatprep.subr.mxu0 0.0
    %v3400 = vand.u32 %v1081, 4294901760
    %v3401 = vsub.f32 %v1081, %v3400
    %3402 = vmatpush1.msra.mxu0 %v3401
    %3403 = vmatprep.subr.mxu0 0.0
    %v3404 = vand.u32 %v1082, 4294901760
    %v3405 = vsub.f32 %v1082, %v3404
    %3406 = vmatpush1.msra.mxu0 %v3405
    %3407 = vmatprep.subr.mxu0 0.0
    %v3408 = vand.u32 %v1083, 4294901760
    %v3409 = vsub.f32 %v1083, %v3408
    %3410 = vmatpush1.msra.mxu0 %v3409
    %3411 = vmatprep.subr.mxu0 0.0
    %v3412 = vand.u32 %v1084, 4294901760
    %v3413 = vsub.f32 %v1084, %v3412
    %3414 = vmatpush1.msra.mxu0 %v3413
    %3415 = vmatprep.subr.mxu0 0.0
    %v3416 = vand.u32 %v1085, 4294901760
    %v3417 = vsub.f32 %v1085, %v3416
    %3418 = vmatpush1.msra.mxu0 %v3417
    %3419 = vmatprep.subr.mxu0 0.0
    %v3420 = vand.u32 %v1086, 4294901760
    %v3421 = vsub.f32 %v1086, %v3420
    %3422 = vmatpush1.msra.mxu0 %v3421
    %3423 = vmatprep.subr.mxu0 0.0
    %v3424 = vand.u32 %v1087, 4294901760
    %v3425 = vsub.f32 %v1087, %v3424
    %3426 = vmatpush1.msra.mxu0 %v3425
    %3427 = vmatprep.subr.mxu0 0.0
    %v3428 = vand.u32 %v1088, 4294901760
    %v3429 = vsub.f32 %v1088, %v3428
    %3430 = vmatpush1.msra.mxu0 %v3429
    %3431 = vmatprep.subr.mxu0 0.0
    %3432 = vmatpush1.msra.mxu0 0.0
    %3433 = vmatprep.subr.mxu0 0.0
    %3434 = vmatpush1.msra.mxu0 0.0
    %3435 = vmatprep.subr.mxu0 0.0
    %3436 = vmatpush1.msra.mxu0 0.0
    %3437 = vmatprep.subr.mxu0 0.0
    %3438 = vmatpush1.msra.mxu0 0.0
    %3439 = vmatprep.subr.mxu0 0.0
    %3440 = vmatpush1.msra.mxu0 0.0
    %3441 = vmatprep.subr.mxu0 0.0
    %3442 = vmatpush1.msra.mxu0 0.0
    %3443 = vmatprep.subr.mxu0 0.0
    %3444 = vmatpush1.msra.mxu0 0.0
    %3445 = vmatprep.subr.mxu0 0.0
    %3446 = vmatpush1.msra.mxu0 0.0
    %3447 = vmatprep.subr.mxu0 0.0
    %3448 = vmatpush1.msra.mxu0 0.0
    %3449 = vmatprep.subr.mxu0 0.0
    %3450 = vmatpush1.msra.mxu0 0.0
    %3451 = vmatprep.subr.mxu0 0.0
    %3452 = vmatpush1.msra.mxu0 0.0
    %3453 = vmatprep.subr.mxu0 0.0
    %3454 = vmatpush1.msra.mxu0 0.0
    %3455 = vmatprep.subr.mxu0 0.0
    %3456 = vmatpush1.msra.mxu0 0.0
    %3457 = vmatprep.subr.mxu0 0.0
    %3458 = vmatpush1.msra.mxu0 0.0
    %3459 = vmatprep.subr.mxu0 0.0
    %3460 = vmatpush1.msra.mxu0 0.0
    %3461 = vmatprep.subr.mxu0 0.0
    %3462 = vmatpush1.msra.mxu0 0.0
    %3463 = vmatprep.subr.mxu0 0.0
    %3464 = vmatpush1.msra.mxu0 0.0
    %3465 = vmatprep.subr.mxu0 0.0
    %3466 = vmatpush1.msra.mxu0 0.0
    %3467 = vmatprep.subr.mxu0 0.0
    %3468 = vmatpush1.msra.mxu0 0.0
    %3469 = vmatprep.subr.mxu0 0.0
    %3470 = vmatpush1.msra.mxu0 0.0
    %3471 = vmatprep.subr.mxu0 0.0
    %3472 = vmatpush1.msra.mxu0 0.0
    %3473 = vmatprep.subr.mxu0 0.0
    %3474 = vmatpush1.msra.mxu0 0.0
    %3475 = vmatprep.subr.mxu0 0.0
    %3476 = vmatpush1.msra.mxu0 0.0
    %3477 = vmatprep.subr.mxu0 0.0
    %3478 = vmatpush1.msra.mxu0 0.0
    %3479 = vmatprep.mubr.f32.mxu0 0.0
    %v3480 = vand.u32 %v1089, 4294901760
    %v3481 = vsub.f32 %v1089, %v3480
    %3482 = vmatmul.mubr.f32.gmra.mrb[0].mxu0 %v3481
    %v3483 = vpop.f32.mrb[0].mxu0
    %v3484 = vadd.f32 %v3378, %v3483
    %v3485 = vpop.f32.mrb[0].mxu0
    %3486 = vmatprep.mubr.f32.mxu0 0.0
    %v3487 = vand.u32 %v1091, 4294901760
    %v3488 = vsub.f32 %v1091, %v3487
    %3489 = vmatmul.mubr.f32.gmra.mrb[0].mxu0 %v3488
    %v3490 = vpop.f32.mrb[0].mxu0
    %v3491 = vadd.f32 %v3384, %v3490
    %v3492 = vpop.f32.mrb[0].mxu0
    %3493 = vmatprep.mubr.f32.mxu0 0.0
    %v3494 = vand.u32 %v1093, 4294901760
    %v3495 = vsub.f32 %v1093, %v3494
    %3496 = vmatmul.mubr.f32.gmra.mrb[0].mxu0 %v3495
    %v3497 = vpop.f32.mrb[0].mxu0
    %v3498 = vadd.f32 %v3390, %v3497
    %v3499 = vpop.f32.mrb[0].mxu0
    %3500 = vmatprep.mubr.f32.mxu0 0.0
    %v3501 = vand.u32 %v1095, 4294901760
    %v3502 = vsub.f32 %v1095, %v3501
    %3503 = vmatmul.mubr.f32.gmra.mrb[0].mxu0 %v3502
    %v3504 = vpop.f32.mrb[0].mxu0
    %v3505 = vadd.f32 %v3396, %v3504
    %v3506 = vpop.f32.mrb[0].mxu0
    %3507 = vdwg.mxu0
    %3508 = vmatprep.subr.mxu0 0.0
    %v3509 = vand.u32 %v1081, 4294901760
    %3510 = vmatpush1.msra.mxu0 %v3509
    %3511 = vmatprep.subr.mxu0 0.0
    %v3512 = vand.u32 %v1082, 4294901760
    %3513 = vmatpush1.msra.mxu0 %v3512
    %3514 = vmatprep.subr.mxu0 0.0
    %v3515 = vand.u32 %v1083, 4294901760
    %3516 = vmatpush1.msra.mxu0 %v3515
    %3517 = vmatprep.subr.mxu0 0.0
    %v3518 = vand.u32 %v1084, 4294901760
    %3519 = vmatpush1.msra.mxu0 %v3518
    %3520 = vmatprep.subr.mxu0 0.0
    %v3521 = vand.u32 %v1085, 4294901760
    %3522 = vmatpush1.msra.mxu0 %v3521
    %3523 = vmatprep.subr.mxu0 0.0
    %v3524 = vand.u32 %v1086, 4294901760
    %3525 = vmatpush1.msra.mxu0 %v3524
    %3526 = vmatprep.subr.mxu0 0.0
    %v3527 = vand.u32 %v1087, 4294901760
    %3528 = vmatpush1.msra.mxu0 %v3527
    %3529 = vmatprep.subr.mxu0 0.0
    %v3530 = vand.u32 %v1088, 4294901760
    %3531 = vmatpush1.msra.mxu0 %v3530
    %3532 = vmatprep.subr.mxu0 0.0
    %3533 = vmatpush1.msra.mxu0 0.0
    %3534 = vmatprep.subr.mxu0 0.0
    %3535 = vmatpush1.msra.mxu0 0.0
    %3536 = vmatprep.subr.mxu0 0.0
    %3537 = vmatpush1.msra.mxu0 0.0
    %3538 = vmatprep.subr.mxu0 0.0
    %3539 = vmatpush1.msra.mxu0 0.0
    %3540 = vmatprep.subr.mxu0 0.0
    %3541 = vmatpush1.msra.mxu0 0.0
    %3542 = vmatprep.subr.mxu0 0.0
    %3543 = vmatpush1.msra.mxu0 0.0
    %3544 = vmatprep.subr.mxu0 0.0
    %3545 = vmatpush1.msra.mxu0 0.0
    %3546 = vmatprep.subr.mxu0 0.0
    %3547 = vmatpush1.msra.mxu0 0.0
    %3548 = vmatprep.subr.mxu0 0.0
    %3549 = vmatpush1.msra.mxu0 0.0
    %3550 = vmatprep.subr.mxu0 0.0
    %3551 = vmatpush1.msra.mxu0 0.0
    %3552 = vmatprep.subr.mxu0 0.0
    %3553 = vmatpush1.msra.mxu0 0.0
    %3554 = vmatprep.subr.mxu0 0.0
    %3555 = vmatpush1.msra.mxu0 0.0
    %3556 = vmatprep.subr.mxu0 0.0
    %3557 = vmatpush1.msra.mxu0 0.0
    %3558 = vmatprep.subr.mxu0 0.0
    %3559 = vmatpush1.msra.mxu0 0.0
    %3560 = vmatprep.subr.mxu0 0.0
    %3561 = vmatpush1.msra.mxu0 0.0
    %3562 = vmatprep.subr.mxu0 0.0
    %3563 = vmatpush1.msra.mxu0 0.0
    %3564 = vmatprep.subr.mxu0 0.0
    %3565 = vmatpush1.msra.mxu0 0.0
    %3566 = vmatprep.subr.mxu0 0.0
    %3567 = vmatpush1.msra.mxu0 0.0
    %3568 = vmatprep.subr.mxu0 0.0
    %3569 = vmatpush1.msra.mxu0 0.0
    %3570 = vmatprep.subr.mxu0 0.0
    %3571 = vmatpush1.msra.mxu0 0.0
    %3572 = vmatprep.subr.mxu0 0.0
    %3573 = vmatpush1.msra.mxu0 0.0
    %3574 = vmatprep.subr.mxu0 0.0
    %3575 = vmatpush1.msra.mxu0 0.0
    %3576 = vmatprep.subr.mxu0 0.0
    %3577 = vmatpush1.msra.mxu0 0.0
    %3578 = vmatprep.subr.mxu0 0.0
    %3579 = vmatpush1.msra.mxu0 0.0
    %3580 = vmatprep.mubr.f32.mxu0 0.0
    %v3581 = vand.u32 %v1089, 4294901760
    %v3582 = vsub.f32 %v1089, %v3581
    %v3583 = vand.u32 %v3582, 4294901760
    %3584 = vmatmul.mubr.f32.gmra.mrb[0].mxu0 %v3583
    %v3585 = vpop.f32.mrb[0].mxu0
    %v3586 = vadd.f32 %v3484, %v3585
    %v3587 = vpop.f32.mrb[0].mxu0
    %3588 = vmatprep.mubr.f32.mxu0 0.0
    %v3589 = vand.u32 %v1091, 4294901760
    %v3590 = vsub.f32 %v1091, %v3589
    %v3591 = vand.u32 %v3590, 4294901760
    %3592 = vmatmul.mubr.f32.gmra.mrb[0].mxu0 %v3591
    %v3593 = vpop.f32.mrb[0].mxu0
    %v3594 = vadd.f32 %v3491, %v3593
    %v3595 = vpop.f32.mrb[0].mxu0
    %3596 = vmatprep.mubr.f32.mxu0 0.0
    %v3597 = vand.u32 %v1093, 4294901760
    %v3598 = vsub.f32 %v1093, %v3597
    %v3599 = vand.u32 %v3598, 4294901760
    %3600 = vmatmul.mubr.f32.gmra.mrb[0].mxu0 %v3599
    %v3601 = vpop.f32.mrb[0].mxu0
    %v3602 = vadd.f32 %v3498, %v3601
    %v3603 = vpop.f32.mrb[0].mxu0
    %3604 = vmatprep.mubr.f32.mxu0 0.0
    %v3605 = vand.u32 %v1095, 4294901760
    %v3606 = vsub.f32 %v1095, %v3605
    %v3607 = vand.u32 %v3606, 4294901760
    %3608 = vmatmul.mubr.f32.gmra.mrb[0].mxu0 %v3607
    %v3609 = vpop.f32.mrb[0].mxu0
    %v3610 = vadd.f32 %v3505, %v3609
    %v3611 = vpop.f32.mrb[0].mxu0
    %3612 = vdwg.mxu0
    %3613 = vmatprep.subr.mxu0 0.0
    %v3614 = vand.u32 %v1081, 4294901760
    %v3615 = vsub.f32 %v1081, %v3614
    %v3616 = vand.u32 %v3615, 4294901760
    %3617 = vmatpush1.msra.mxu0 %v3616
    %3618 = vmatprep.subr.mxu0 0.0
    %v3619 = vand.u32 %v1082, 4294901760
    %v3620 = vsub.f32 %v1082, %v3619
    %v3621 = vand.u32 %v3620, 4294901760
    %3622 = vmatpush1.msra.mxu0 %v3621
    %3623 = vmatprep.subr.mxu0 0.0
    %v3624 = vand.u32 %v1083, 4294901760
    %v3625 = vsub.f32 %v1083, %v3624
    %v3626 = vand.u32 %v3625, 4294901760
    %3627 = vmatpush1.msra.mxu0 %v3626
    %3628 = vmatprep.subr.mxu0 0.0
    %v3629 = vand.u32 %v1084, 4294901760
    %v3630 = vsub.f32 %v1084, %v3629
    %v3631 = vand.u32 %v3630, 4294901760
    %3632 = vmatpush1.msra.mxu0 %v3631
    %3633 = vmatprep.subr.mxu0 0.0
    %v3634 = vand.u32 %v1085, 4294901760
    %v3635 = vsub.f32 %v1085, %v3634
    %v3636 = vand.u32 %v3635, 4294901760
    %3637 = vmatpush1.msra.mxu0 %v3636
    %3638 = vmatprep.subr.mxu0 0.0
    %v3639 = vand.u32 %v1086, 4294901760
    %v3640 = vsub.f32 %v1086, %v3639
    %v3641 = vand.u32 %v3640, 4294901760
    %3642 = vmatpush1.msra.mxu0 %v3641
    %3643 = vmatprep.subr.mxu0 0.0
    %v3644 = vand.u32 %v1087, 4294901760
    %v3645 = vsub.f32 %v1087, %v3644
    %v3646 = vand.u32 %v3645, 4294901760
    %3647 = vmatpush1.msra.mxu0 %v3646
    %3648 = vmatprep.subr.mxu0 0.0
    %v3649 = vand.u32 %v1088, 4294901760
    %v3650 = vsub.f32 %v1088, %v3649
    %v3651 = vand.u32 %v3650, 4294901760
    %3652 = vmatpush1.msra.mxu0 %v3651
    %3653 = vmatprep.subr.mxu0 0.0
    %3654 = vmatpush1.msra.mxu0 0.0
    %3655 = vmatprep.subr.mxu0 0.0
    %3656 = vmatpush1.msra.mxu0 0.0
    %3657 = vmatprep.subr.mxu0 0.0
    %3658 = vmatpush1.msra.mxu0 0.0
    %3659 = vmatprep.subr.mxu0 0.0
    %3660 = vmatpush1.msra.mxu0 0.0
    %3661 = vmatprep.subr.mxu0 0.0
    %3662 = vmatpush1.msra.mxu0 0.0
    %3663 = vmatprep.subr.mxu0 0.0
    %3664 = vmatpush1.msra.mxu0 0.0
    %3665 = vmatprep.subr.mxu0 0.0
    %3666 = vmatpush1.msra.mxu0 0.0
    %3667 = vmatprep.subr.mxu0 0.0
    %3668 = vmatpush1.msra.mxu0 0.0
    %3669 = vmatprep.subr.mxu0 0.0
    %3670 = vmatpush1.msra.mxu0 0.0
    %3671 = vmatprep.subr.mxu0 0.0
    %3672 = vmatpush1.msra.mxu0 0.0
    %3673 = vmatprep.subr.mxu0 0.0
    %3674 = vmatpush1.msra.mxu0 0.0
    %3675 = vmatprep.subr.mxu0 0.0
    %3676 = vmatpush1.msra.mxu0 0.0
    %3677 = vmatprep.subr.mxu0 0.0
    %3678 = vmatpush1.msra.mxu0 0.0
    %3679 = vmatprep.subr.mxu0 0.0
    %3680 = vmatpush1.msra.mxu0 0.0
    %3681 = vmatprep.subr.mxu0 0.0
    %3682 = vmatpush1.msra.mxu0 0.0
    %3683 = vmatprep.subr.mxu0 0.0
    %3684 = vmatpush1.msra.mxu0 0.0
    %3685 = vmatprep.subr.mxu0 0.0
    %3686 = vmatpush1.msra.mxu0 0.0
    %3687 = vmatprep.subr.mxu0 0.0
    %3688 = vmatpush1.msra.mxu0 0.0
    %3689 = vmatprep.subr.mxu0 0.0
    %3690 = vmatpush1.msra.mxu0 0.0
    %3691 = vmatprep.subr.mxu0 0.0
    %3692 = vmatpush1.msra.mxu0 0.0
    %3693 = vmatprep.subr.mxu0 0.0
    %3694 = vmatpush1.msra.mxu0 0.0
    %3695 = vmatprep.subr.mxu0 0.0
    %3696 = vmatpush1.msra.mxu0 0.0
    %3697 = vmatprep.subr.mxu0 0.0
    %3698 = vmatpush1.msra.mxu0 0.0
    %3699 = vmatprep.subr.mxu0 0.0
    %3700 = vmatpush1.msra.mxu0 0.0
    %3701 = vmatprep.mubr.f32.mxu0 0.0
    %v3702 = vand.u32 %v1089, 4294901760
    %3703 = vmatmul.mubr.f32.gmra.mrb[0].mxu0 %v3702
    %v3704 = vpop.f32.mrb[0].mxu0
    %v3705 = vadd.f32 %v3586, %v3704
    %v3706 = vpop.f32.mrb[0].mxu0
    %3707 = vmatprep.mubr.f32.mxu0 0.0
    %v3708 = vand.u32 %v1091, 4294901760
    %3709 = vmatmul.mubr.f32.gmra.mrb[0].mxu0 %v3708
    %v3710 = vpop.f32.mrb[0].mxu0
    %v3711 = vadd.f32 %v3594, %v3710
    %v3712 = vpop.f32.mrb[0].mxu0
    %3713 = vmatprep.mubr.f32.mxu0 0.0
    %v3714 = vand.u32 %v1093, 4294901760
    %3715 = vmatmul.mubr.f32.gmra.mrb[0].mxu0 %v3714
    %v3716 = vpop.f32.mrb[0].mxu0
    %v3717 = vadd.f32 %v3602, %v3716
    %v3718 = vpop.f32.mrb[0].mxu0
    %3719 = vmatprep.mubr.f32.mxu0 0.0
    %v3720 = vand.u32 %v1095, 4294901760
    %3721 = vmatmul.mubr.f32.gmra.mrb[0].mxu0 %v3720
    %v3722 = vpop.f32.mrb[0].mxu0
    %v3723 = vadd.f32 %v3610, %v3722
    %v3724 = vpop.f32.mrb[0].mxu0
    %3725 = vdwg.mxu0
    %3726 = vmatprep.subr.mxu0 0.0
    %v3727 = vand.u32 %v1081, 4294901760
    %3728 = vmatpush1.msra.mxu0 %v3727
    %3729 = vmatprep.subr.mxu0 0.0
    %v3730 = vand.u32 %v1082, 4294901760
    %3731 = vmatpush1.msra.mxu0 %v3730
    %3732 = vmatprep.subr.mxu0 0.0
    %v3733 = vand.u32 %v1083, 4294901760
    %3734 = vmatpush1.msra.mxu0 %v3733
    %3735 = vmatprep.subr.mxu0 0.0
    %v3736 = vand.u32 %v1084, 4294901760
    %3737 = vmatpush1.msra.mxu0 %v3736
    %3738 = vmatprep.subr.mxu0 0.0
    %v3739 = vand.u32 %v1085, 4294901760
    %3740 = vmatpush1.msra.mxu0 %v3739
    %3741 = vmatprep.subr.mxu0 0.0
    %v3742 = vand.u32 %v1086, 4294901760
    %3743 = vmatpush1.msra.mxu0 %v3742
    %3744 = vmatprep.subr.mxu0 0.0
    %v3745 = vand.u32 %v1087, 4294901760
    %3746 = vmatpush1.msra.mxu0 %v3745
    %3747 = vmatprep.subr.mxu0 0.0
    %v3748 = vand.u32 %v1088, 4294901760
    %3749 = vmatpush1.msra.mxu0 %v3748
    %3750 = vmatprep.subr.mxu0 0.0
    %3751 = vmatpush1.msra.mxu0 0.0
    %3752 = vmatprep.subr.mxu0 0.0
    %3753 = vmatpush1.msra.mxu0 0.0
    %3754 = vmatprep.subr.mxu0 0.0
    %3755 = vmatpush1.msra.mxu0 0.0
    %3756 = vmatprep.subr.mxu0 0.0
    %3757 = vmatpush1.msra.mxu0 0.0
    %3758 = vmatprep.subr.mxu0 0.0
    %3759 = vmatpush1.msra.mxu0 0.0
    %3760 = vmatprep.subr.mxu0 0.0
    %3761 = vmatpush1.msra.mxu0 0.0
    %3762 = vmatprep.subr.mxu0 0.0
    %3763 = vmatpush1.msra.mxu0 0.0
    %3764 = vmatprep.subr.mxu0 0.0
    %3765 = vmatpush1.msra.mxu0 0.0
    %3766 = vmatprep.subr.mxu0 0.0
    %3767 = vmatpush1.msra.mxu0 0.0
    %3768 = vmatprep.subr.mxu0 0.0
    %3769 = vmatpush1.msra.mxu0 0.0
    %3770 = vmatprep.subr.mxu0 0.0
    %3771 = vmatpush1.msra.mxu0 0.0
    %3772 = vmatprep.subr.mxu0 0.0
    %3773 = vmatpush1.msra.mxu0 0.0
    %3774 = vmatprep.subr.mxu0 0.0
    %3775 = vmatpush1.msra.mxu0 0.0
    %3776 = vmatprep.subr.mxu0 0.0
    %3777 = vmatpush1.msra.mxu0 0.0
    %3778 = vmatprep.subr.mxu0 0.0
    %3779 = vmatpush1.msra.mxu0 0.0
    %3780 = vmatprep.subr.mxu0 0.0
    %3781 = vmatpush1.msra.mxu0 0.0
    %3782 = vmatprep.subr.mxu0 0.0
    %3783 = vmatpush1.msra.mxu0 0.0
    %3784 = vmatprep.subr.mxu0 0.0
    %3785 = vmatpush1.msra.mxu0 0.0
    %3786 = vmatprep.subr.mxu0 0.0
    %3787 = vmatpush1.msra.mxu0 0.0
    %3788 = vmatprep.subr.mxu0 0.0
    %3789 = vmatpush1.msra.mxu0 0.0
    %3790 = vmatprep.subr.mxu0 0.0
    %3791 = vmatpush1.msra.mxu0 0.0
    %3792 = vmatprep.subr.mxu0 0.0
    %3793 = vmatpush1.msra.mxu0 0.0
    %3794 = vmatprep.subr.mxu0 0.0
    %3795 = vmatpush1.msra.mxu0 0.0
    %3796 = vmatprep.subr.mxu0 0.0
    %3797 = vmatpush1.msra.mxu0 0.0
    %3798 = vmatprep.mubr.f32.mxu0 0.0
    %v3799 = vand.u32 %v1089, 4294901760
    %3800 = vmatmul.mubr.f32.gmra.mrb[0].mxu0 %v3799
    %v3801 = vpop.f32.mrb[0].mxu0
    %v3802 = vadd.f32 %v3705, %v3801
    %v3803 = vpop.f32.mrb[0].mxu0
    %3804 = vmatprep.mubr.f32.mxu0 0.0
    %v3805 = vand.u32 %v1091, 4294901760
    %3806 = vmatmul.mubr.f32.gmra.mrb[0].mxu0 %v3805
    %v3807 = vpop.f32.mrb[0].mxu0
    %v3808 = vadd.f32 %v3711, %v3807
    %v3809 = vpop.f32.mrb[0].mxu0
    %3810 = vmatprep.mubr.f32.mxu0 0.0
    %v3811 = vand.u32 %v1093, 4294901760
    %3812 = vmatmul.mubr.f32.gmra.mrb[0].mxu0 %v3811
    %v3813 = vpop.f32.mrb[0].mxu0
    %v3814 = vadd.f32 %v3717, %v3813
    %v3815 = vpop.f32.mrb[0].mxu0
    %3816 = vmatprep.mubr.f32.mxu0 0.0
    %v3817 = vand.u32 %v1095, 4294901760
    %3818 = vmatmul.mubr.f32.gmra.mrb[0].mxu0 %v3817
    %v3819 = vpop.f32.mrb[0].mxu0
    %v3820 = vadd.f32 %v3723, %v3819
    %v3821 = vpop.f32.mrb[0].mxu0
    %3822 = vdwg.mxu0
    %v3823 = vsel %vm112, %v3802, 0.0
    %v3824 = vsel %vm112, %v3808, 0.0
    %v3825 = vadd.f32 %v3823, %v3824
    %v3826 = vsel %vm112, %v3814, 0.0
    %v3827 = vadd.f32 %v3825, %v3826
    %v3828 = vsel %vm112, %v3820, 0.0
    %v3829 = vadd.f32 %v3827, %v3828
    %v3830 = vrot.slane %v3829, 4
    %v3831 = vadd.f32 %v3829, %v3830
    %v3832 = vrot.slane %v3831, 2
    %v3833 = vadd.f32 %v3831, %v3832
    %v3834 = vrot.slane %v3833, 1
    %v3835 = vadd.f32 %v3833, %v3834
    %v3836 = vmul.f32 %v3835, 0.03125
    %v3837 = vmul.f32 %v3802, %v3802
    %v3838 = vmul.f32 %v3808, %v3808
    %v3839 = vmul.f32 %v3814, %v3814
    %v3840 = vmul.f32 %v3820, %v3820
    %v3841 = vsel %vm112, %v3837, 0.0
    %v3842 = vsel %vm112, %v3838, 0.0
    %v3843 = vadd.f32 %v3841, %v3842
    %v3844 = vsel %vm112, %v3839, 0.0
    %v3845 = vadd.f32 %v3843, %v3844
    %v3846 = vsel %vm112, %v3840, 0.0
    %v3847 = vadd.f32 %v3845, %v3846
    %v3848 = vrot.slane %v3847, 4
    %v3849 = vadd.f32 %v3847, %v3848
    %v3850 = vrot.slane %v3849, 2
    %v3851 = vadd.f32 %v3849, %v3850
    %v3852 = vrot.slane %v3851, 1
    %v3853 = vadd.f32 %v3851, %v3852
    %v3854 = vmul.f32 %v3853, 0.03125
    %v3855 = vmul.f32 %v3836, %v3836
    %v3856 = vsub.f32 %v3854, %v3855
    %v3857 = vadd.f32 %v3856, 1e-05
    %v3858 = vrsqrt.pop %v3857
    %v3859 = vmul.f32 %v20, %v3858
    %v3860 = vmul.f32 %v3836, %v3859
    %v3861 = vsub.f32 %v21, %v3860
    %v3862 = vlaneseq
    %v3863 = vshrl.u32 %v3862, 7
    %v3864 = vsub.s32 0, %v3863
    %v3865 = vrot.slane %v3859, %v3864
    %v3866 = vmul.f32 %v3802, %v3865
    %v3867 = vmul.f32 %v3808, %v3865
    %v3868 = vmul.f32 %v3814, %v3865
    %v3869 = vmul.f32 %v3820, %v3865
    %v3870 = vlaneseq
    %v3871 = vshrl.u32 %v3870, 7
    %v3872 = vsub.s32 0, %v3871
    %v3873 = vrot.slane %v3861, %v3872
    %v3874 = vadd.f32 %v3866, %v3873
    %v3875 = vadd.f32 %v3867, %v3873
    %v3876 = vadd.f32 %v3868, %v3873
    %v3877 = vadd.f32 %v3869, %v3873
    %vm3878 = vcmp.ge.f32.partialorder %v3874, 0.0
    %vm3879 = vcmp.ge.f32.partialorder %v3875, 0.0
    %vm3880 = vcmp.ge.f32.partialorder %v3876, 0.0
    %vm3881 = vcmp.ge.f32.partialorder %v3877, 0.0
    %v3882 = vmul.f32 %v3874, 0.2
    %v3883 = vmul.f32 %v3875, 0.2
    %v3884 = vmul.f32 %v3876, 0.2
    %v3885 = vmul.f32 %v3877, 0.2
    %v3886 = vsel %vm3878, %v3874, %v3882
    %v3887 = vsel %vm3879, %v3875, %v3883
    %v3888 = vsel %vm3880, %v3876, %v3884
    %v3889 = vsel %vm3881, %v3877, %v3885
    %v3890 = vadd.f32 %v3886, %v854
    %v3891 = vadd.f32 %v3887, %v855
    %v3892 = vadd.f32 %v3888, %v856
    %v3893 = vadd.f32 %v3889, %v857
    %v3894 = vmul.f32 %v3890, 0.70710677
    %v3895 = vmul.f32 %v3891, 0.70710677
    %v3896 = vmul.f32 %v3892, 0.70710677
    %v3897 = vmul.f32 %v3893, 0.70710677
    %v3898 = vlaneseq
    %v3899 = vshrl.u32 %v3898, 7
    %v3900 = vsub.s32 0, %v3899
    %v3901 = vrot.slane %v22, %v3900
    %v3902 = vmul.f32 %v3894, %v3901
    %v3903 = vmul.f32 %v3895, %v3901
    %v3904 = vmul.f32 %v3896, %v3901
    %v3905 = vmul.f32 %v3897, %v3901
    %v3906 = vsel %vm112, %v3902, 0.0
    %3907 = vadd.xlane.f32.xlu0 %v3906
    %v3908 = vpop.xlane.xlu0 %3907
    %v3909 = vsel %vm112, %v3903, 0.0
    %3910 = vadd.xlane.f32.xlu0 %v3909
    %v3911 = vpop.xlane.xlu0 %3910
    %v3912 = vsel %vm112, %v3904, 0.0
    %3913 = vadd.xlane.f32.xlu0 %v3912
    %v3914 = vpop.xlane.xlu0 %3913
    %v3915 = vsel %vm112, %v3905, 0.0
    %3916 = vadd.xlane.f32.xlu0 %v3915
    %v3917 = vpop.xlane.xlu0 %3916
    %3919 = vset.pattern.permute.xlu0 0
    %3920 = vperm.xlu0 %3919, %v23
    %v3921 = vpop.permute.xlu0 %3920
    %v3922 = vlaneseq
    %v3923 = vshrl.u32 %v3922, 7
    %v3924 = vsub.s32 0, %v3923
    %v3925 = vrot.slane %v3921, %v3924
    %v3927 = vadd.f32 %v3908, %v3925
    %v3928 = vadd.f32 %v3911, %v3925
    %v3929 = vadd.f32 %v3914, %v3925
    %v3930 = vadd.f32 %v3917, %v3925
    %3935 = vset.pattern.permute.xlu0 0
    %3936 = vperm.xlu0 %3935, %v3927
    %v3937 = vpop.permute.xlu0 %3936
    %3938 = vset.pattern.permute.xlu0 0
    %3939 = vperm.xlu0 %3938, %v3928
    %v3940 = vpop.permute.xlu0 %3939
    %3941 = vset.pattern.permute.xlu0 0
    %3942 = vperm.xlu0 %3941, %v3929
    %v3943 = vpop.permute.xlu0 %3942
    %3944 = vset.pattern.permute.xlu0 0
    %3945 = vperm.xlu0 %3944, %v3930
    %v3946 = vpop.permute.xlu0 %3945
    %v3947 = vlaneseq
    %v3948 = vand.u32 %v3947, 127
    %v3949 = vlaneseq
    %v3950 = vshrl.u32 %v3949, 7
    %v3951 = vsub.s32 %v3948, %v3950
    %v3952 = vrot.slane %v3937, %v3951
    %v3953 = vadd.s32 %v3948, 4294967288
    %v3954 = vlaneseq
    %v3955 = vshrl.u32 %v3954, 7
    %v3956 = vsub.s32 %v3953, %v3955
    %v3957 = vrot.slane %v3940, %v3956
    %vm3958 = vcmask 130112
    %v3959 = vsel %vm3958, %v3957, %v3952
    %v3960 = vlaneseq
    %v3961 = vshrl.u32 %v3960, 7
    %v3962 = vsub.s32 %v3948, %v3961
    %v3963 = vrot.slane %v3943, %v3962
    %v3964 = vlaneseq
    %v3965 = vshrl.u32 %v3964, 7
    %v3966 = vsub.s32 %v3953, %v3965
    %v3967 = vrot.slane %v3946, %v3966
    %v3968 = vsel %vm3958, %v3967, %v3963
    %vm3971 = vcmask 122880
    %3972 = vst.msk [vmem:[#allocation2] sm:$0x1] %vm3971, %v3959
    %3973 = vst.msk [vmem:[#allocation2 + $0x1] sm:$0x1] %vm3971, %v3968
    // Predicated region
    $region18: #{disc_head_forward.1} parent=1 // pred_check
      _
    $region19: #{disc_head_forward.1} parent=1 // pred_check_branch
      %3975 = sbr.rel (0) target = $region21
    $region20: #{disc_head_forward.1} parent=1 // pred_region
      %s3977 = ssub.s32 32, 32
      %3978 = vsyncadd [#allocation3], %s3977
      %s3979 = sshll.u32 [#allocation2], 4
      %s3980 = int_to_ptr.vmem [resolvable:$true] %s3979
      %3985 = dma.vmem_to_hbm [thread:$0]  %s3980, 32, %s4, [#allocation3], 16, 16, 1
    $region21: #{disc_head_forward.1} parent=1 // pred_fallthru
      _
    // Predicated region
    $region22: #{disc_head_forward.1} parent=1 // pred_check
      _
    $region23: #{disc_head_forward.1} parent=1 // pred_check_branch
      %3987 = sbr.rel (0) target = $region25
    $region24: #{disc_head_forward.1} parent=1 // pred_region
      %3988 = dma.done [#allocation3], 32
    $region25: #{disc_head_forward.1} parent=1 // pred_fallthru
      _
    %3989 = vsyncpa [#allocation3], 1

</llo_original>
